<compile_context>
chip_gen: v5e
topology: v5e:2x2
jax: 0.10.0
libtpu: 0.0.40
codegen_flags: <defaults>
</compile_context>

<pallas_src>
import math

import jax
import jax.numpy as jnp
from jax.experimental import pallas as pl
from jax.experimental.pallas import tpu as pltpu

# ---- hyperparameters mirroring RNN.py -------------------------------------
chars = 'abcdefghijklmnopqrstuvwxyz ?!.,:;0'
input_size = len(chars)        # 34
hidden_size = 50
output_size = len(chars)       # 34
num_layers = 2
batch_size = 1
seq_len = 8

# padded (lane-aligned) sizes used inside the kernel
HP = 128                       # hidden / input padded to one full vreg lane width
OP = 128                       # output padded to one full vreg lane width
G4 = 4 * HP                    # gate slab width


# ---- Pallas kernel ---------------------------------------------------------
def _lstm_cell(gates, c):
    """One LSTM cell update from pre-activation gates.

    gates: (B, 4*HP) laid out as [i | f | o | g], each gate 128 lanes wide.
    The i/f/o columns (and biases) were pre-scaled by 0.5 at pack time, so
    sigmoid(x) = 0.5 * (1 + tanh(x/2)) is recovered from ONE tanh over the
    whole slab; g comes out of the same tanh directly.
    Padded lanes (>= hidden_size) carry exactly 0 pre-activation, which keeps
    the padded lanes of h/c at exactly 0 through the recurrence
    (i=f=o=0.5, g=0 -> c_new=0, h_new=0).
    """
    t = jnp.tanh(gates)                               # one EUP op for all gates
    i = 0.5 * (1.0 + t[:, 0 * HP:1 * HP])
    f = 0.5 * (1.0 + t[:, 1 * HP:2 * HP])
    o = 0.5 * (1.0 + t[:, 2 * HP:3 * HP])
    g = t[:, 3 * HP:4 * HP]
    c_new = f * c + i * g
    h_new = o * jnp.tanh(c_new)
    return h_new, c_new


def lstm_kernel(x_ref, state_ref, w_ref, b_ref, out_ref, state_new_ref, xp_ref):
    # w_ref rows: [0:HP)      -> w_ih0 (input dim padded to HP)
    #             [HP:2HP)    -> w_hh0
    #             [2HP:4HP)   -> merged [w_ih1 ; w_hh1]
    #             [4HP:5HP)   -> w_ho   (valid lanes [0:OP))
    # b_ref rows: 0 -> layer-0 gate bias, 1 -> layer-1 gate bias, 2 -> h2o bias
    B = state_ref.shape[1]
    T = x_ref.shape[0] // B

    # Hoisted layer-0 input projection for ALL timesteps (no recurrence):
    # one (T*B, HP) @ (HP, 4*HP) matmul, bias folded in once.  Stored to a
    # VMEM scratch so it is not live across the unrolled loop.
    xp_ref[...] = (jnp.dot(x_ref[...], w_ref[0:HP, :],
                           preferred_element_type=jnp.float32)
                   + b_ref[0:1, :])

    h0 = state_ref[0]                                 # (B, HP)
    h1 = state_ref[1]
    c0 = state_ref[2]
    c1 = state_ref[3]

    # T is small and static -> fully unroll so independent work across steps
    # (layer-1 of step t vs layer-0 of step t+1) can be overlapped by the
    # scheduler and scalar loop overhead disappears.  All weights are read
    # from their refs at the call site (no long-lived 64-vreg values).
    for t in range(T):
        # layer 0: only the recurrent matmul is on the critical path.
        gates0 = xp_ref[t * B:(t + 1) * B, :] + jnp.dot(
            h0, w_ref[HP:2 * HP, :], preferred_element_type=jnp.float32)
        h0, c0 = _lstm_cell(gates0, c0)
        # layer 1: single merged (input + recurrent) matmul, K = 2*HP = 256.
        hcat = jnp.concatenate([h0, h1], axis=-1)     # (B, 2*HP)
        gates1 = (jnp.dot(hcat, w_ref[2 * HP:4 * HP, :],
                          preferred_element_type=jnp.float32)
                  + b_ref[1:2, :])
        h1, c1 = _lstm_cell(gates1, c1)

    # h2o on the last timestep of the top layer (lane-dense padded output).
    out_full = jnp.dot(h1, w_ref[4 * HP:5 * HP, :],
                       preferred_element_type=jnp.float32)
    out_ref[...] = out_full[:, 0:OP] + b_ref[2:3, 0:OP]

    state_new_ref[0] = h0
    state_new_ref[1] = h1
    state_new_ref[2] = c0
    state_new_ref[3] = c1


# ---- wrapper ---------------------------------------------------------------
@jax.jit
def lstm_forward(x, hidden, cell, params):
    w_all, b_all = params
    T, B, I = x.shape
    H = hidden_size

    # layout plumbing (wrapper-side, not on the kernel's critical path)
    x2d = jnp.pad(x.reshape(T * B, I), ((0, 0), (0, HP - I)))      # (T*B, HP)
    h_p = jnp.pad(hidden, ((0, 0), (0, 0), (0, HP - H)))
    c_p = jnp.pad(cell, ((0, 0), (0, 0), (0, HP - H)))
    state = jnp.concatenate([h_p, c_p], axis=0)                    # (4, B, HP)

    vmem = pl.BlockSpec(memory_space=pltpu.MemorySpace.VMEM)
    out_shapes = (
        jax.ShapeDtypeStruct((B, OP), jnp.float32),
        jax.ShapeDtypeStruct((2 * num_layers, B, HP), jnp.float32),
    )
    out_p, state_new = pl.pallas_call(
        lstm_kernel,
        out_shape=out_shapes,
        in_specs=[vmem] * 4,
        out_specs=(vmem, vmem),
        scratch_shapes=[pltpu.VMEM((T * B, G4), jnp.float32)],
    )(x2d, state, w_all, b_all)

    return (out_p[:, :output_size],
            state_new[:num_layers, :, :H],
            state_new[num_layers:, :, :H])


# ---- deterministic parameter construction (PyTorch-style uniform init) -----
def init_params(key):
    H, I, O = hidden_size, input_size, output_size
    stdv = 1.0 / math.sqrt(H)
    ks = jax.random.split(key, 10)

    def u(k, shape, s):
        return jax.random.uniform(k, shape, jnp.float32, minval=-s, maxval=s)

    # PyTorch-native layouts (gate order along rows: i, f, g, o)
    w_ih_l0 = u(ks[0], (4 * H, I), stdv)
    w_hh_l0 = u(ks[1], (4 * H, H), stdv)
    b_ih_l0 = u(ks[2], (4 * H,), stdv)
    b_hh_l0 = u(ks[3], (4 * H,), stdv)
    w_ih_l1 = u(ks[4], (4 * H, H), stdv)
    w_hh_l1 = u(ks[5], (4 * H, H), stdv)
    b_ih_l1 = u(ks[6], (4 * H,), stdv)
    b_hh_l1 = u(ks[7], (4 * H,), stdv)
    lin_std = 1.0 / math.sqrt(H)
    w_ho = u(ks[8], (O, H), lin_std)
    b_ho = u(ks[9], (O,), lin_std)

    torch_params = (w_ih_l0, w_hh_l0, b_ih_l0, b_hh_l0,
                    w_ih_l1, w_hh_l1, b_ih_l1, b_hh_l1, w_ho, b_ho)

    # Kernel layout: gates permuted to (i, f, o, g); each gate padded to HP
    # output lanes; pre-transposed and concatenated along the lane axis so the
    # kernel computes one fused (in_dim, 4*HP) matmul per weight block.
    # The i/f/o blocks (and biases) are scaled by 0.5 so the kernel can use a
    # single tanh for all gates: sigmoid(x) = 0.5*(1 + tanh(x/2)).
    perm = (0, 1, 3, 2)                 # torch (i, f, g, o) -> kernel (i, f, o, g)
    scales = (0.5, 0.5, 0.5, 1.0)       # i, f, o halved; g untouched

    def pack_w(w, in_dim):
        w4 = w.reshape(4, H, in_dim)                     # torch gate order
        blocks = []
        for g in range(4):
            wt = w4[perm[g]].T * scales[g]               # (in_dim, H)
            wt = jnp.pad(wt, ((0, HP - in_dim), (0, HP - H)))
            blocks.append(wt)
        return jnp.concatenate(blocks, axis=1)           # (HP, 4*HP)

    def pack_b(b_ih, b_hh):
        b4 = (b_ih + b_hh).reshape(4, H)                 # torch gate order
        rows = [b4[perm[g]] * scales[g] for g in range(4)]
        b4p = jnp.pad(jnp.stack(rows), ((0, 0), (0, HP - H)))   # (4, HP)
        return b4p.reshape(1, 4 * HP)

    w_ih0_k = pack_w(w_ih_l0, I)                         # (HP, 4*HP)
    w_hh0_k = pack_w(w_hh_l0, H)                         # (HP, 4*HP)
    w_ih1_k = pack_w(w_ih_l1, H)                         # (HP, 4*HP)
    w_hh1_k = pack_w(w_hh_l1, H)                         # (HP, 4*HP)
    w_ho_k = jnp.pad(w_ho.T, ((0, HP - H), (0, G4 - O))) # (HP, 4*HP), lanes [0,O)

    # Single stacked weight operand (5*HP, 4*HP) and single bias operand (3, 4*HP).
    w_all = jnp.concatenate([w_ih0_k, w_hh0_k, w_ih1_k, w_hh1_k, w_ho_k], axis=0)
    b0_k = pack_b(b_ih_l0, b_hh_l0)                      # (1, 4*HP)
    b1_k = pack_b(b_ih_l1, b_hh_l1)                      # (1, 4*HP)
    b_ho_k = jnp.pad(b_ho.reshape(1, O), ((0, 0), (0, G4 - O)))   # (1, 4*HP)
    b_all = jnp.concatenate([b0_k, b1_k, b_ho_k], axis=0)         # (3, 4*HP)

    kernel_params = (w_all, b_all)
    return kernel_params, torch_params


# ---- pure-JAX reference (mirrors torch.nn.LSTM semantics) -------------------
def reference_forward(x, hidden, cell, torch_params):
    (w_ih_l0, w_hh_l0, b_ih_l0, b_hh_l0,
     w_ih_l1, w_hh_l1, b_ih_l1, b_hh_l1, w_ho, b_ho) = torch_params
    H = hidden_size
    layers = [(w_ih_l0, w_hh_l0, b_ih_l0, b_hh_l0),
              (w_ih_l1, w_hh_l1, b_ih_l1, b_hh_l1)]
    h = [hidden[l] for l in range(num_layers)]
    c = [cell[l] for l in range(num_layers)]
    inp = x
    for l, (w_ih, w_hh, b_ih, b_hh) in enumerate(layers):
        hl, cl = h[l], c[l]
        outs = []
        for t in range(inp.shape[0]):
            gates = inp[t] @ w_ih.T + b_ih + hl @ w_hh.T + b_hh
            i = jax.nn.sigmoid(gates[:, 0:H])
            f = jax.nn.sigmoid(gates[:, H:2 * H])
            g = jnp.tanh(gates[:, 2 * H:3 * H])
            o = jax.nn.sigmoid(gates[:, 3 * H:4 * H])
            cl = f * cl + i * g
            hl = o * jnp.tanh(cl)
            outs.append(hl)
        inp = jnp.stack(outs)
        h[l], c[l] = hl, cl
    out = inp[-1] @ w_ho.T + b_ho
    return out.reshape(batch_size, output_size), jnp.stack(h), jnp.stack(c)


if __name__ == "__main__":
    key = jax.random.PRNGKey(0)
    k_param, k_x = jax.random.split(key)
    kernel_params, torch_params = init_params(k_param)

    x = jax.random.normal(k_x, (seq_len, batch_size, input_size), jnp.float32)
    hidden = jnp.zeros((num_layers, batch_size, hidden_size), jnp.float32)
    cell = jnp.zeros((num_layers, batch_size, hidden_size), jnp.float32)

    out, hn, cn = lstm_forward(x, hidden, cell, kernel_params)
    jax.block_until_ready((out, hn, cn))

    # correctness check against a pure-JAX reference of torch.nn.LSTM semantics
    ref_out, ref_hn, ref_cn = reference_forward(x, hidden, cell, torch_params)
    assert out.shape == (batch_size, output_size)
    assert hn.shape == (num_layers, batch_size, hidden_size)
    assert cn.shape == (num_layers, batch_size, hidden_size)
    assert jnp.allclose(out, ref_out, atol=1e-3, rtol=1e-3)
    assert jnp.allclose(hn, ref_hn, atol=1e-3, rtol=1e-3)
    assert jnp.allclose(cn, ref_cn, atol=1e-3, rtol=1e-3)

    print("KERNEL_OK")
</pallas_src>

<mosaic_0001>
module attributes {stable_mosaic.version = 11 : i64} {
  func.func @lstm_kernel(%arg0: memref<8x128xf32, #tpu.memory_space<vmem>>, %arg1: memref<4x1x128xf32, #tpu.memory_space<vmem>>, %arg2: memref<640x512xf32, #tpu.memory_space<vmem>>, %arg3: memref<3x512xf32, #tpu.memory_space<vmem>>, %arg4: memref<1x128xf32, #tpu.memory_space<vmem>>, %arg5: memref<4x1x128xf32, #tpu.memory_space<vmem>>, %arg6: memref<8x512xf32, #tpu.memory_space<vmem>>) attributes {dimension_semantics = [], scalar_prefetch = 0 : i64, scratch_operands = 1 : i64, tpu.core_type = #tpu.core_type<tc>} {
    %c0 = arith.constant 0 : index
    %c0_0 = arith.constant 0 : index
    %0 = vector.load %arg0[%c0, %c0_0] : memref<8x128xf32, #tpu.memory_space<vmem>>, vector<8x128xf32>
    %c0_1 = arith.constant 0 : index
    %c0_2 = arith.constant 0 : index
    %1 = vector.load %arg2[%c0_1, %c0_2] : memref<640x512xf32, #tpu.memory_space<vmem>>, vector<128x512xf32>
    %cst = arith.constant dense<0.000000e+00> : vector<8x512xf32>
    %2 = tpu.matmul %0, %1, %cst {dimension_numbers = #tpu.dot_dimension_numbers<[1], [0], [0], [1], [0, 0, 1, 1], [], []>} : vector<8x128xf32>, vector<128x512xf32>, vector<8x512xf32> -> vector<8x512xf32>
    %c0_3 = arith.constant 0 : index
    %c0_4 = arith.constant 0 : index
    %3 = vector.load %arg3[%c0_3, %c0_4] : memref<3x512xf32, #tpu.memory_space<vmem>>, vector<1x512xf32>
    %4 = vector.broadcast %3 : vector<1x512xf32> to vector<8x512xf32>
    %5 = arith.addf %2, %4 : vector<8x512xf32>
    %c0_5 = arith.constant 0 : index
    %c0_6 = arith.constant 0 : index
    %6 = vector.load %arg6[%c0_5, %c0_6] : memref<8x512xf32, #tpu.memory_space<vmem>>, vector<8x512xf32>
    tpu.vector_store %arg6[%c0_5, %c0_6], %5 {strides = array<i32>} : memref<8x512xf32, #tpu.memory_space<vmem>>, vector<8x512xf32>,
    %c0_7 = arith.constant 0 : index
    %c0_8 = arith.constant 0 : index
    %c0_9 = arith.constant 0 : index
    %7 = vector.load %arg1[%c0_7, %c0_8, %c0_9] : memref<4x1x128xf32, #tpu.memory_space<vmem>>, vector<1x1x128xf32>
    %8 = vector.shape_cast %7 : vector<1x1x128xf32> to vector<1x128xf32>
    %c1 = arith.constant 1 : index
    %c0_10 = arith.constant 0 : index
    %c0_11 = arith.constant 0 : index
    %9 = vector.load %arg1[%c1, %c0_10, %c0_11] : memref<4x1x128xf32, #tpu.memory_space<vmem>>, vector<1x1x128xf32>
    %10 = vector.shape_cast %9 : vector<1x1x128xf32> to vector<1x128xf32>
    %c2 = arith.constant 2 : index
    %c0_12 = arith.constant 0 : index
    %c0_13 = arith.constant 0 : index
    %11 = vector.load %arg1[%c2, %c0_12, %c0_13] : memref<4x1x128xf32, #tpu.memory_space<vmem>>, vector<1x1x128xf32>
    %12 = vector.shape_cast %11 : vector<1x1x128xf32> to vector<1x128xf32>
    %c3 = arith.constant 3 : index
    %c0_14 = arith.constant 0 : index
    %c0_15 = arith.constant 0 : index
    %13 = vector.load %arg1[%c3, %c0_14, %c0_15] : memref<4x1x128xf32, #tpu.memory_space<vmem>>, vector<1x1x128xf32>
    %14 = vector.shape_cast %13 : vector<1x1x128xf32> to vector<1x128xf32>
    %c0_16 = arith.constant 0 : index
    %c0_17 = arith.constant 0 : index
    %15 = vector.load %arg6[%c0_16, %c0_17] : memref<8x512xf32, #tpu.memory_space<vmem>>, vector<1x512xf32>
    %c128 = arith.constant 128 : index
    %c0_18 = arith.constant 0 : index
    %16 = vector.load %arg2[%c128, %c0_18] : memref<640x512xf32, #tpu.memory_space<vmem>>, vector<128x512xf32>
    %cst_19 = arith.constant dense<0.000000e+00> : vector<1x512xf32>
    %17 = tpu.matmul %8, %16, %cst_19 {dimension_numbers = #tpu.dot_dimension_numbers<[1], [0], [0], [1], [0, 0, 1, 1], [], []>} : vector<1x128xf32>, vector<128x512xf32>, vector<1x512xf32> -> vector<1x512xf32>
    %18 = arith.addf %15, %17 : vector<1x512xf32>
    %19 = math.tanh %18 : vector<1x512xf32>
    %20 = vector.extract_strided_slice %19 {offsets = [0, 0], sizes = [1, 128], strides = [1, 1]} : vector<1x512xf32> to vector<1x128xf32>
    %cst_20 = arith.constant 1.000000e+00 : f32
    %21 = vector.broadcast %cst_20 : f32 to vector<1x128xf32>
    %22 = arith.addf %21, %20 : vector<1x128xf32>
    %cst_21 = arith.constant 5.000000e-01 : f32
    %23 = vector.broadcast %cst_21 : f32 to vector<1x128xf32>
    %24 = arith.mulf %23, %22 : vector<1x128xf32>
    %25 = vector.extract_strided_slice %19 {offsets = [0, 128], sizes = [1, 128], strides = [1, 1]} : vector<1x512xf32> to vector<1x128xf32>
    %cst_22 = arith.constant 1.000000e+00 : f32
    %26 = vector.broadcast %cst_22 : f32 to vector<1x128xf32>
    %27 = arith.addf %26, %25 : vector<1x128xf32>
    %cst_23 = arith.constant 5.000000e-01 : f32
    %28 = vector.broadcast %cst_23 : f32 to vector<1x128xf32>
    %29 = arith.mulf %28, %27 : vector<1x128xf32>
    %30 = vector.extract_strided_slice %19 {offsets = [0, 256], sizes = [1, 128], strides = [1, 1]} : vector<1x512xf32> to vector<1x128xf32>
    %cst_24 = arith.constant 1.000000e+00 : f32
    %31 = vector.broadcast %cst_24 : f32 to vector<1x128xf32>
    %32 = arith.addf %31, %30 : vector<1x128xf32>
    %cst_25 = arith.constant 5.000000e-01 : f32
    %33 = vector.broadcast %cst_25 : f32 to vector<1x128xf32>
    %34 = arith.mulf %33, %32 : vector<1x128xf32>
    %35 = vector.extract_strided_slice %19 {offsets = [0, 384], sizes = [1, 128], strides = [1, 1]} : vector<1x512xf32> to vector<1x128xf32>
    %36 = arith.mulf %29, %12 : vector<1x128xf32>
    %37 = arith.mulf %24, %35 : vector<1x128xf32>
    %38 = arith.addf %36, %37 : vector<1x128xf32>
    %39 = math.tanh %38 : vector<1x128xf32>
    %40 = arith.mulf %34, %39 : vector<1x128xf32>
    %41 = tpu.concatenate %40, %10 in 1 : vector<1x128xf32>, vector<1x128xf32> -> vector<1x256xf32>
    %c256 = arith.constant 256 : index
    %c0_26 = arith.constant 0 : index
    %42 = vector.load %arg2[%c256, %c0_26] : memref<640x512xf32, #tpu.memory_space<vmem>>, vector<256x512xf32>
    %cst_27 = arith.constant dense<0.000000e+00> : vector<1x512xf32>
    %43 = tpu.matmul %41, %42, %cst_27 {dimension_numbers = #tpu.dot_dimension_numbers<[1], [0], [0], [1], [0, 0, 1, 1], [], []>} : vector<1x256xf32>, vector<256x512xf32>, vector<1x512xf32> -> vector<1x512xf32>
    %c1_28 = arith.constant 1 : index
    %c0_29 = arith.constant 0 : index
    %44 = vector.load %arg3[%c1_28, %c0_29] : memref<3x512xf32, #tpu.memory_space<vmem>>, vector<1x512xf32>
    %45 = arith.addf %43, %44 : vector<1x512xf32>
    %46 = math.tanh %45 : vector<1x512xf32>
    %47 = vector.extract_strided_slice %46 {offsets = [0, 0], sizes = [1, 128], strides = [1, 1]} : vector<1x512xf32> to vector<1x128xf32>
    %cst_30 = arith.constant 1.000000e+00 : f32
    %48 = vector.broadcast %cst_30 : f32 to vector<1x128xf32>
    %49 = arith.addf %48, %47 : vector<1x128xf32>
    %cst_31 = arith.constant 5.000000e-01 : f32
    %50 = vector.broadcast %cst_31 : f32 to vector<1x128xf32>
    %51 = arith.mulf %50, %49 : vector<1x128xf32>
    %52 = vector.extract_strided_slice %46 {offsets = [0, 128], sizes = [1, 128], strides = [1, 1]} : vector<1x512xf32> to vector<1x128xf32>
    %cst_32 = arith.constant 1.000000e+00 : f32
    %53 = vector.broadcast %cst_32 : f32 to vector<1x128xf32>
    %54 = arith.addf %53, %52 : vector<1x128xf32>
    %cst_33 = arith.constant 5.000000e-01 : f32
    %55 = vector.broadcast %cst_33 : f32 to vector<1x128xf32>
    %56 = arith.mulf %55, %54 : vector<1x128xf32>
    %57 = vector.extract_strided_slice %46 {offsets = [0, 256], sizes = [1, 128], strides = [1, 1]} : vector<1x512xf32> to vector<1x128xf32>
    %cst_34 = arith.constant 1.000000e+00 : f32
    %58 = vector.broadcast %cst_34 : f32 to vector<1x128xf32>
    %59 = arith.addf %58, %57 : vector<1x128xf32>
    %cst_35 = arith.constant 5.000000e-01 : f32
    %60 = vector.broadcast %cst_35 : f32 to vector<1x128xf32>
    %61 = arith.mulf %60, %59 : vector<1x128xf32>
    %62 = vector.extract_strided_slice %46 {offsets = [0, 384], sizes = [1, 128], strides = [1, 1]} : vector<1x512xf32> to vector<1x128xf32>
    %63 = arith.mulf %56, %14 : vector<1x128xf32>
    %64 = arith.mulf %51, %62 : vector<1x128xf32>
    %65 = arith.addf %63, %64 : vector<1x128xf32>
    %66 = math.tanh %65 : vector<1x128xf32>
    %67 = arith.mulf %61, %66 : vector<1x128xf32>
    %c1_36 = arith.constant 1 : index
    %c0_37 = arith.constant 0 : index
    %68 = vector.load %arg6[%c1_36, %c0_37] : memref<8x512xf32, #tpu.memory_space<vmem>>, vector<1x512xf32>
    %c128_38 = arith.constant 128 : index
    %c0_39 = arith.constant 0 : index
    %69 = vector.load %arg2[%c128_38, %c0_39] : memref<640x512xf32, #tpu.memory_space<vmem>>, vector<128x512xf32>
    %cst_40 = arith.constant dense<0.000000e+00> : vector<1x512xf32>
    %70 = tpu.matmul %40, %69, %cst_40 {dimension_numbers = #tpu.dot_dimension_numbers<[1], [0], [0], [1], [0, 0, 1, 1], [], []>} : vector<1x128xf32>, vector<128x512xf32>, vector<1x512xf32> -> vector<1x512xf32>
    %71 = arith.addf %68, %70 : vector<1x512xf32>
    %72 = math.tanh %71 : vector<1x512xf32>
    %73 = vector.extract_strided_slice %72 {offsets = [0, 0], sizes = [1, 128], strides = [1, 1]} : vector<1x512xf32> to vector<1x128xf32>
    %cst_41 = arith.constant 1.000000e+00 : f32
    %74 = vector.broadcast %cst_41 : f32 to vector<1x128xf32>
    %75 = arith.addf %74, %73 : vector<1x128xf32>
    %cst_42 = arith.constant 5.000000e-01 : f32
    %76 = vector.broadcast %cst_42 : f32 to vector<1x128xf32>
    %77 = arith.mulf %76, %75 : vector<1x128xf32>
    %78 = vector.extract_strided_slice %72 {offsets = [0, 128], sizes = [1, 128], strides = [1, 1]} : vector<1x512xf32> to vector<1x128xf32>
    %cst_43 = arith.constant 1.000000e+00 : f32
    %79 = vector.broadcast %cst_43 : f32 to vector<1x128xf32>
    %80 = arith.addf %79, %78 : vector<1x128xf32>
    %cst_44 = arith.constant 5.000000e-01 : f32
    %81 = vector.broadcast %cst_44 : f32 to vector<1x128xf32>
    %82 = arith.mulf %81, %80 : vector<1x128xf32>
    %83 = vector.extract_strided_slice %72 {offsets = [0, 256], sizes = [1, 128], strides = [1, 1]} : vector<1x512xf32> to vector<1x128xf32>
    %cst_45 = arith.constant 1.000000e+00 : f32
    %84 = vector.broadcast %cst_45 : f32 to vector<1x128xf32>
    %85 = arith.addf %84, %83 : vector<1x128xf32>
    %cst_46 = arith.constant 5.000000e-01 : f32
    %86 = vector.broadcast %cst_46 : f32 to vector<1x128xf32>
    %87 = arith.mulf %86, %85 : vector<1x128xf32>
    %88 = vector.extract_strided_slice %72 {offsets = [0, 384], sizes = [1, 128], strides = [1, 1]} : vector<1x512xf32> to vector<1x128xf32>
    %89 = arith.mulf %82, %38 : vector<1x128xf32>
    %90 = arith.mulf %77, %88 : vector<1x128xf32>
    %91 = arith.addf %89, %90 : vector<1x128xf32>
    %92 = math.tanh %91 : vector<1x128xf32>
    %93 = arith.mulf %87, %92 : vector<1x128xf32>
    %94 = tpu.concatenate %93, %67 in 1 : vector<1x128xf32>, vector<1x128xf32> -> vector<1x256xf32>
    %c256_47 = arith.constant 256 : index
    %c0_48 = arith.constant 0 : index
    %95 = vector.load %arg2[%c256_47, %c0_48] : memref<640x512xf32, #tpu.memory_space<vmem>>, vector<256x512xf32>
    %cst_49 = arith.constant dense<0.000000e+00> : vector<1x512xf32>
    %96 = tpu.matmul %94, %95, %cst_49 {dimension_numbers = #tpu.dot_dimension_numbers<[1], [0], [0], [1], [0, 0, 1, 1], [], []>} : vector<1x256xf32>, vector<256x512xf32>, vector<1x512xf32> -> vector<1x512xf32>
    %c1_50 = arith.constant 1 : index
    %c0_51 = arith.constant 0 : index
    %97 = vector.load %arg3[%c1_50, %c0_51] : memref<3x512xf32, #tpu.memory_space<vmem>>, vector<1x512xf32>
    %98 = arith.addf %96, %97 : vector<1x512xf32>
    %99 = math.tanh %98 : vector<1x512xf32>
    %100 = vector.extract_strided_slice %99 {offsets = [0, 0], sizes = [1, 128], strides = [1, 1]} : vector<1x512xf32> to vector<1x128xf32>
    %cst_52 = arith.constant 1.000000e+00 : f32
    %101 = vector.broadcast %cst_52 : f32 to vector<1x128xf32>
    %102 = arith.addf %101, %100 : vector<1x128xf32>
    %cst_53 = arith.constant 5.000000e-01 : f32
    %103 = vector.broadcast %cst_53 : f32 to vector<1x128xf32>
    %104 = arith.mulf %103, %102 : vector<1x128xf32>
    %105 = vector.extract_strided_slice %99 {offsets = [0, 128], sizes = [1, 128], strides = [1, 1]} : vector<1x512xf32> to vector<1x128xf32>
    %cst_54 = arith.constant 1.000000e+00 : f32
    %106 = vector.broadcast %cst_54 : f32 to vector<1x128xf32>
    %107 = arith.addf %106, %105 : vector<1x128xf32>
    %cst_55 = arith.constant 5.000000e-01 : f32
    %108 = vector.broadcast %cst_55 : f32 to vector<1x128xf32>
    %109 = arith.mulf %108, %107 : vector<1x128xf32>
    %110 = vector.extract_strided_slice %99 {offsets = [0, 256], sizes = [1, 128], strides = [1, 1]} : vector<1x512xf32> to vector<1x128xf32>
    %cst_56 = arith.constant 1.000000e+00 : f32
    %111 = vector.broadcast %cst_56 : f32 to vector<1x128xf32>
    %112 = arith.addf %111, %110 : vector<1x128xf32>
    %cst_57 = arith.constant 5.000000e-01 : f32
    %113 = vector.broadcast %cst_57 : f32 to vector<1x128xf32>
    %114 = arith.mulf %113, %112 : vector<1x128xf32>
    %115 = vector.extract_strided_slice %99 {offsets = [0, 384], sizes = [1, 128], strides = [1, 1]} : vector<1x512xf32> to vector<1x128xf32>
    %116 = arith.mulf %109, %65 : vector<1x128xf32>
    %117 = arith.mulf %104, %115 : vector<1x128xf32>
    %118 = arith.addf %116, %117 : vector<1x128xf32>
    %119 = math.tanh %118 : vector<1x128xf32>
    %120 = arith.mulf %114, %119 : vector<1x128xf32>
    %c2_58 = arith.constant 2 : index
    %c0_59 = arith.constant 0 : index
    %121 = vector.load %arg6[%c2_58, %c0_59] : memref<8x512xf32, #tpu.memory_space<vmem>>, vector<1x512xf32>
    %c128_60 = arith.constant 128 : index
    %c0_61 = arith.constant 0 : index
    %122 = vector.load %arg2[%c128_60, %c0_61] : memref<640x512xf32, #tpu.memory_space<vmem>>, vector<128x512xf32>
    %cst_62 = arith.constant dense<0.000000e+00> : vector<1x512xf32>
    %123 = tpu.matmul %93, %122, %cst_62 {dimension_numbers = #tpu.dot_dimension_numbers<[1], [0], [0], [1], [0, 0, 1, 1], [], []>} : vector<1x128xf32>, vector<128x512xf32>, vector<1x512xf32> -> vector<1x512xf32>
    %124 = arith.addf %121, %123 : vector<1x512xf32>
    %125 = math.tanh %124 : vector<1x512xf32>
    %126 = vector.extract_strided_slice %125 {offsets = [0, 0], sizes = [1, 128], strides = [1, 1]} : vector<1x512xf32> to vector<1x128xf32>
    %cst_63 = arith.constant 1.000000e+00 : f32
    %127 = vector.broadcast %cst_63 : f32 to vector<1x128xf32>
    %128 = arith.addf %127, %126 : vector<1x128xf32>
    %cst_64 = arith.constant 5.000000e-01 : f32
    %129 = vector.broadcast %cst_64 : f32 to vector<1x128xf32>
    %130 = arith.mulf %129, %128 : vector<1x128xf32>
    %131 = vector.extract_strided_slice %125 {offsets = [0, 128], sizes = [1, 128], strides = [1, 1]} : vector<1x512xf32> to vector<1x128xf32>
    %cst_65 = arith.constant 1.000000e+00 : f32
    %132 = vector.broadcast %cst_65 : f32 to vector<1x128xf32>
    %133 = arith.addf %132, %131 : vector<1x128xf32>
    %cst_66 = arith.constant 5.000000e-01 : f32
    %134 = vector.broadcast %cst_66 : f32 to vector<1x128xf32>
    %135 = arith.mulf %134, %133 : vector<1x128xf32>
    %136 = vector.extract_strided_slice %125 {offsets = [0, 256], sizes = [1, 128], strides = [1, 1]} : vector<1x512xf32> to vector<1x128xf32>
    %cst_67 = arith.constant 1.000000e+00 : f32
    %137 = vector.broadcast %cst_67 : f32 to vector<1x128xf32>
    %138 = arith.addf %137, %136 : vector<1x128xf32>
    %cst_68 = arith.constant 5.000000e-01 : f32
    %139 = vector.broadcast %cst_68 : f32 to vector<1x128xf32>
    %140 = arith.mulf %139, %138 : vector<1x128xf32>
    %141 = vector.extract_strided_slice %125 {offsets = [0, 384], sizes = [1, 128], strides = [1, 1]} : vector<1x512xf32> to vector<1x128xf32>
    %142 = arith.mulf %135, %91 : vector<1x128xf32>
    %143 = arith.mulf %130, %141 : vector<1x128xf32>
    %144 = arith.addf %142, %143 : vector<1x128xf32>
    %145 = math.tanh %144 : vector<1x128xf32>
    %146 = arith.mulf %140, %145 : vector<1x128xf32>
    %147 = tpu.concatenate %146, %120 in 1 : vector<1x128xf32>, vector<1x128xf32> -> vector<1x256xf32>
    %c256_69 = arith.constant 256 : index
    %c0_70 = arith.constant 0 : index
    %148 = vector.load %arg2[%c256_69, %c0_70] : memref<640x512xf32, #tpu.memory_space<vmem>>, vector<256x512xf32>
    %cst_71 = arith.constant dense<0.000000e+00> : vector<1x512xf32>
    %149 = tpu.matmul %147, %148, %cst_71 {dimension_numbers = #tpu.dot_dimension_numbers<[1], [0], [0], [1], [0, 0, 1, 1], [], []>} : vector<1x256xf32>, vector<256x512xf32>, vector<1x512xf32> -> vector<1x512xf32>
    %c1_72 = arith.constant 1 : index
    %c0_73 = arith.constant 0 : index
    %150 = vector.load %arg3[%c1_72, %c0_73] : memref<3x512xf32, #tpu.memory_space<vmem>>, vector<1x512xf32>
    %151 = arith.addf %149, %150 : vector<1x512xf32>
    %152 = math.tanh %151 : vector<1x512xf32>
    %153 = vector.extract_strided_slice %152 {offsets = [0, 0], sizes = [1, 128], strides = [1, 1]} : vector<1x512xf32> to vector<1x128xf32>
    %cst_74 = arith.constant 1.000000e+00 : f32
    %154 = vector.broadcast %cst_74 : f32 to vector<1x128xf32>
    %155 = arith.addf %154, %153 : vector<1x128xf32>
    %cst_75 = arith.constant 5.000000e-01 : f32
    %156 = vector.broadcast %cst_75 : f32 to vector<1x128xf32>
    %157 = arith.mulf %156, %155 : vector<1x128xf32>
    %158 = vector.extract_strided_slice %152 {offsets = [0, 128], sizes = [1, 128], strides = [1, 1]} : vector<1x512xf32> to vector<1x128xf32>
    %cst_76 = arith.constant 1.000000e+00 : f32
    %159 = vector.broadcast %cst_76 : f32 to vector<1x128xf32>
    %160 = arith.addf %159, %158 : vector<1x128xf32>
    %cst_77 = arith.constant 5.000000e-01 : f32
    %161 = vector.broadcast %cst_77 : f32 to vector<1x128xf32>
    %162 = arith.mulf %161, %160 : vector<1x128xf32>
    %163 = vector.extract_strided_slice %152 {offsets = [0, 256], sizes = [1, 128], strides = [1, 1]} : vector<1x512xf32> to vector<1x128xf32>
    %cst_78 = arith.constant 1.000000e+00 : f32
    %164 = vector.broadcast %cst_78 : f32 to vector<1x128xf32>
    %165 = arith.addf %164, %163 : vector<1x128xf32>
    %cst_79 = arith.constant 5.000000e-01 : f32
    %166 = vector.broadcast %cst_79 : f32 to vector<1x128xf32>
    %167 = arith.mulf %166, %165 : vector<1x128xf32>
    %168 = vector.extract_strided_slice %152 {offsets = [0, 384], sizes = [1, 128], strides = [1, 1]} : vector<1x512xf32> to vector<1x128xf32>
    %169 = arith.mulf %162, %118 : vector<1x128xf32>
    %170 = arith.mulf %157, %168 : vector<1x128xf32>
    %171 = arith.addf %169, %170 : vector<1x128xf32>
    %172 = math.tanh %171 : vector<1x128xf32>
    %173 = arith.mulf %167, %172 : vector<1x128xf32>
    %c3_80 = arith.constant 3 : index
    %c0_81 = arith.constant 0 : index
    %174 = vector.load %arg6[%c3_80, %c0_81] : memref<8x512xf32, #tpu.memory_space<vmem>>, vector<1x512xf32>
    %c128_82 = arith.constant 128 : index
    %c0_83 = arith.constant 0 : index
    %175 = vector.load %arg2[%c128_82, %c0_83] : memref<640x512xf32, #tpu.memory_space<vmem>>, vector<128x512xf32>
    %cst_84 = arith.constant dense<0.000000e+00> : vector<1x512xf32>
    %176 = tpu.matmul %146, %175, %cst_84 {dimension_numbers = #tpu.dot_dimension_numbers<[1], [0], [0], [1], [0, 0, 1, 1], [], []>} : vector<1x128xf32>, vector<128x512xf32>, vector<1x512xf32> -> vector<1x512xf32>
    %177 = arith.addf %174, %176 : vector<1x512xf32>
    %178 = math.tanh %177 : vector<1x512xf32>
    %179 = vector.extract_strided_slice %178 {offsets = [0, 0], sizes = [1, 128], strides = [1, 1]} : vector<1x512xf32> to vector<1x128xf32>
    %cst_85 = arith.constant 1.000000e+00 : f32
    %180 = vector.broadcast %cst_85 : f32 to vector<1x128xf32>
    %181 = arith.addf %180, %179 : vector<1x128xf32>
    %cst_86 = arith.constant 5.000000e-01 : f32
    %182 = vector.broadcast %cst_86 : f32 to vector<1x128xf32>
    %183 = arith.mulf %182, %181 : vector<1x128xf32>
    %184 = vector.extract_strided_slice %178 {offsets = [0, 128], sizes = [1, 128], strides = [1, 1]} : vector<1x512xf32> to vector<1x128xf32>
    %cst_87 = arith.constant 1.000000e+00 : f32
    %185 = vector.broadcast %cst_87 : f32 to vector<1x128xf32>
    %186 = arith.addf %185, %184 : vector<1x128xf32>
    %cst_88 = arith.constant 5.000000e-01 : f32
    %187 = vector.broadcast %cst_88 : f32 to vector<1x128xf32>
    %188 = arith.mulf %187, %186 : vector<1x128xf32>
    %189 = vector.extract_strided_slice %178 {offsets = [0, 256], sizes = [1, 128], strides = [1, 1]} : vector<1x512xf32> to vector<1x128xf32>
    %cst_89 = arith.constant 1.000000e+00 : f32
    %190 = vector.broadcast %cst_89 : f32 to vector<1x128xf32>
    %191 = arith.addf %190, %189 : vector<1x128xf32>
    %cst_90 = arith.constant 5.000000e-01 : f32
    %192 = vector.broadcast %cst_90 : f32 to vector<1x128xf32>
    %193 = arith.mulf %192, %191 : vector<1x128xf32>
    %194 = vector.extract_strided_slice %178 {offsets = [0, 384], sizes = [1, 128], strides = [1, 1]} : vector<1x512xf32> to vector<1x128xf32>
    %195 = arith.mulf %188, %144 : vector<1x128xf32>
    %196 = arith.mulf %183, %194 : vector<1x128xf32>
    %197 = arith.addf %195, %196 : vector<1x128xf32>
    %198 = math.tanh %197 : vector<1x128xf32>
    %199 = arith.mulf %193, %198 : vector<1x128xf32>
    %200 = tpu.concatenate %199, %173 in 1 : vector<1x128xf32>, vector<1x128xf32> -> vector<1x256xf32>
    %c256_91 = arith.constant 256 : index
    %c0_92 = arith.constant 0 : index
    %201 = vector.load %arg2[%c256_91, %c0_92] : memref<640x512xf32, #tpu.memory_space<vmem>>, vector<256x512xf32>
    %cst_93 = arith.constant dense<0.000000e+00> : vector<1x512xf32>
    %202 = tpu.matmul %200, %201, %cst_93 {dimension_numbers = #tpu.dot_dimension_numbers<[1], [0], [0], [1], [0, 0, 1, 1], [], []>} : vector<1x256xf32>, vector<256x512xf32>, vector<1x512xf32> -> vector<1x512xf32>
    %c1_94 = arith.constant 1 : index
    %c0_95 = arith.constant 0 : index
    %203 = vector.load %arg3[%c1_94, %c0_95] : memref<3x512xf32, #tpu.memory_space<vmem>>, vector<1x512xf32>
    %204 = arith.addf %202, %203 : vector<1x512xf32>
    %205 = math.tanh %204 : vector<1x512xf32>
    %206 = vector.extract_strided_slice %205 {offsets = [0, 0], sizes = [1, 128], strides = [1, 1]} : vector<1x512xf32> to vector<1x128xf32>
    %cst_96 = arith.constant 1.000000e+00 : f32
    %207 = vector.broadcast %cst_96 : f32 to vector<1x128xf32>
    %208 = arith.addf %207, %206 : vector<1x128xf32>
    %cst_97 = arith.constant 5.000000e-01 : f32
    %209 = vector.broadcast %cst_97 : f32 to vector<1x128xf32>
    %210 = arith.mulf %209, %208 : vector<1x128xf32>
    %211 = vector.extract_strided_slice %205 {offsets = [0, 128], sizes = [1, 128], strides = [1, 1]} : vector<1x512xf32> to vector<1x128xf32>
    %cst_98 = arith.constant 1.000000e+00 : f32
    %212 = vector.broadcast %cst_98 : f32 to vector<1x128xf32>
    %213 = arith.addf %212, %211 : vector<1x128xf32>
    %cst_99 = arith.constant 5.000000e-01 : f32
    %214 = vector.broadcast %cst_99 : f32 to vector<1x128xf32>
    %215 = arith.mulf %214, %213 : vector<1x128xf32>
    %216 = vector.extract_strided_slice %205 {offsets = [0, 256], sizes = [1, 128], strides = [1, 1]} : vector<1x512xf32> to vector<1x128xf32>
    %cst_100 = arith.constant 1.000000e+00 : f32
    %217 = vector.broadcast %cst_100 : f32 to vector<1x128xf32>
    %218 = arith.addf %217, %216 : vector<1x128xf32>
    %cst_101 = arith.constant 5.000000e-01 : f32
    %219 = vector.broadcast %cst_101 : f32 to vector<1x128xf32>
    %220 = arith.mulf %219, %218 : vector<1x128xf32>
    %221 = vector.extract_strided_slice %205 {offsets = [0, 384], sizes = [1, 128], strides = [1, 1]} : vector<1x512xf32> to vector<1x128xf32>
    %222 = arith.mulf %215, %171 : vector<1x128xf32>
    %223 = arith.mulf %210, %221 : vector<1x128xf32>
    %224 = arith.addf %222, %223 : vector<1x128xf32>
    %225 = math.tanh %224 : vector<1x128xf32>
    %226 = arith.mulf %220, %225 : vector<1x128xf32>
    %c4 = arith.constant 4 : index
    %c0_102 = arith.constant 0 : index
    %227 = vector.load %arg6[%c4, %c0_102] : memref<8x512xf32, #tpu.memory_space<vmem>>, vector<1x512xf32>
    %c128_103 = arith.constant 128 : index
    %c0_104 = arith.constant 0 : index
    %228 = vector.load %arg2[%c128_103, %c0_104] : memref<640x512xf32, #tpu.memory_space<vmem>>, vector<128x512xf32>
    %cst_105 = arith.constant dense<0.000000e+00> : vector<1x512xf32>
    %229 = tpu.matmul %199, %228, %cst_105 {dimension_numbers = #tpu.dot_dimension_numbers<[1], [0], [0], [1], [0, 0, 1, 1], [], []>} : vector<1x128xf32>, vector<128x512xf32>, vector<1x512xf32> -> vector<1x512xf32>
    %230 = arith.addf %227, %229 : vector<1x512xf32>
    %231 = math.tanh %230 : vector<1x512xf32>
    %232 = vector.extract_strided_slice %231 {offsets = [0, 0], sizes = [1, 128], strides = [1, 1]} : vector<1x512xf32> to vector<1x128xf32>
    %cst_106 = arith.constant 1.000000e+00 : f32
    %233 = vector.broadcast %cst_106 : f32 to vector<1x128xf32>
    %234 = arith.addf %233, %232 : vector<1x128xf32>
    %cst_107 = arith.constant 5.000000e-01 : f32
    %235 = vector.broadcast %cst_107 : f32 to vector<1x128xf32>
    %236 = arith.mulf %235, %234 : vector<1x128xf32>
    %237 = vector.extract_strided_slice %231 {offsets = [0, 128], sizes = [1, 128], strides = [1, 1]} : vector<1x512xf32> to vector<1x128xf32>
    %cst_108 = arith.constant 1.000000e+00 : f32
    %238 = vector.broadcast %cst_108 : f32 to vector<1x128xf32>
    %239 = arith.addf %238, %237 : vector<1x128xf32>
    %cst_109 = arith.constant 5.000000e-01 : f32
    %240 = vector.broadcast %cst_109 : f32 to vector<1x128xf32>
    %241 = arith.mulf %240, %239 : vector<1x128xf32>
    %242 = vector.extract_strided_slice %231 {offsets = [0, 256], sizes = [1, 128], strides = [1, 1]} : vector<1x512xf32> to vector<1x128xf32>
    %cst_110 = arith.constant 1.000000e+00 : f32
    %243 = vector.broadcast %cst_110 : f32 to vector<1x128xf32>
    %244 = arith.addf %243, %242 : vector<1x128xf32>
    %cst_111 = arith.constant 5.000000e-01 : f32
    %245 = vector.broadcast %cst_111 : f32 to vector<1x128xf32>
    %246 = arith.mulf %245, %244 : vector<1x128xf32>
    %247 = vector.extract_strided_slice %231 {offsets = [0, 384], sizes = [1, 128], strides = [1, 1]} : vector<1x512xf32> to vector<1x128xf32>
    %248 = arith.mulf %241, %197 : vector<1x128xf32>
    %249 = arith.mulf %236, %247 : vector<1x128xf32>
    %250 = arith.addf %248, %249 : vector<1x128xf32>
    %251 = math.tanh %250 : vector<1x128xf32>
    %252 = arith.mulf %246, %251 : vector<1x128xf32>
    %253 = tpu.concatenate %252, %226 in 1 : vector<1x128xf32>, vector<1x128xf32> -> vector<1x256xf32>
    %c256_112 = arith.constant 256 : index
    %c0_113 = arith.constant 0 : index
    %254 = vector.load %arg2[%c256_112, %c0_113] : memref<640x512xf32, #tpu.memory_space<vmem>>, vector<256x512xf32>
    %cst_114 = arith.constant dense<0.000000e+00> : vector<1x512xf32>
    %255 = tpu.matmul %253, %254, %cst_114 {dimension_numbers = #tpu.dot_dimension_numbers<[1], [0], [0], [1], [0, 0, 1, 1], [], []>} : vector<1x256xf32>, vector<256x512xf32>, vector<1x512xf32> -> vector<1x512xf32>
    %c1_115 = arith.constant 1 : index
    %c0_116 = arith.constant 0 : index
    %256 = vector.load %arg3[%c1_115, %c0_116] : memref<3x512xf32, #tpu.memory_space<vmem>>, vector<1x512xf32>
    %257 = arith.addf %255, %256 : vector<1x512xf32>
    %258 = math.tanh %257 : vector<1x512xf32>
    %259 = vector.extract_strided_slice %258 {offsets = [0, 0], sizes = [1, 128], strides = [1, 1]} : vector<1x512xf32> to vector<1x128xf32>
    %cst_117 = arith.constant 1.000000e+00 : f32
    %260 = vector.broadcast %cst_117 : f32 to vector<1x128xf32>
    %261 = arith.addf %260, %259 : vector<1x128xf32>
    %cst_118 = arith.constant 5.000000e-01 : f32
    %262 = vector.broadcast %cst_118 : f32 to vector<1x128xf32>
    %263 = arith.mulf %262, %261 : vector<1x128xf32>
    %264 = vector.extract_strided_slice %258 {offsets = [0, 128], sizes = [1, 128], strides = [1, 1]} : vector<1x512xf32> to vector<1x128xf32>
    %cst_119 = arith.constant 1.000000e+00 : f32
    %265 = vector.broadcast %cst_119 : f32 to vector<1x128xf32>
    %266 = arith.addf %265, %264 : vector<1x128xf32>
    %cst_120 = arith.constant 5.000000e-01 : f32
    %267 = vector.broadcast %cst_120 : f32 to vector<1x128xf32>
    %268 = arith.mulf %267, %266 : vector<1x128xf32>
    %269 = vector.extract_strided_slice %258 {offsets = [0, 256], sizes = [1, 128], strides = [1, 1]} : vector<1x512xf32> to vector<1x128xf32>
    %cst_121 = arith.constant 1.000000e+00 : f32
    %270 = vector.broadcast %cst_121 : f32 to vector<1x128xf32>
    %271 = arith.addf %270, %269 : vector<1x128xf32>
    %cst_122 = arith.constant 5.000000e-01 : f32
    %272 = vector.broadcast %cst_122 : f32 to vector<1x128xf32>
    %273 = arith.mulf %272, %271 : vector<1x128xf32>
    %274 = vector.extract_strided_slice %258 {offsets = [0, 384], sizes = [1, 128], strides = [1, 1]} : vector<1x512xf32> to vector<1x128xf32>
    %275 = arith.mulf %268, %224 : vector<1x128xf32>
    %276 = arith.mulf %263, %274 : vector<1x128xf32>
    %277 = arith.addf %275, %276 : vector<1x128xf32>
    %278 = math.tanh %277 : vector<1x128xf32>
    %279 = arith.mulf %273, %278 : vector<1x128xf32>
    %c5 = arith.constant 5 : index
    %c0_123 = arith.constant 0 : index
    %280 = vector.load %arg6[%c5, %c0_123] : memref<8x512xf32, #tpu.memory_space<vmem>>, vector<1x512xf32>
    %c128_124 = arith.constant 128 : index
    %c0_125 = arith.constant 0 : index
    %281 = vector.load %arg2[%c128_124, %c0_125] : memref<640x512xf32, #tpu.memory_space<vmem>>, vector<128x512xf32>
    %cst_126 = arith.constant dense<0.000000e+00> : vector<1x512xf32>
    %282 = tpu.matmul %252, %281, %cst_126 {dimension_numbers = #tpu.dot_dimension_numbers<[1], [0], [0], [1], [0, 0, 1, 1], [], []>} : vector<1x128xf32>, vector<128x512xf32>, vector<1x512xf32> -> vector<1x512xf32>
    %283 = arith.addf %280, %282 : vector<1x512xf32>
    %284 = math.tanh %283 : vector<1x512xf32>
    %285 = vector.extract_strided_slice %284 {offsets = [0, 0], sizes = [1, 128], strides = [1, 1]} : vector<1x512xf32> to vector<1x128xf32>
    %cst_127 = arith.constant 1.000000e+00 : f32
    %286 = vector.broadcast %cst_127 : f32 to vector<1x128xf32>
    %287 = arith.addf %286, %285 : vector<1x128xf32>
    %cst_128 = arith.constant 5.000000e-01 : f32
    %288 = vector.broadcast %cst_128 : f32 to vector<1x128xf32>
    %289 = arith.mulf %288, %287 : vector<1x128xf32>
    %290 = vector.extract_strided_slice %284 {offsets = [0, 128], sizes = [1, 128], strides = [1, 1]} : vector<1x512xf32> to vector<1x128xf32>
    %cst_129 = arith.constant 1.000000e+00 : f32
    %291 = vector.broadcast %cst_129 : f32 to vector<1x128xf32>
    %292 = arith.addf %291, %290 : vector<1x128xf32>
    %cst_130 = arith.constant 5.000000e-01 : f32
    %293 = vector.broadcast %cst_130 : f32 to vector<1x128xf32>
    %294 = arith.mulf %293, %292 : vector<1x128xf32>
    %295 = vector.extract_strided_slice %284 {offsets = [0, 256], sizes = [1, 128], strides = [1, 1]} : vector<1x512xf32> to vector<1x128xf32>
    %cst_131 = arith.constant 1.000000e+00 : f32
    %296 = vector.broadcast %cst_131 : f32 to vector<1x128xf32>
    %297 = arith.addf %296, %295 : vector<1x128xf32>
    %cst_132 = arith.constant 5.000000e-01 : f32
    %298 = vector.broadcast %cst_132 : f32 to vector<1x128xf32>
    %299 = arith.mulf %298, %297 : vector<1x128xf32>
    %300 = vector.extract_strided_slice %284 {offsets = [0, 384], sizes = [1, 128], strides = [1, 1]} : vector<1x512xf32> to vector<1x128xf32>
    %301 = arith.mulf %294, %250 : vector<1x128xf32>
    %302 = arith.mulf %289, %300 : vector<1x128xf32>
    %303 = arith.addf %301, %302 : vector<1x128xf32>
    %304 = math.tanh %303 : vector<1x128xf32>
    %305 = arith.mulf %299, %304 : vector<1x128xf32>
    %306 = tpu.concatenate %305, %279 in 1 : vector<1x128xf32>, vector<1x128xf32> -> vector<1x256xf32>
    %c256_133 = arith.constant 256 : index
    %c0_134 = arith.constant 0 : index
    %307 = vector.load %arg2[%c256_133, %c0_134] : memref<640x512xf32, #tpu.memory_space<vmem>>, vector<256x512xf32>
    %cst_135 = arith.constant dense<0.000000e+00> : vector<1x512xf32>
    %308 = tpu.matmul %306, %307, %cst_135 {dimension_numbers = #tpu.dot_dimension_numbers<[1], [0], [0], [1], [0, 0, 1, 1], [], []>} : vector<1x256xf32>, vector<256x512xf32>, vector<1x512xf32> -> vector<1x512xf32>
    %c1_136 = arith.constant 1 : index
    %c0_137 = arith.constant 0 : index
    %309 = vector.load %arg3[%c1_136, %c0_137] : memref<3x512xf32, #tpu.memory_space<vmem>>, vector<1x512xf32>
    %310 = arith.addf %308, %309 : vector<1x512xf32>
    %311 = math.tanh %310 : vector<1x512xf32>
    %312 = vector.extract_strided_slice %311 {offsets = [0, 0], sizes = [1, 128], strides = [1, 1]} : vector<1x512xf32> to vector<1x128xf32>
    %cst_138 = arith.constant 1.000000e+00 : f32
    %313 = vector.broadcast %cst_138 : f32 to vector<1x128xf32>
    %314 = arith.addf %313, %312 : vector<1x128xf32>
    %cst_139 = arith.constant 5.000000e-01 : f32
    %315 = vector.broadcast %cst_139 : f32 to vector<1x128xf32>
    %316 = arith.mulf %315, %314 : vector<1x128xf32>
    %317 = vector.extract_strided_slice %311 {offsets = [0, 128], sizes = [1, 128], strides = [1, 1]} : vector<1x512xf32> to vector<1x128xf32>
    %cst_140 = arith.constant 1.000000e+00 : f32
    %318 = vector.broadcast %cst_140 : f32 to vector<1x128xf32>
    %319 = arith.addf %318, %317 : vector<1x128xf32>
    %cst_141 = arith.constant 5.000000e-01 : f32
    %320 = vector.broadcast %cst_141 : f32 to vector<1x128xf32>
    %321 = arith.mulf %320, %319 : vector<1x128xf32>
    %322 = vector.extract_strided_slice %311 {offsets = [0, 256], sizes = [1, 128], strides = [1, 1]} : vector<1x512xf32> to vector<1x128xf32>
    %cst_142 = arith.constant 1.000000e+00 : f32
    %323 = vector.broadcast %cst_142 : f32 to vector<1x128xf32>
    %324 = arith.addf %323, %322 : vector<1x128xf32>
    %cst_143 = arith.constant 5.000000e-01 : f32
    %325 = vector.broadcast %cst_143 : f32 to vector<1x128xf32>
    %326 = arith.mulf %325, %324 : vector<1x128xf32>
    %327 = vector.extract_strided_slice %311 {offsets = [0, 384], sizes = [1, 128], strides = [1, 1]} : vector<1x512xf32> to vector<1x128xf32>
    %328 = arith.mulf %321, %277 : vector<1x128xf32>
    %329 = arith.mulf %316, %327 : vector<1x128xf32>
    %330 = arith.addf %328, %329 : vector<1x128xf32>
    %331 = math.tanh %330 : vector<1x128xf32>
    %332 = arith.mulf %326, %331 : vector<1x128xf32>
    %c6 = arith.constant 6 : index
    %c0_144 = arith.constant 0 : index
    %333 = vector.load %arg6[%c6, %c0_144] : memref<8x512xf32, #tpu.memory_space<vmem>>, vector<1x512xf32>
    %c128_145 = arith.constant 128 : index
    %c0_146 = arith.constant 0 : index
    %334 = vector.load %arg2[%c128_145, %c0_146] : memref<640x512xf32, #tpu.memory_space<vmem>>, vector<128x512xf32>
    %cst_147 = arith.constant dense<0.000000e+00> : vector<1x512xf32>
    %335 = tpu.matmul %305, %334, %cst_147 {dimension_numbers = #tpu.dot_dimension_numbers<[1], [0], [0], [1], [0, 0, 1, 1], [], []>} : vector<1x128xf32>, vector<128x512xf32>, vector<1x512xf32> -> vector<1x512xf32>
    %336 = arith.addf %333, %335 : vector<1x512xf32>
    %337 = math.tanh %336 : vector<1x512xf32>
    %338 = vector.extract_strided_slice %337 {offsets = [0, 0], sizes = [1, 128], strides = [1, 1]} : vector<1x512xf32> to vector<1x128xf32>
    %cst_148 = arith.constant 1.000000e+00 : f32
    %339 = vector.broadcast %cst_148 : f32 to vector<1x128xf32>
    %340 = arith.addf %339, %338 : vector<1x128xf32>
    %cst_149 = arith.constant 5.000000e-01 : f32
    %341 = vector.broadcast %cst_149 : f32 to vector<1x128xf32>
    %342 = arith.mulf %341, %340 : vector<1x128xf32>
    %343 = vector.extract_strided_slice %337 {offsets = [0, 128], sizes = [1, 128], strides = [1, 1]} : vector<1x512xf32> to vector<1x128xf32>
    %cst_150 = arith.constant 1.000000e+00 : f32
    %344 = vector.broadcast %cst_150 : f32 to vector<1x128xf32>
    %345 = arith.addf %344, %343 : vector<1x128xf32>
    %cst_151 = arith.constant 5.000000e-01 : f32
    %346 = vector.broadcast %cst_151 : f32 to vector<1x128xf32>
    %347 = arith.mulf %346, %345 : vector<1x128xf32>
    %348 = vector.extract_strided_slice %337 {offsets = [0, 256], sizes = [1, 128], strides = [1, 1]} : vector<1x512xf32> to vector<1x128xf32>
    %cst_152 = arith.constant 1.000000e+00 : f32
    %349 = vector.broadcast %cst_152 : f32 to vector<1x128xf32>
    %350 = arith.addf %349, %348 : vector<1x128xf32>
    %cst_153 = arith.constant 5.000000e-01 : f32
    %351 = vector.broadcast %cst_153 : f32 to vector<1x128xf32>
    %352 = arith.mulf %351, %350 : vector<1x128xf32>
    %353 = vector.extract_strided_slice %337 {offsets = [0, 384], sizes = [1, 128], strides = [1, 1]} : vector<1x512xf32> to vector<1x128xf32>
    %354 = arith.mulf %347, %303 : vector<1x128xf32>
    %355 = arith.mulf %342, %353 : vector<1x128xf32>
    %356 = arith.addf %354, %355 : vector<1x128xf32>
    %357 = math.tanh %356 : vector<1x128xf32>
    %358 = arith.mulf %352, %357 : vector<1x128xf32>
    %359 = tpu.concatenate %358, %332 in 1 : vector<1x128xf32>, vector<1x128xf32> -> vector<1x256xf32>
    %c256_154 = arith.constant 256 : index
    %c0_155 = arith.constant 0 : index
    %360 = vector.load %arg2[%c256_154, %c0_155] : memref<640x512xf32, #tpu.memory_space<vmem>>, vector<256x512xf32>
    %cst_156 = arith.constant dense<0.000000e+00> : vector<1x512xf32>
    %361 = tpu.matmul %359, %360, %cst_156 {dimension_numbers = #tpu.dot_dimension_numbers<[1], [0], [0], [1], [0, 0, 1, 1], [], []>} : vector<1x256xf32>, vector<256x512xf32>, vector<1x512xf32> -> vector<1x512xf32>
    %c1_157 = arith.constant 1 : index
    %c0_158 = arith.constant 0 : index
    %362 = vector.load %arg3[%c1_157, %c0_158] : memref<3x512xf32, #tpu.memory_space<vmem>>, vector<1x512xf32>
    %363 = arith.addf %361, %362 : vector<1x512xf32>
    %364 = math.tanh %363 : vector<1x512xf32>
    %365 = vector.extract_strided_slice %364 {offsets = [0, 0], sizes = [1, 128], strides = [1, 1]} : vector<1x512xf32> to vector<1x128xf32>
    %cst_159 = arith.constant 1.000000e+00 : f32
    %366 = vector.broadcast %cst_159 : f32 to vector<1x128xf32>
    %367 = arith.addf %366, %365 : vector<1x128xf32>
    %cst_160 = arith.constant 5.000000e-01 : f32
    %368 = vector.broadcast %cst_160 : f32 to vector<1x128xf32>
    %369 = arith.mulf %368, %367 : vector<1x128xf32>
    %370 = vector.extract_strided_slice %364 {offsets = [0, 128], sizes = [1, 128], strides = [1, 1]} : vector<1x512xf32> to vector<1x128xf32>
    %cst_161 = arith.constant 1.000000e+00 : f32
    %371 = vector.broadcast %cst_161 : f32 to vector<1x128xf32>
    %372 = arith.addf %371, %370 : vector<1x128xf32>
    %cst_162 = arith.constant 5.000000e-01 : f32
    %373 = vector.broadcast %cst_162 : f32 to vector<1x128xf32>
    %374 = arith.mulf %373, %372 : vector<1x128xf32>
    %375 = vector.extract_strided_slice %364 {offsets = [0, 256], sizes = [1, 128], strides = [1, 1]} : vector<1x512xf32> to vector<1x128xf32>
    %cst_163 = arith.constant 1.000000e+00 : f32
    %376 = vector.broadcast %cst_163 : f32 to vector<1x128xf32>
    %377 = arith.addf %376, %375 : vector<1x128xf32>
    %cst_164 = arith.constant 5.000000e-01 : f32
    %378 = vector.broadcast %cst_164 : f32 to vector<1x128xf32>
    %379 = arith.mulf %378, %377 : vector<1x128xf32>
    %380 = vector.extract_strided_slice %364 {offsets = [0, 384], sizes = [1, 128], strides = [1, 1]} : vector<1x512xf32> to vector<1x128xf32>
    %381 = arith.mulf %374, %330 : vector<1x128xf32>
    %382 = arith.mulf %369, %380 : vector<1x128xf32>
    %383 = arith.addf %381, %382 : vector<1x128xf32>
    %384 = math.tanh %383 : vector<1x128xf32>
    %385 = arith.mulf %379, %384 : vector<1x128xf32>
    %c7 = arith.constant 7 : index
    %c0_165 = arith.constant 0 : index
    %386 = vector.load %arg6[%c7, %c0_165] : memref<8x512xf32, #tpu.memory_space<vmem>>, vector<1x512xf32>
    %c128_166 = arith.constant 128 : index
    %c0_167 = arith.constant 0 : index
    %387 = vector.load %arg2[%c128_166, %c0_167] : memref<640x512xf32, #tpu.memory_space<vmem>>, vector<128x512xf32>
    %cst_168 = arith.constant dense<0.000000e+00> : vector<1x512xf32>
    %388 = tpu.matmul %358, %387, %cst_168 {dimension_numbers = #tpu.dot_dimension_numbers<[1], [0], [0], [1], [0, 0, 1, 1], [], []>} : vector<1x128xf32>, vector<128x512xf32>, vector<1x512xf32> -> vector<1x512xf32>
    %389 = arith.addf %386, %388 : vector<1x512xf32>
    %390 = math.tanh %389 : vector<1x512xf32>
    %391 = vector.extract_strided_slice %390 {offsets = [0, 0], sizes = [1, 128], strides = [1, 1]} : vector<1x512xf32> to vector<1x128xf32>
    %cst_169 = arith.constant 1.000000e+00 : f32
    %392 = vector.broadcast %cst_169 : f32 to vector<1x128xf32>
    %393 = arith.addf %392, %391 : vector<1x128xf32>
    %cst_170 = arith.constant 5.000000e-01 : f32
    %394 = vector.broadcast %cst_170 : f32 to vector<1x128xf32>
    %395 = arith.mulf %394, %393 : vector<1x128xf32>
    %396 = vector.extract_strided_slice %390 {offsets = [0, 128], sizes = [1, 128], strides = [1, 1]} : vector<1x512xf32> to vector<1x128xf32>
    %cst_171 = arith.constant 1.000000e+00 : f32
    %397 = vector.broadcast %cst_171 : f32 to vector<1x128xf32>
    %398 = arith.addf %397, %396 : vector<1x128xf32>
    %cst_172 = arith.constant 5.000000e-01 : f32
    %399 = vector.broadcast %cst_172 : f32 to vector<1x128xf32>
    %400 = arith.mulf %399, %398 : vector<1x128xf32>
    %401 = vector.extract_strided_slice %390 {offsets = [0, 256], sizes = [1, 128], strides = [1, 1]} : vector<1x512xf32> to vector<1x128xf32>
    %cst_173 = arith.constant 1.000000e+00 : f32
    %402 = vector.broadcast %cst_173 : f32 to vector<1x128xf32>
    %403 = arith.addf %402, %401 : vector<1x128xf32>
    %cst_174 = arith.constant 5.000000e-01 : f32
    %404 = vector.broadcast %cst_174 : f32 to vector<1x128xf32>
    %405 = arith.mulf %404, %403 : vector<1x128xf32>
    %406 = vector.extract_strided_slice %390 {offsets = [0, 384], sizes = [1, 128], strides = [1, 1]} : vector<1x512xf32> to vector<1x128xf32>
    %407 = arith.mulf %400, %356 : vector<1x128xf32>
    %408 = arith.mulf %395, %406 : vector<1x128xf32>
    %409 = arith.addf %407, %408 : vector<1x128xf32>
    %410 = math.tanh %409 : vector<1x128xf32>
    %411 = arith.mulf %405, %410 : vector<1x128xf32>
    %412 = tpu.concatenate %411, %385 in 1 : vector<1x128xf32>, vector<1x128xf32> -> vector<1x256xf32>
    %c256_175 = arith.constant 256 : index
    %c0_176 = arith.constant 0 : index
    %413 = vector.load %arg2[%c256_175, %c0_176] : memref<640x512xf32, #tpu.memory_space<vmem>>, vector<256x512xf32>
    %cst_177 = arith.constant dense<0.000000e+00> : vector<1x512xf32>
    %414 = tpu.matmul %412, %413, %cst_177 {dimension_numbers = #tpu.dot_dimension_numbers<[1], [0], [0], [1], [0, 0, 1, 1], [], []>} : vector<1x256xf32>, vector<256x512xf32>, vector<1x512xf32> -> vector<1x512xf32>
    %c1_178 = arith.constant 1 : index
    %c0_179 = arith.constant 0 : index
    %415 = vector.load %arg3[%c1_178, %c0_179] : memref<3x512xf32, #tpu.memory_space<vmem>>, vector<1x512xf32>
    %416 = arith.addf %414, %415 : vector<1x512xf32>
    %417 = math.tanh %416 : vector<1x512xf32>
    %418 = vector.extract_strided_slice %417 {offsets = [0, 0], sizes = [1, 128], strides = [1, 1]} : vector<1x512xf32> to vector<1x128xf32>
    %cst_180 = arith.constant 1.000000e+00 : f32
    %419 = vector.broadcast %cst_180 : f32 to vector<1x128xf32>
    %420 = arith.addf %419, %418 : vector<1x128xf32>
    %cst_181 = arith.constant 5.000000e-01 : f32
    %421 = vector.broadcast %cst_181 : f32 to vector<1x128xf32>
    %422 = arith.mulf %421, %420 : vector<1x128xf32>
    %423 = vector.extract_strided_slice %417 {offsets = [0, 128], sizes = [1, 128], strides = [1, 1]} : vector<1x512xf32> to vector<1x128xf32>
    %cst_182 = arith.constant 1.000000e+00 : f32
    %424 = vector.broadcast %cst_182 : f32 to vector<1x128xf32>
    %425 = arith.addf %424, %423 : vector<1x128xf32>
    %cst_183 = arith.constant 5.000000e-01 : f32
    %426 = vector.broadcast %cst_183 : f32 to vector<1x128xf32>
    %427 = arith.mulf %426, %425 : vector<1x128xf32>
    %428 = vector.extract_strided_slice %417 {offsets = [0, 256], sizes = [1, 128], strides = [1, 1]} : vector<1x512xf32> to vector<1x128xf32>
    %cst_184 = arith.constant 1.000000e+00 : f32
    %429 = vector.broadcast %cst_184 : f32 to vector<1x128xf32>
    %430 = arith.addf %429, %428 : vector<1x128xf32>
    %cst_185 = arith.constant 5.000000e-01 : f32
    %431 = vector.broadcast %cst_185 : f32 to vector<1x128xf32>
    %432 = arith.mulf %431, %430 : vector<1x128xf32>
    %433 = vector.extract_strided_slice %417 {offsets = [0, 384], sizes = [1, 128], strides = [1, 1]} : vector<1x512xf32> to vector<1x128xf32>
    %434 = arith.mulf %427, %383 : vector<1x128xf32>
    %435 = arith.mulf %422, %433 : vector<1x128xf32>
    %436 = arith.addf %434, %435 : vector<1x128xf32>
    %437 = math.tanh %436 : vector<1x128xf32>
    %438 = arith.mulf %432, %437 : vector<1x128xf32>
    %c512 = arith.constant 512 : index
    %c0_186 = arith.constant 0 : index
    %439 = vector.load %arg2[%c512, %c0_186] : memref<640x512xf32, #tpu.memory_space<vmem>>, vector<128x512xf32>
    %cst_187 = arith.constant dense<0.000000e+00> : vector<1x512xf32>
    %440 = tpu.matmul %438, %439, %cst_187 {dimension_numbers = #tpu.dot_dimension_numbers<[1], [0], [0], [1], [0, 0, 1, 1], [], []>} : vector<1x128xf32>, vector<128x512xf32>, vector<1x512xf32> -> vector<1x512xf32>
    %441 = vector.extract_strided_slice %440 {offsets = [0, 0], sizes = [1, 128], strides = [1, 1]} : vector<1x512xf32> to vector<1x128xf32>
    %c2_188 = arith.constant 2 : index
    %c0_189 = arith.constant 0 : index
    %442 = vector.load %arg3[%c2_188, %c0_189] : memref<3x512xf32, #tpu.memory_space<vmem>>, vector<1x128xf32>
    %443 = arith.addf %441, %442 : vector<1x128xf32>
    %c0_190 = arith.constant 0 : index
    %c0_191 = arith.constant 0 : index
    %444 = vector.load %arg4[%c0_190, %c0_191] : memref<1x128xf32, #tpu.memory_space<vmem>>, vector<1x128xf32>
    tpu.vector_store %arg4[%c0_190, %c0_191], %443 {strides = array<i32>} : memref<1x128xf32, #tpu.memory_space<vmem>>, vector<1x128xf32>,
    %c0_192 = arith.constant 0 : index
    %c0_193 = arith.constant 0 : index
    %c0_194 = arith.constant 0 : index
    %445 = vector.load %arg5[%c0_192, %c0_193, %c0_194] : memref<4x1x128xf32, #tpu.memory_space<vmem>>, vector<1x1x128xf32>
    %446 = vector.shape_cast %445 : vector<1x1x128xf32> to vector<1x128xf32>
    %447 = vector.shape_cast %411 : vector<1x128xf32> to vector<1x1x128xf32>
    tpu.vector_store %arg5[%c0_192, %c0_193, %c0_194], %447 {strides = array<i32>} : memref<4x1x128xf32, #tpu.memory_space<vmem>>, vector<1x1x128xf32>,
    %c1_195 = arith.constant 1 : index
    %c0_196 = arith.constant 0 : index
    %c0_197 = arith.constant 0 : index
    %448 = vector.load %arg5[%c1_195, %c0_196, %c0_197] : memref<4x1x128xf32, #tpu.memory_space<vmem>>, vector<1x1x128xf32>
    %449 = vector.shape_cast %448 : vector<1x1x128xf32> to vector<1x128xf32>
    %450 = vector.shape_cast %438 : vector<1x128xf32> to vector<1x1x128xf32>
    tpu.vector_store %arg5[%c1_195, %c0_196, %c0_197], %450 {strides = array<i32>} : memref<4x1x128xf32, #tpu.memory_space<vmem>>, vector<1x1x128xf32>,
    %c2_198 = arith.constant 2 : index
    %c0_199 = arith.constant 0 : index
    %c0_200 = arith.constant 0 : index
    %451 = vector.load %arg5[%c2_198, %c0_199, %c0_200] : memref<4x1x128xf32, #tpu.memory_space<vmem>>, vector<1x1x128xf32>
    %452 = vector.shape_cast %451 : vector<1x1x128xf32> to vector<1x128xf32>
    %453 = vector.shape_cast %409 : vector<1x128xf32> to vector<1x1x128xf32>
    tpu.vector_store %arg5[%c2_198, %c0_199, %c0_200], %453 {strides = array<i32>} : memref<4x1x128xf32, #tpu.memory_space<vmem>>, vector<1x1x128xf32>,
    %c3_201 = arith.constant 3 : index
    %c0_202 = arith.constant 0 : index
    %c0_203 = arith.constant 0 : index
    %454 = vector.load %arg5[%c3_201, %c0_202, %c0_203] : memref<4x1x128xf32, #tpu.memory_space<vmem>>, vector<1x1x128xf32>
    %455 = vector.shape_cast %454 : vector<1x1x128xf32> to vector<1x128xf32>
    %456 = vector.shape_cast %436 : vector<1x128xf32> to vector<1x1x128xf32>
    tpu.vector_store %arg5[%c3_201, %c0_202, %c0_203], %456 {strides = array<i32>} : memref<4x1x128xf32, #tpu.memory_space<vmem>>, vector<1x1x128xf32>,
    return
  }
}

</mosaic_0001>

<llo_original>
// kernel: lstm_forward.1
$region0: #{lstm_forward.1}
  #allocation0 [shape = 'u32[]', space=smem, size = 0x4, offset = 0x4, fixed_abs, tag = 'smem constant byte address 0x4 - core index']
  #allocation1 [shape = 'u32[72,128]{1,0:T(1,128)}', space=vmem, size = 0x9000, scoped, tag = 'internal scratch']
  #allocation2 [shape = 'f32[8,512]{1,0:T(8,128)}', space=vmem, size = 0x4000, scoped, tag = 'scratch operand']
  %s0 = inlined_call_operand.vmem [shape: f32[8,128], index: 0, kind: input, shape index: {}]
  %s1 = inlined_call_operand.vmem [shape: f32[4,1,128], index: 1, kind: input, shape index: {}]
  %s2 = inlined_call_operand.hbm [shape: f32[640,512], index: 2, kind: input, shape index: {}]
  %s3 = inlined_call_operand.hbm [shape: f32[3,512], index: 3, kind: input, shape index: {}]
  %s4 = inlined_call_operand.hbm [shape: f32[1,128], index: 4, kind: output, shape index: {0}]
  %s5 = inlined_call_operand.vmem [shape: f32[4,1,128], index: 5, kind: output, shape index: {1}]
  %6 = xla_tuple %s4, %s5
  %s7 = sld [smem:[#allocation0]]
  $region42: #{lstm_forward.1} parent=0
    _
  %s9 = ssub.s32 1, %s7
  %s10 = scalar_select 0, %s9, %s7
  $region1: #{lstm_forward.1} parent=0
    #allocation3 [shape = 'u8[1310720]{0}', space=vmem, size = 0x140000, scoped, tag = 'input window, operand 2, single buffered']
    #allocation4 [shape = 's32[1]{0}', space=sflag, size = 0x4, scoped, tag = 'scoped memory for lstm_forward.1']
    #allocation5 [shape = 's32[1]{0}', space=sflag, size = 0x4, scoped, tag = 'scoped memory for lstm_forward.1']
    #allocation6 [shape = 'u8[8192]{0}', space=vmem, size = 0x2000, scoped, tag = 'input window, operand 3, single buffered']
    #allocation7 [shape = 's32[1]{0}', space=sflag, size = 0x4, scoped, tag = 'scoped memory for lstm_forward.1']
    #allocation8 [shape = 'u8[512]{0}', space=vmem, size = 0x400, scoped, tag = 'output window, operand 0, single buffered']
    %11 = vsyncpa [#allocation4], 0
    %12 = vsyncpa [#allocation7], 0
    %13 = vsyncpa [#allocation5], 0
    // Predicated region
    $region2: #{lstm_forward.1} parent=1 // pred_check
      _
    $region3: #{lstm_forward.1} parent=1 // pred_check_branch
      %15 = sbr.rel (0) target = $region5
    $region4: #{lstm_forward.1} parent=1 // pred_region
      _
    $region5: #{lstm_forward.1} parent=1 // pred_fallthru
      _
    // Predicated region
    $region6: #{lstm_forward.1} parent=1 // pred_check
      _
    $region7: #{lstm_forward.1} parent=1 // pred_check_branch
      %17 = sbr.rel (0) target = $region9
    $region8: #{lstm_forward.1} parent=1 // pred_region
      _
    $region9: #{lstm_forward.1} parent=1 // pred_fallthru
      _
    // Predicated region
    $region10: #{lstm_forward.1} parent=1 // pred_check
      _
    $region11: #{lstm_forward.1} parent=1 // pred_check_branch
      %19 = sbr.rel (0) target = $region13
    $region12: #{lstm_forward.1} parent=1 // pred_region
      %21 = vsyncadd [#allocation4], 0
      %s22 = sshll.u32 %s2, 4
      %s23 = int_to_ptr.hbm [resolvable:$true] %s22
      %s24 = sshll.u32 [#allocation3], 4
      %s25 = int_to_ptr.vmem [resolvable:$true] %s24
      %30 = dma.hbm_to_vmem [thread:$0]  %s23, 40960, %s25, [#allocation4], 512, 512, 32
    $region13: #{lstm_forward.1} parent=1 // pred_fallthru
      _
    // Predicated region
    $region14: #{lstm_forward.1} parent=1 // pred_check
      _
    $region15: #{lstm_forward.1} parent=1 // pred_check_branch
      %32 = sbr.rel (0) target = $region17
    $region16: #{lstm_forward.1} parent=1 // pred_region
      %34 = vsyncadd [#allocation7], 0
      %s36 = sshll.u32 %s3, 4
      %s37 = int_to_ptr.hbm [resolvable:$true] %s36
      %s38 = sshll.u32 [#allocation6], 4
      %s39 = int_to_ptr.vmem [resolvable:$true] %s38
      %41 = dma.hbm_to_vmem [thread:$0]  %s37, 256, %s39, [#allocation7]
    $region17: #{lstm_forward.1} parent=1 // pred_fallthru
      _
    // Predicated region
    $region18: #{lstm_forward.1} parent=1 // pred_check
      _
    $region19: #{lstm_forward.1} parent=1 // pred_check_branch
      %43 = sbr.rel (0) target = $region21
    $region20: #{lstm_forward.1} parent=1 // pred_region
      %45 = dma.done [#allocation4], 40960
    $region21: #{lstm_forward.1} parent=1 // pred_fallthru
      _
    // Predicated region
    $region22: #{lstm_forward.1} parent=1 // pred_check
      _
    $region23: #{lstm_forward.1} parent=1 // pred_check_branch
      %47 = sbr.rel (0) target = $region25
    $region24: #{lstm_forward.1} parent=1 // pred_region
      %49 = dma.done [#allocation7], 256
    $region25: #{lstm_forward.1} parent=1 // pred_fallthru
      _
    %v50 = vld [vmem:[%s0] sm:$0xff]
    %v51 = vld [vmem:[#allocation3] sm:$0xff]
    %v52 = vld [vmem:[#allocation3 + $0x8] sm:$0xff]
    %v53 = vld [vmem:[#allocation3 + $0x10] sm:$0xff]
    %v54 = vld [vmem:[#allocation3 + $0x18] sm:$0xff]
    %v55 = vld [vmem:[#allocation3 + $0x20] sm:$0xff]
    %v56 = vld [vmem:[#allocation3 + $0x28] sm:$0xff]
    %v57 = vld [vmem:[#allocation3 + $0x30] sm:$0xff]
    %v58 = vld [vmem:[#allocation3 + $0x38] sm:$0xff]
    %v59 = vld [vmem:[#allocation3 + $0x40] sm:$0xff]
    %v60 = vld [vmem:[#allocation3 + $0x48] sm:$0xff]
    %v61 = vld [vmem:[#allocation3 + $0x50] sm:$0xff]
    %v62 = vld [vmem:[#allocation3 + $0x58] sm:$0xff]
    %v63 = vld [vmem:[#allocation3 + $0x60] sm:$0xff]
    %v64 = vld [vmem:[#allocation3 + $0x68] sm:$0xff]
    %v65 = vld [vmem:[#allocation3 + $0x70] sm:$0xff]
    %v66 = vld [vmem:[#allocation3 + $0x78] sm:$0xff]
    %v67 = vld [vmem:[#allocation3 + $0x80] sm:$0xff]
    %v68 = vld [vmem:[#allocation3 + $0x88] sm:$0xff]
    %v69 = vld [vmem:[#allocation3 + $0x90] sm:$0xff]
    %v70 = vld [vmem:[#allocation3 + $0x98] sm:$0xff]
    %v71 = vld [vmem:[#allocation3 + $0xa0] sm:$0xff]
    %v72 = vld [vmem:[#allocation3 + $0xa8] sm:$0xff]
    %v73 = vld [vmem:[#allocation3 + $0xb0] sm:$0xff]
    %v74 = vld [vmem:[#allocation3 + $0xb8] sm:$0xff]
    %v75 = vld [vmem:[#allocation3 + $0xc0] sm:$0xff]
    %v76 = vld [vmem:[#allocation3 + $0xc8] sm:$0xff]
    %v77 = vld [vmem:[#allocation3 + $0xd0] sm:$0xff]
    %v78 = vld [vmem:[#allocation3 + $0xd8] sm:$0xff]
    %v79 = vld [vmem:[#allocation3 + $0xe0] sm:$0xff]
    %v80 = vld [vmem:[#allocation3 + $0xe8] sm:$0xff]
    %v81 = vld [vmem:[#allocation3 + $0xf0] sm:$0xff]
    %v82 = vld [vmem:[#allocation3 + $0xf8] sm:$0xff]
    %v83 = vld [vmem:[#allocation3 + $0x100] sm:$0xff]
    %v84 = vld [vmem:[#allocation3 + $0x108] sm:$0xff]
    %v85 = vld [vmem:[#allocation3 + $0x110] sm:$0xff]
    %v86 = vld [vmem:[#allocation3 + $0x118] sm:$0xff]
    %v87 = vld [vmem:[#allocation3 + $0x120] sm:$0xff]
    %v88 = vld [vmem:[#allocation3 + $0x128] sm:$0xff]
    %v89 = vld [vmem:[#allocation3 + $0x130] sm:$0xff]
    %v90 = vld [vmem:[#allocation3 + $0x138] sm:$0xff]
    %v91 = vld [vmem:[#allocation3 + $0x140] sm:$0xff]
    %v92 = vld [vmem:[#allocation3 + $0x148] sm:$0xff]
    %v93 = vld [vmem:[#allocation3 + $0x150] sm:$0xff]
    %v94 = vld [vmem:[#allocation3 + $0x158] sm:$0xff]
    %v95 = vld [vmem:[#allocation3 + $0x160] sm:$0xff]
    %v96 = vld [vmem:[#allocation3 + $0x168] sm:$0xff]
    %v97 = vld [vmem:[#allocation3 + $0x170] sm:$0xff]
    %v98 = vld [vmem:[#allocation3 + $0x178] sm:$0xff]
    %v99 = vld [vmem:[#allocation3 + $0x180] sm:$0xff]
    %v100 = vld [vmem:[#allocation3 + $0x188] sm:$0xff]
    %v101 = vld [vmem:[#allocation3 + $0x190] sm:$0xff]
    %v102 = vld [vmem:[#allocation3 + $0x198] sm:$0xff]
    %v103 = vld [vmem:[#allocation3 + $0x1a0] sm:$0xff]
    %v104 = vld [vmem:[#allocation3 + $0x1a8] sm:$0xff]
    %v105 = vld [vmem:[#allocation3 + $0x1b0] sm:$0xff]
    %v106 = vld [vmem:[#allocation3 + $0x1b8] sm:$0xff]
    %v107 = vld [vmem:[#allocation3 + $0x1c0] sm:$0xff]
    %v108 = vld [vmem:[#allocation3 + $0x1c8] sm:$0xff]
    %v109 = vld [vmem:[#allocation3 + $0x1d0] sm:$0xff]
    %v110 = vld [vmem:[#allocation3 + $0x1d8] sm:$0xff]
    %v111 = vld [vmem:[#allocation3 + $0x1e0] sm:$0xff]
    %v112 = vld [vmem:[#allocation3 + $0x1e8] sm:$0xff]
    %v113 = vld [vmem:[#allocation3 + $0x1f0] sm:$0xff]
    %v114 = vld [vmem:[#allocation3 + $0x1f8] sm:$0xff]
    %v115 = vld [vmem:[#allocation6] ss:$4 sm:$0xf]
    %v117 = vperm.slane %v115, 0
    %v118 = vperm.slane %v115, 1
    %v119 = vperm.slane %v115, 2
    %v120 = vperm.slane %v115, 3
    %125 = vmatpush.msra.mxu0 %v111
    %126 = vmatpush.msra.mxu0 %v107
    %127 = vmatpush.msra.mxu0 %v103
    %128 = vmatpush.msra.mxu0 %v99
    %129 = vmatpush.msra.mxu0 %v95
    %130 = vmatpush.msra.mxu0 %v91
    %131 = vmatpush.msra.mxu0 %v87
    %132 = vmatpush.msra.mxu0 %v83
    %133 = vmatpush.msra.mxu0 %v79
    %134 = vmatpush.msra.mxu0 %v75
    %135 = vmatpush.msra.mxu0 %v71
    %136 = vmatpush.msra.mxu0 %v67
    %137 = vmatpush.msra.mxu0 %v63
    %138 = vmatpush.msra.mxu0 %v59
    %139 = vmatpush.msra.mxu0 %v55
    %140 = vmatpush.msra.mxu0 %v51
    %141 = vmatmul.f32.gmra.mxu0 %v50
    %v142 = vpop.f32.mrf.mxu0
    %v143 = vadd.f32 %v117, %v142
    %144 = vdwg.mxu0
    %145 = vmatpush.msra.mxu0 %v112
    %146 = vmatpush.msra.mxu0 %v108
    %147 = vmatpush.msra.mxu0 %v104
    %148 = vmatpush.msra.mxu0 %v100
    %149 = vmatpush.msra.mxu0 %v96
    %150 = vmatpush.msra.mxu0 %v92
    %151 = vmatpush.msra.mxu0 %v88
    %152 = vmatpush.msra.mxu0 %v84
    %153 = vmatpush.msra.mxu0 %v80
    %154 = vmatpush.msra.mxu0 %v76
    %155 = vmatpush.msra.mxu0 %v72
    %156 = vmatpush.msra.mxu0 %v68
    %157 = vmatpush.msra.mxu0 %v64
    %158 = vmatpush.msra.mxu0 %v60
    %159 = vmatpush.msra.mxu0 %v56
    %160 = vmatpush.msra.mxu0 %v52
    %161 = vmatmul.f32.gmra.mxu0 %v50
    %v162 = vpop.f32.mrf.mxu0
    %v163 = vadd.f32 %v118, %v162
    %164 = vdwg.mxu0
    %165 = vmatpush.msra.mxu0 %v113
    %166 = vmatpush.msra.mxu0 %v109
    %167 = vmatpush.msra.mxu0 %v105
    %168 = vmatpush.msra.mxu0 %v101
    %169 = vmatpush.msra.mxu0 %v97
    %170 = vmatpush.msra.mxu0 %v93
    %171 = vmatpush.msra.mxu0 %v89
    %172 = vmatpush.msra.mxu0 %v85
    %173 = vmatpush.msra.mxu0 %v81
    %174 = vmatpush.msra.mxu0 %v77
    %175 = vmatpush.msra.mxu0 %v73
    %176 = vmatpush.msra.mxu0 %v69
    %177 = vmatpush.msra.mxu0 %v65
    %178 = vmatpush.msra.mxu0 %v61
    %179 = vmatpush.msra.mxu0 %v57
    %180 = vmatpush.msra.mxu0 %v53
    %181 = vmatmul.f32.gmra.mxu0 %v50
    %v182 = vpop.f32.mrf.mxu0
    %v183 = vadd.f32 %v119, %v182
    %184 = vdwg.mxu0
    %185 = vmatpush.msra.mxu0 %v114
    %186 = vmatpush.msra.mxu0 %v110
    %187 = vmatpush.msra.mxu0 %v106
    %188 = vmatpush.msra.mxu0 %v102
    %189 = vmatpush.msra.mxu0 %v98
    %190 = vmatpush.msra.mxu0 %v94
    %191 = vmatpush.msra.mxu0 %v90
    %192 = vmatpush.msra.mxu0 %v86
    %193 = vmatpush.msra.mxu0 %v82
    %194 = vmatpush.msra.mxu0 %v78
    %195 = vmatpush.msra.mxu0 %v74
    %196 = vmatpush.msra.mxu0 %v70
    %197 = vmatpush.msra.mxu0 %v66
    %198 = vmatpush.msra.mxu0 %v62
    %199 = vmatpush.msra.mxu0 %v58
    %200 = vmatpush.msra.mxu0 %v54
    %201 = vmatmul.f32.gmra.mxu0 %v50
    %v202 = vpop.f32.mrf.mxu0
    %v203 = vadd.f32 %v120, %v202
    %204 = vdwg.mxu0
    %205 = vst [vmem:[#allocation2] sm:$0xff] %v143
    %206 = vst [vmem:[#allocation2 + $0x8] sm:$0xff] %v163
    %207 = vst [vmem:[#allocation2 + $0x10] sm:$0xff] %v183
    %208 = vst [vmem:[#allocation2 + $0x18] sm:$0xff] %v203
    %v209 = vld [vmem:[%s1] sm:$0x1]
    %s210 = scalar_lea.vmem %s1, 1
    %v211 = vld [vmem:[%s210] sm:$0x1]
    %s212 = scalar_lea.vmem %s1, 2
    %v213 = vld [vmem:[%s212] sm:$0x1]
    %s214 = scalar_lea.vmem %s1, 3
    %v215 = vld [vmem:[%s214] sm:$0x1]
    %v216 = vld [vmem:[#allocation2] ss:$8 sm:$0xf]
    %v217 = vld [vmem:[#allocation3 + $0x200] sm:$0xff]
    %v218 = vld [vmem:[#allocation3 + $0x208] sm:$0xff]
    %v219 = vld [vmem:[#allocation3 + $0x210] sm:$0xff]
    %v220 = vld [vmem:[#allocation3 + $0x218] sm:$0xff]
    %v221 = vld [vmem:[#allocation3 + $0x220] sm:$0xff]
    %v222 = vld [vmem:[#allocation3 + $0x228] sm:$0xff]
    %v223 = vld [vmem:[#allocation3 + $0x230] sm:$0xff]
    %v224 = vld [vmem:[#allocation3 + $0x238] sm:$0xff]
    %v225 = vld [vmem:[#allocation3 + $0x240] sm:$0xff]
    %v226 = vld [vmem:[#allocation3 + $0x248] sm:$0xff]
    %v227 = vld [vmem:[#allocation3 + $0x250] sm:$0xff]
    %v228 = vld [vmem:[#allocation3 + $0x258] sm:$0xff]
    %v229 = vld [vmem:[#allocation3 + $0x260] sm:$0xff]
    %v230 = vld [vmem:[#allocation3 + $0x268] sm:$0xff]
    %v231 = vld [vmem:[#allocation3 + $0x270] sm:$0xff]
    %v232 = vld [vmem:[#allocation3 + $0x278] sm:$0xff]
    %v233 = vld [vmem:[#allocation3 + $0x280] sm:$0xff]
    %v234 = vld [vmem:[#allocation3 + $0x288] sm:$0xff]
    %v235 = vld [vmem:[#allocation3 + $0x290] sm:$0xff]
    %v236 = vld [vmem:[#allocation3 + $0x298] sm:$0xff]
    %v237 = vld [vmem:[#allocation3 + $0x2a0] sm:$0xff]
    %v238 = vld [vmem:[#allocation3 + $0x2a8] sm:$0xff]
    %v239 = vld [vmem:[#allocation3 + $0x2b0] sm:$0xff]
    %v240 = vld [vmem:[#allocation3 + $0x2b8] sm:$0xff]
    %v241 = vld [vmem:[#allocation3 + $0x2c0] sm:$0xff]
    %v242 = vld [vmem:[#allocation3 + $0x2c8] sm:$0xff]
    %v243 = vld [vmem:[#allocation3 + $0x2d0] sm:$0xff]
    %v244 = vld [vmem:[#allocation3 + $0x2d8] sm:$0xff]
    %v245 = vld [vmem:[#allocation3 + $0x2e0] sm:$0xff]
    %v246 = vld [vmem:[#allocation3 + $0x2e8] sm:$0xff]
    %v247 = vld [vmem:[#allocation3 + $0x2f0] sm:$0xff]
    %v248 = vld [vmem:[#allocation3 + $0x2f8] sm:$0xff]
    %v249 = vld [vmem:[#allocation3 + $0x300] sm:$0xff]
    %v250 = vld [vmem:[#allocation3 + $0x308] sm:$0xff]
    %v251 = vld [vmem:[#allocation3 + $0x310] sm:$0xff]
    %v252 = vld [vmem:[#allocation3 + $0x318] sm:$0xff]
    %v253 = vld [vmem:[#allocation3 + $0x320] sm:$0xff]
    %v254 = vld [vmem:[#allocation3 + $0x328] sm:$0xff]
    %v255 = vld [vmem:[#allocation3 + $0x330] sm:$0xff]
    %v256 = vld [vmem:[#allocation3 + $0x338] sm:$0xff]
    %v257 = vld [vmem:[#allocation3 + $0x340] sm:$0xff]
    %v258 = vld [vmem:[#allocation3 + $0x348] sm:$0xff]
    %v259 = vld [vmem:[#allocation3 + $0x350] sm:$0xff]
    %v260 = vld [vmem:[#allocation3 + $0x358] sm:$0xff]
    %v261 = vld [vmem:[#allocation3 + $0x360] sm:$0xff]
    %v262 = vld [vmem:[#allocation3 + $0x368] sm:$0xff]
    %v263 = vld [vmem:[#allocation3 + $0x370] sm:$0xff]
    %v264 = vld [vmem:[#allocation3 + $0x378] sm:$0xff]
    %v265 = vld [vmem:[#allocation3 + $0x380] sm:$0xff]
    %v266 = vld [vmem:[#allocation3 + $0x388] sm:$0xff]
    %v267 = vld [vmem:[#allocation3 + $0x390] sm:$0xff]
    %v268 = vld [vmem:[#allocation3 + $0x398] sm:$0xff]
    %v269 = vld [vmem:[#allocation3 + $0x3a0] sm:$0xff]
    %v270 = vld [vmem:[#allocation3 + $0x3a8] sm:$0xff]
    %v271 = vld [vmem:[#allocation3 + $0x3b0] sm:$0xff]
    %v272 = vld [vmem:[#allocation3 + $0x3b8] sm:$0xff]
    %v273 = vld [vmem:[#allocation3 + $0x3c0] sm:$0xff]
    %v274 = vld [vmem:[#allocation3 + $0x3c8] sm:$0xff]
    %v275 = vld [vmem:[#allocation3 + $0x3d0] sm:$0xff]
    %v276 = vld [vmem:[#allocation3 + $0x3d8] sm:$0xff]
    %v277 = vld [vmem:[#allocation3 + $0x3e0] sm:$0xff]
    %v278 = vld [vmem:[#allocation3 + $0x3e8] sm:$0xff]
    %v279 = vld [vmem:[#allocation3 + $0x3f0] sm:$0xff]
    %v280 = vld [vmem:[#allocation3 + $0x3f8] sm:$0xff]
    %281 = vmatpush.msra.mxu0 %v277
    %282 = vmatpush.msra.mxu0 %v273
    %283 = vmatpush.msra.mxu0 %v269
    %284 = vmatpush.msra.mxu0 %v265
    %285 = vmatpush.msra.mxu0 %v261
    %286 = vmatpush.msra.mxu0 %v257
    %287 = vmatpush.msra.mxu0 %v253
    %288 = vmatpush.msra.mxu0 %v249
    %289 = vmatpush.msra.mxu0 %v245
    %290 = vmatpush.msra.mxu0 %v241
    %291 = vmatpush.msra.mxu0 %v237
    %292 = vmatpush.msra.mxu0 %v233
    %293 = vmatpush.msra.mxu0 %v229
    %294 = vmatpush.msra.mxu0 %v225
    %295 = vmatpush.msra.mxu0 %v221
    %296 = vmatpush.msra.mxu0 %v217
    %297 = vmatmul.f32.gmra.mxu0 %v209
    %v298 = vpop.f32.mrf.mxu0
    %v299 = vadd.f32 0.0, %v298
    %300 = vdwg.mxu0
    %301 = vmatpush.msra.mxu0 %v278
    %302 = vmatpush.msra.mxu0 %v274
    %303 = vmatpush.msra.mxu0 %v270
    %304 = vmatpush.msra.mxu0 %v266
    %305 = vmatpush.msra.mxu0 %v262
    %306 = vmatpush.msra.mxu0 %v258
    %307 = vmatpush.msra.mxu0 %v254
    %308 = vmatpush.msra.mxu0 %v250
    %309 = vmatpush.msra.mxu0 %v246
    %310 = vmatpush.msra.mxu0 %v242
    %311 = vmatpush.msra.mxu0 %v238
    %312 = vmatpush.msra.mxu0 %v234
    %313 = vmatpush.msra.mxu0 %v230
    %314 = vmatpush.msra.mxu0 %v226
    %315 = vmatpush.msra.mxu0 %v222
    %316 = vmatpush.msra.mxu0 %v218
    %317 = vmatmul.f32.gmra.mxu0 %v209
    %v318 = vpop.f32.mrf.mxu0
    %v319 = vadd.f32 0.0, %v318
    %320 = vdwg.mxu0
    %321 = vmatpush.msra.mxu0 %v279
    %322 = vmatpush.msra.mxu0 %v275
    %323 = vmatpush.msra.mxu0 %v271
    %324 = vmatpush.msra.mxu0 %v267
    %325 = vmatpush.msra.mxu0 %v263
    %326 = vmatpush.msra.mxu0 %v259
    %327 = vmatpush.msra.mxu0 %v255
    %328 = vmatpush.msra.mxu0 %v251
    %329 = vmatpush.msra.mxu0 %v247
    %330 = vmatpush.msra.mxu0 %v243
    %331 = vmatpush.msra.mxu0 %v239
    %332 = vmatpush.msra.mxu0 %v235
    %333 = vmatpush.msra.mxu0 %v231
    %334 = vmatpush.msra.mxu0 %v227
    %335 = vmatpush.msra.mxu0 %v223
    %336 = vmatpush.msra.mxu0 %v219
    %337 = vmatmul.f32.gmra.mxu0 %v209
    %v338 = vpop.f32.mrf.mxu0
    %v339 = vadd.f32 0.0, %v338
    %340 = vdwg.mxu0
    %341 = vmatpush.msra.mxu0 %v280
    %342 = vmatpush.msra.mxu0 %v276
    %343 = vmatpush.msra.mxu0 %v272
    %344 = vmatpush.msra.mxu0 %v268
    %345 = vmatpush.msra.mxu0 %v264
    %346 = vmatpush.msra.mxu0 %v260
    %347 = vmatpush.msra.mxu0 %v256
    %348 = vmatpush.msra.mxu0 %v252
    %349 = vmatpush.msra.mxu0 %v248
    %350 = vmatpush.msra.mxu0 %v244
    %351 = vmatpush.msra.mxu0 %v240
    %352 = vmatpush.msra.mxu0 %v236
    %353 = vmatpush.msra.mxu0 %v232
    %354 = vmatpush.msra.mxu0 %v228
    %355 = vmatpush.msra.mxu0 %v224
    %356 = vmatpush.msra.mxu0 %v220
    %357 = vmatmul.f32.gmra.mxu0 %v209
    %v358 = vpop.f32.mrf.mxu0
    %v359 = vadd.f32 0.0, %v358
    %360 = vdwg.mxu0
    %v365 = vrot.slane %v319, 7
    %v366 = vrot.slane %v339, 6
    %v367 = vrot.slane %v359, 5
    %vm368 = vcmask 1040384
    %v369 = vsel %vm368, %v299, %v365
    %vm370 = vcmask 1042434
    %v371 = vsel %vm370, %v366, %v367
    %vm372 = vcmask 1041408
    %v373 = vsel %vm372, %v369, %v371
    %v375 = vadd.f32 %v216, %v373
    %v376 = vtanh.pop %v375
    %v377 = vadd.f32 %v376, 1.0
    %v378 = vmul.f32 %v377, 0.5
    %v380 = vrot.slane %v376, 1
    %v382 = vadd.f32 %v380, 1.0
    %v383 = vmul.f32 %v382, 0.5
    %v384 = vrot.slane %v376, 2
    %v386 = vadd.f32 %v384, 1.0
    %v387 = vmul.f32 %v386, 0.5
    %v388 = vmul.f32 %v383, %v213
    %v389 = vrot.slane %v376, 3
    %v391 = vmul.f32 %v378, %v389
    %v392 = vadd.f32 %v388, %v391
    %v393 = vtanh.pop %v392
    %v394 = vmul.f32 %v387, %v393
    %v395 = vld [vmem:[#allocation3 + $0x400] sm:$0xff]
    %v396 = vld [vmem:[#allocation3 + $0x408] sm:$0xff]
    %v397 = vld [vmem:[#allocation3 + $0x410] sm:$0xff]
    %v398 = vld [vmem:[#allocation3 + $0x418] sm:$0xff]
    %v399 = vld [vmem:[#allocation3 + $0x420] sm:$0xff]
    %v400 = vld [vmem:[#allocation3 + $0x428] sm:$0xff]
    %v401 = vld [vmem:[#allocation3 + $0x430] sm:$0xff]
    %v402 = vld [vmem:[#allocation3 + $0x438] sm:$0xff]
    %v403 = vld [vmem:[#allocation3 + $0x440] sm:$0xff]
    %v404 = vld [vmem:[#allocation3 + $0x448] sm:$0xff]
    %v405 = vld [vmem:[#allocation3 + $0x450] sm:$0xff]
    %v406 = vld [vmem:[#allocation3 + $0x458] sm:$0xff]
    %v407 = vld [vmem:[#allocation3 + $0x460] sm:$0xff]
    %v408 = vld [vmem:[#allocation3 + $0x468] sm:$0xff]
    %v409 = vld [vmem:[#allocation3 + $0x470] sm:$0xff]
    %v410 = vld [vmem:[#allocation3 + $0x478] sm:$0xff]
    %v411 = vld [vmem:[#allocation3 + $0x480] sm:$0xff]
    %v412 = vld [vmem:[#allocation3 + $0x488] sm:$0xff]
    %v413 = vld [vmem:[#allocation3 + $0x490] sm:$0xff]
    %v414 = vld [vmem:[#allocation3 + $0x498] sm:$0xff]
    %v415 = vld [vmem:[#allocation3 + $0x4a0] sm:$0xff]
    %v416 = vld [vmem:[#allocation3 + $0x4a8] sm:$0xff]
    %v417 = vld [vmem:[#allocation3 + $0x4b0] sm:$0xff]
    %v418 = vld [vmem:[#allocation3 + $0x4b8] sm:$0xff]
    %v419 = vld [vmem:[#allocation3 + $0x4c0] sm:$0xff]
    %v420 = vld [vmem:[#allocation3 + $0x4c8] sm:$0xff]
    %v421 = vld [vmem:[#allocation3 + $0x4d0] sm:$0xff]
    %v422 = vld [vmem:[#allocation3 + $0x4d8] sm:$0xff]
    %v423 = vld [vmem:[#allocation3 + $0x4e0] sm:$0xff]
    %v424 = vld [vmem:[#allocation3 + $0x4e8] sm:$0xff]
    %v425 = vld [vmem:[#allocation3 + $0x4f0] sm:$0xff]
    %v426 = vld [vmem:[#allocation3 + $0x4f8] sm:$0xff]
    %v427 = vld [vmem:[#allocation3 + $0x500] sm:$0xff]
    %v428 = vld [vmem:[#allocation3 + $0x508] sm:$0xff]
    %v429 = vld [vmem:[#allocation3 + $0x510] sm:$0xff]
    %v430 = vld [vmem:[#allocation3 + $0x518] sm:$0xff]
    %v431 = vld [vmem:[#allocation3 + $0x520] sm:$0xff]
    %v432 = vld [vmem:[#allocation3 + $0x528] sm:$0xff]
    %v433 = vld [vmem:[#allocation3 + $0x530] sm:$0xff]
    %v434 = vld [vmem:[#allocation3 + $0x538] sm:$0xff]
    %v435 = vld [vmem:[#allocation3 + $0x540] sm:$0xff]
    %v436 = vld [vmem:[#allocation3 + $0x548] sm:$0xff]
    %v437 = vld [vmem:[#allocation3 + $0x550] sm:$0xff]
    %v438 = vld [vmem:[#allocation3 + $0x558] sm:$0xff]
    %v439 = vld [vmem:[#allocation3 + $0x560] sm:$0xff]
    %v440 = vld [vmem:[#allocation3 + $0x568] sm:$0xff]
    %v441 = vld [vmem:[#allocation3 + $0x570] sm:$0xff]
    %v442 = vld [vmem:[#allocation3 + $0x578] sm:$0xff]
    %v443 = vld [vmem:[#allocation3 + $0x580] sm:$0xff]
    %v444 = vld [vmem:[#allocation3 + $0x588] sm:$0xff]
    %v445 = vld [vmem:[#allocation3 + $0x590] sm:$0xff]
    %v446 = vld [vmem:[#allocation3 + $0x598] sm:$0xff]
    %v447 = vld [vmem:[#allocation3 + $0x5a0] sm:$0xff]
    %v448 = vld [vmem:[#allocation3 + $0x5a8] sm:$0xff]
    %v449 = vld [vmem:[#allocation3 + $0x5b0] sm:$0xff]
    %v450 = vld [vmem:[#allocation3 + $0x5b8] sm:$0xff]
    %v451 = vld [vmem:[#allocation3 + $0x5c0] sm:$0xff]
    %v452 = vld [vmem:[#allocation3 + $0x5c8] sm:$0xff]
    %v453 = vld [vmem:[#allocation3 + $0x5d0] sm:$0xff]
    %v454 = vld [vmem:[#allocation3 + $0x5d8] sm:$0xff]
    %v455 = vld [vmem:[#allocation3 + $0x5e0] sm:$0xff]
    %v456 = vld [vmem:[#allocation3 + $0x5e8] sm:$0xff]
    %v457 = vld [vmem:[#allocation3 + $0x5f0] sm:$0xff]
    %v458 = vld [vmem:[#allocation3 + $0x5f8] sm:$0xff]
    %v459 = vld [vmem:[#allocation3 + $0x600] sm:$0xff]
    %v460 = vld [vmem:[#allocation3 + $0x608] sm:$0xff]
    %v461 = vld [vmem:[#allocation3 + $0x610] sm:$0xff]
    %v462 = vld [vmem:[#allocation3 + $0x618] sm:$0xff]
    %v463 = vld [vmem:[#allocation3 + $0x620] sm:$0xff]
    %v464 = vld [vmem:[#allocation3 + $0x628] sm:$0xff]
    %v465 = vld [vmem:[#allocation3 + $0x630] sm:$0xff]
    %v466 = vld [vmem:[#allocation3 + $0x638] sm:$0xff]
    %v467 = vld [vmem:[#allocation3 + $0x640] sm:$0xff]
    %v468 = vld [vmem:[#allocation3 + $0x648] sm:$0xff]
    %v469 = vld [vmem:[#allocation3 + $0x650] sm:$0xff]
    %v470 = vld [vmem:[#allocation3 + $0x658] sm:$0xff]
    %v471 = vld [vmem:[#allocation3 + $0x660] sm:$0xff]
    %v472 = vld [vmem:[#allocation3 + $0x668] sm:$0xff]
    %v473 = vld [vmem:[#allocation3 + $0x670] sm:$0xff]
    %v474 = vld [vmem:[#allocation3 + $0x678] sm:$0xff]
    %v475 = vld [vmem:[#allocation3 + $0x680] sm:$0xff]
    %v476 = vld [vmem:[#allocation3 + $0x688] sm:$0xff]
    %v477 = vld [vmem:[#allocation3 + $0x690] sm:$0xff]
    %v478 = vld [vmem:[#allocation3 + $0x698] sm:$0xff]
    %v479 = vld [vmem:[#allocation3 + $0x6a0] sm:$0xff]
    %v480 = vld [vmem:[#allocation3 + $0x6a8] sm:$0xff]
    %v481 = vld [vmem:[#allocation3 + $0x6b0] sm:$0xff]
    %v482 = vld [vmem:[#allocation3 + $0x6b8] sm:$0xff]
    %v483 = vld [vmem:[#allocation3 + $0x6c0] sm:$0xff]
    %v484 = vld [vmem:[#allocation3 + $0x6c8] sm:$0xff]
    %v485 = vld [vmem:[#allocation3 + $0x6d0] sm:$0xff]
    %v486 = vld [vmem:[#allocation3 + $0x6d8] sm:$0xff]
    %v487 = vld [vmem:[#allocation3 + $0x6e0] sm:$0xff]
    %v488 = vld [vmem:[#allocation3 + $0x6e8] sm:$0xff]
    %v489 = vld [vmem:[#allocation3 + $0x6f0] sm:$0xff]
    %v490 = vld [vmem:[#allocation3 + $0x6f8] sm:$0xff]
    %v491 = vld [vmem:[#allocation3 + $0x700] sm:$0xff]
    %v492 = vld [vmem:[#allocation3 + $0x708] sm:$0xff]
    %v493 = vld [vmem:[#allocation3 + $0x710] sm:$0xff]
    %v494 = vld [vmem:[#allocation3 + $0x718] sm:$0xff]
    %v495 = vld [vmem:[#allocation3 + $0x720] sm:$0xff]
    %v496 = vld [vmem:[#allocation3 + $0x728] sm:$0xff]
    %v497 = vld [vmem:[#allocation3 + $0x730] sm:$0xff]
    %v498 = vld [vmem:[#allocation3 + $0x738] sm:$0xff]
    %v499 = vld [vmem:[#allocation3 + $0x740] sm:$0xff]
    %v500 = vld [vmem:[#allocation3 + $0x748] sm:$0xff]
    %v501 = vld [vmem:[#allocation3 + $0x750] sm:$0xff]
    %v502 = vld [vmem:[#allocation3 + $0x758] sm:$0xff]
    %v503 = vld [vmem:[#allocation3 + $0x760] sm:$0xff]
    %v504 = vld [vmem:[#allocation3 + $0x768] sm:$0xff]
    %v505 = vld [vmem:[#allocation3 + $0x770] sm:$0xff]
    %v506 = vld [vmem:[#allocation3 + $0x778] sm:$0xff]
    %v507 = vld [vmem:[#allocation3 + $0x780] sm:$0xff]
    %v508 = vld [vmem:[#allocation3 + $0x788] sm:$0xff]
    %v509 = vld [vmem:[#allocation3 + $0x790] sm:$0xff]
    %v510 = vld [vmem:[#allocation3 + $0x798] sm:$0xff]
    %v511 = vld [vmem:[#allocation3 + $0x7a0] sm:$0xff]
    %v512 = vld [vmem:[#allocation3 + $0x7a8] sm:$0xff]
    %v513 = vld [vmem:[#allocation3 + $0x7b0] sm:$0xff]
    %v514 = vld [vmem:[#allocation3 + $0x7b8] sm:$0xff]
    %v515 = vld [vmem:[#allocation3 + $0x7c0] sm:$0xff]
    %v516 = vld [vmem:[#allocation3 + $0x7c8] sm:$0xff]
    %v517 = vld [vmem:[#allocation3 + $0x7d0] sm:$0xff]
    %v518 = vld [vmem:[#allocation3 + $0x7d8] sm:$0xff]
    %v519 = vld [vmem:[#allocation3 + $0x7e0] sm:$0xff]
    %v520 = vld [vmem:[#allocation3 + $0x7e8] sm:$0xff]
    %v521 = vld [vmem:[#allocation3 + $0x7f0] sm:$0xff]
    %v522 = vld [vmem:[#allocation3 + $0x7f8] sm:$0xff]
    %s523 = scalar_lea.vmem [#allocation6], 1
    %v524 = vld [vmem:[%s523] ss:$4 sm:$0xf]
    %v526 = vperm.slane %v524, 0
    %v527 = vperm.slane %v524, 1
    %v528 = vperm.slane %v524, 2
    %v529 = vperm.slane %v524, 3
    %534 = vmatpush.msra.mxu0 %v455
    %535 = vmatpush.msra.mxu0 %v451
    %536 = vmatpush.msra.mxu0 %v447
    %537 = vmatpush.msra.mxu0 %v443
    %538 = vmatpush.msra.mxu0 %v439
    %539 = vmatpush.msra.mxu0 %v435
    %540 = vmatpush.msra.mxu0 %v431
    %541 = vmatpush.msra.mxu0 %v427
    %542 = vmatpush.msra.mxu0 %v423
    %543 = vmatpush.msra.mxu0 %v419
    %544 = vmatpush.msra.mxu0 %v415
    %545 = vmatpush.msra.mxu0 %v411
    %546 = vmatpush.msra.mxu0 %v407
    %547 = vmatpush.msra.mxu0 %v403
    %548 = vmatpush.msra.mxu0 %v399
    %549 = vmatpush.msra.mxu0 %v395
    %550 = vmatmul.f32.gmra.mxu0 %v394
    %v551 = vpop.f32.mrf.mxu0
    %v552 = vadd.f32 %v526, %v551
    %553 = vdwg.mxu0
    %554 = vmatpush.msra.mxu0 %v519
    %555 = vmatpush.msra.mxu0 %v515
    %556 = vmatpush.msra.mxu0 %v511
    %557 = vmatpush.msra.mxu0 %v507
    %558 = vmatpush.msra.mxu0 %v503
    %559 = vmatpush.msra.mxu0 %v499
    %560 = vmatpush.msra.mxu0 %v495
    %561 = vmatpush.msra.mxu0 %v491
    %562 = vmatpush.msra.mxu0 %v487
    %563 = vmatpush.msra.mxu0 %v483
    %564 = vmatpush.msra.mxu0 %v479
    %565 = vmatpush.msra.mxu0 %v475
    %566 = vmatpush.msra.mxu0 %v471
    %567 = vmatpush.msra.mxu0 %v467
    %568 = vmatpush.msra.mxu0 %v463
    %569 = vmatpush.msra.mxu0 %v459
    %570 = vmatmul.f32.gmra.mxu0 %v211
    %v571 = vpop.f32.mrf.mxu0
    %v572 = vadd.f32 %v552, %v571
    %573 = vdwg.mxu0
    %574 = vmatpush.msra.mxu0 %v456
    %575 = vmatpush.msra.mxu0 %v452
    %576 = vmatpush.msra.mxu0 %v448
    %577 = vmatpush.msra.mxu0 %v444
    %578 = vmatpush.msra.mxu0 %v440
    %579 = vmatpush.msra.mxu0 %v436
    %580 = vmatpush.msra.mxu0 %v432
    %581 = vmatpush.msra.mxu0 %v428
    %582 = vmatpush.msra.mxu0 %v424
    %583 = vmatpush.msra.mxu0 %v420
    %584 = vmatpush.msra.mxu0 %v416
    %585 = vmatpush.msra.mxu0 %v412
    %586 = vmatpush.msra.mxu0 %v408
    %587 = vmatpush.msra.mxu0 %v404
    %588 = vmatpush.msra.mxu0 %v400
    %589 = vmatpush.msra.mxu0 %v396
    %590 = vmatmul.f32.gmra.mxu0 %v394
    %v591 = vpop.f32.mrf.mxu0
    %v592 = vadd.f32 %v527, %v591
    %593 = vdwg.mxu0
    %594 = vmatpush.msra.mxu0 %v520
    %595 = vmatpush.msra.mxu0 %v516
    %596 = vmatpush.msra.mxu0 %v512
    %597 = vmatpush.msra.mxu0 %v508
    %598 = vmatpush.msra.mxu0 %v504
    %599 = vmatpush.msra.mxu0 %v500
    %600 = vmatpush.msra.mxu0 %v496
    %601 = vmatpush.msra.mxu0 %v492
    %602 = vmatpush.msra.mxu0 %v488
    %603 = vmatpush.msra.mxu0 %v484
    %604 = vmatpush.msra.mxu0 %v480
    %605 = vmatpush.msra.mxu0 %v476
    %606 = vmatpush.msra.mxu0 %v472
    %607 = vmatpush.msra.mxu0 %v468
    %608 = vmatpush.msra.mxu0 %v464
    %609 = vmatpush.msra.mxu0 %v460
    %610 = vmatmul.f32.gmra.mxu0 %v211
    %v611 = vpop.f32.mrf.mxu0
    %v612 = vadd.f32 %v592, %v611
    %613 = vdwg.mxu0
    %614 = vmatpush.msra.mxu0 %v457
    %615 = vmatpush.msra.mxu0 %v453
    %616 = vmatpush.msra.mxu0 %v449
    %617 = vmatpush.msra.mxu0 %v445
    %618 = vmatpush.msra.mxu0 %v441
    %619 = vmatpush.msra.mxu0 %v437
    %620 = vmatpush.msra.mxu0 %v433
    %621 = vmatpush.msra.mxu0 %v429
    %622 = vmatpush.msra.mxu0 %v425
    %623 = vmatpush.msra.mxu0 %v421
    %624 = vmatpush.msra.mxu0 %v417
    %625 = vmatpush.msra.mxu0 %v413
    %626 = vmatpush.msra.mxu0 %v409
    %627 = vmatpush.msra.mxu0 %v405
    %628 = vmatpush.msra.mxu0 %v401
    %629 = vmatpush.msra.mxu0 %v397
    %630 = vmatmul.f32.gmra.mxu0 %v394
    %v631 = vpop.f32.mrf.mxu0
    %v632 = vadd.f32 %v528, %v631
    %633 = vdwg.mxu0
    %634 = vmatpush.msra.mxu0 %v521
    %635 = vmatpush.msra.mxu0 %v517
    %636 = vmatpush.msra.mxu0 %v513
    %637 = vmatpush.msra.mxu0 %v509
    %638 = vmatpush.msra.mxu0 %v505
    %639 = vmatpush.msra.mxu0 %v501
    %640 = vmatpush.msra.mxu0 %v497
    %641 = vmatpush.msra.mxu0 %v493
    %642 = vmatpush.msra.mxu0 %v489
    %643 = vmatpush.msra.mxu0 %v485
    %644 = vmatpush.msra.mxu0 %v481
    %645 = vmatpush.msra.mxu0 %v477
    %646 = vmatpush.msra.mxu0 %v473
    %647 = vmatpush.msra.mxu0 %v469
    %648 = vmatpush.msra.mxu0 %v465
    %649 = vmatpush.msra.mxu0 %v461
    %650 = vmatmul.f32.gmra.mxu0 %v211
    %v651 = vpop.f32.mrf.mxu0
    %v652 = vadd.f32 %v632, %v651
    %653 = vdwg.mxu0
    %654 = vmatpush.msra.mxu0 %v458
    %655 = vmatpush.msra.mxu0 %v454
    %656 = vmatpush.msra.mxu0 %v450
    %657 = vmatpush.msra.mxu0 %v446
    %658 = vmatpush.msra.mxu0 %v442
    %659 = vmatpush.msra.mxu0 %v438
    %660 = vmatpush.msra.mxu0 %v434
    %661 = vmatpush.msra.mxu0 %v430
    %662 = vmatpush.msra.mxu0 %v426
    %663 = vmatpush.msra.mxu0 %v422
    %664 = vmatpush.msra.mxu0 %v418
    %665 = vmatpush.msra.mxu0 %v414
    %666 = vmatpush.msra.mxu0 %v410
    %667 = vmatpush.msra.mxu0 %v406
    %668 = vmatpush.msra.mxu0 %v402
    %669 = vmatpush.msra.mxu0 %v398
    %670 = vmatmul.f32.gmra.mxu0 %v394
    %v671 = vpop.f32.mrf.mxu0
    %v672 = vadd.f32 %v529, %v671
    %673 = vdwg.mxu0
    %674 = vmatpush.msra.mxu0 %v522
    %675 = vmatpush.msra.mxu0 %v518
    %676 = vmatpush.msra.mxu0 %v514
    %677 = vmatpush.msra.mxu0 %v510
    %678 = vmatpush.msra.mxu0 %v506
    %679 = vmatpush.msra.mxu0 %v502
    %680 = vmatpush.msra.mxu0 %v498
    %681 = vmatpush.msra.mxu0 %v494
    %682 = vmatpush.msra.mxu0 %v490
    %683 = vmatpush.msra.mxu0 %v486
    %684 = vmatpush.msra.mxu0 %v482
    %685 = vmatpush.msra.mxu0 %v478
    %686 = vmatpush.msra.mxu0 %v474
    %687 = vmatpush.msra.mxu0 %v470
    %688 = vmatpush.msra.mxu0 %v466
    %689 = vmatpush.msra.mxu0 %v462
    %690 = vmatmul.f32.gmra.mxu0 %v211
    %v691 = vpop.f32.mrf.mxu0
    %v692 = vadd.f32 %v672, %v691
    %693 = vdwg.mxu0
    %v694 = vtanh.pop %v572
    %v695 = vtanh.pop %v612
    %v696 = vtanh.pop %v652
    %v697 = vtanh.pop %v692
    %v698 = vadd.f32 %v694, 1.0
    %v699 = vmul.f32 %v698, 0.5
    %v700 = vadd.f32 %v695, 1.0
    %v701 = vmul.f32 %v700, 0.5
    %v702 = vadd.f32 %v696, 1.0
    %v703 = vmul.f32 %v702, 0.5
    %v704 = vmul.f32 %v701, %v215
    %v705 = vmul.f32 %v699, %v697
    %v706 = vadd.f32 %v704, %v705
    %v707 = vtanh.pop %v706
    %v708 = vmul.f32 %v703, %v707
    %s709 = scalar_lea.vmem [#allocation2], 1
    %v710 = vld [vmem:[%s709] ss:$8 sm:$0xf]
    %711 = vmatpush.msra.mxu0 %v277
    %712 = vmatpush.msra.mxu0 %v273
    %713 = vmatpush.msra.mxu0 %v269
    %714 = vmatpush.msra.mxu0 %v265
    %715 = vmatpush.msra.mxu0 %v261
    %716 = vmatpush.msra.mxu0 %v257
    %717 = vmatpush.msra.mxu0 %v253
    %718 = vmatpush.msra.mxu0 %v249
    %719 = vmatpush.msra.mxu0 %v245
    %720 = vmatpush.msra.mxu0 %v241
    %721 = vmatpush.msra.mxu0 %v237
    %722 = vmatpush.msra.mxu0 %v233
    %723 = vmatpush.msra.mxu0 %v229
    %724 = vmatpush.msra.mxu0 %v225
    %725 = vmatpush.msra.mxu0 %v221
    %726 = vmatpush.msra.mxu0 %v217
    %727 = vmatmul.f32.gmra.mxu0 %v394
    %v728 = vpop.f32.mrf.mxu0
    %v729 = vadd.f32 0.0, %v728
    %730 = vdwg.mxu0
    %731 = vmatpush.msra.mxu0 %v278
    %732 = vmatpush.msra.mxu0 %v274
    %733 = vmatpush.msra.mxu0 %v270
    %734 = vmatpush.msra.mxu0 %v266
    %735 = vmatpush.msra.mxu0 %v262
    %736 = vmatpush.msra.mxu0 %v258
    %737 = vmatpush.msra.mxu0 %v254
    %738 = vmatpush.msra.mxu0 %v250
    %739 = vmatpush.msra.mxu0 %v246
    %740 = vmatpush.msra.mxu0 %v242
    %741 = vmatpush.msra.mxu0 %v238
    %742 = vmatpush.msra.mxu0 %v234
    %743 = vmatpush.msra.mxu0 %v230
    %744 = vmatpush.msra.mxu0 %v226
    %745 = vmatpush.msra.mxu0 %v222
    %746 = vmatpush.msra.mxu0 %v218
    %747 = vmatmul.f32.gmra.mxu0 %v394
    %v748 = vpop.f32.mrf.mxu0
    %v749 = vadd.f32 0.0, %v748
    %750 = vdwg.mxu0
    %751 = vmatpush.msra.mxu0 %v279
    %752 = vmatpush.msra.mxu0 %v275
    %753 = vmatpush.msra.mxu0 %v271
    %754 = vmatpush.msra.mxu0 %v267
    %755 = vmatpush.msra.mxu0 %v263
    %756 = vmatpush.msra.mxu0 %v259
    %757 = vmatpush.msra.mxu0 %v255
    %758 = vmatpush.msra.mxu0 %v251
    %759 = vmatpush.msra.mxu0 %v247
    %760 = vmatpush.msra.mxu0 %v243
    %761 = vmatpush.msra.mxu0 %v239
    %762 = vmatpush.msra.mxu0 %v235
    %763 = vmatpush.msra.mxu0 %v231
    %764 = vmatpush.msra.mxu0 %v227
    %765 = vmatpush.msra.mxu0 %v223
    %766 = vmatpush.msra.mxu0 %v219
    %767 = vmatmul.f32.gmra.mxu0 %v394
    %v768 = vpop.f32.mrf.mxu0
    %v769 = vadd.f32 0.0, %v768
    %770 = vdwg.mxu0
    %771 = vmatpush.msra.mxu0 %v280
    %772 = vmatpush.msra.mxu0 %v276
    %773 = vmatpush.msra.mxu0 %v272
    %774 = vmatpush.msra.mxu0 %v268
    %775 = vmatpush.msra.mxu0 %v264
    %776 = vmatpush.msra.mxu0 %v260
    %777 = vmatpush.msra.mxu0 %v256
    %778 = vmatpush.msra.mxu0 %v252
    %779 = vmatpush.msra.mxu0 %v248
    %780 = vmatpush.msra.mxu0 %v244
    %781 = vmatpush.msra.mxu0 %v240
    %782 = vmatpush.msra.mxu0 %v236
    %783 = vmatpush.msra.mxu0 %v232
    %784 = vmatpush.msra.mxu0 %v228
    %785 = vmatpush.msra.mxu0 %v224
    %786 = vmatpush.msra.mxu0 %v220
    %787 = vmatmul.f32.gmra.mxu0 %v394
    %v788 = vpop.f32.mrf.mxu0
    %v789 = vadd.f32 0.0, %v788
    %790 = vdwg.mxu0
    %v795 = vrot.slane %v749, 7
    %v796 = vrot.slane %v769, 6
    %v797 = vrot.slane %v789, 5
    %v798 = vsel %vm368, %v729, %v795
    %v799 = vsel %vm370, %v796, %v797
    %v800 = vsel %vm372, %v798, %v799
    %v802 = vadd.f32 %v710, %v800
    %v803 = vtanh.pop %v802
    %v804 = vadd.f32 %v803, 1.0
    %v805 = vmul.f32 %v804, 0.5
    %v807 = vrot.slane %v803, 1
    %v809 = vadd.f32 %v807, 1.0
    %v810 = vmul.f32 %v809, 0.5
    %v811 = vrot.slane %v803, 2
    %v813 = vadd.f32 %v811, 1.0
    %v814 = vmul.f32 %v813, 0.5
    %v815 = vmul.f32 %v810, %v392
    %v816 = vrot.slane %v803, 3
    %v818 = vmul.f32 %v805, %v816
    %v819 = vadd.f32 %v815, %v818
    %v820 = vtanh.pop %v819
    %v821 = vmul.f32 %v814, %v820
    %822 = vmatpush.msra.mxu0 %v455
    %823 = vmatpush.msra.mxu0 %v451
    %824 = vmatpush.msra.mxu0 %v447
    %825 = vmatpush.msra.mxu0 %v443
    %826 = vmatpush.msra.mxu0 %v439
    %827 = vmatpush.msra.mxu0 %v435
    %828 = vmatpush.msra.mxu0 %v431
    %829 = vmatpush.msra.mxu0 %v427
    %830 = vmatpush.msra.mxu0 %v423
    %831 = vmatpush.msra.mxu0 %v419
    %832 = vmatpush.msra.mxu0 %v415
    %833 = vmatpush.msra.mxu0 %v411
    %834 = vmatpush.msra.mxu0 %v407
    %835 = vmatpush.msra.mxu0 %v403
    %836 = vmatpush.msra.mxu0 %v399
    %837 = vmatpush.msra.mxu0 %v395
    %838 = vmatmul.f32.gmra.mxu0 %v821
    %v839 = vpop.f32.mrf.mxu0
    %v840 = vadd.f32 %v526, %v839
    %841 = vdwg.mxu0
    %842 = vmatpush.msra.mxu0 %v519
    %843 = vmatpush.msra.mxu0 %v515
    %844 = vmatpush.msra.mxu0 %v511
    %845 = vmatpush.msra.mxu0 %v507
    %846 = vmatpush.msra.mxu0 %v503
    %847 = vmatpush.msra.mxu0 %v499
    %848 = vmatpush.msra.mxu0 %v495
    %849 = vmatpush.msra.mxu0 %v491
    %850 = vmatpush.msra.mxu0 %v487
    %851 = vmatpush.msra.mxu0 %v483
    %852 = vmatpush.msra.mxu0 %v479
    %853 = vmatpush.msra.mxu0 %v475
    %854 = vmatpush.msra.mxu0 %v471
    %855 = vmatpush.msra.mxu0 %v467
    %856 = vmatpush.msra.mxu0 %v463
    %857 = vmatpush.msra.mxu0 %v459
    %858 = vmatmul.f32.gmra.mxu0 %v708
    %v859 = vpop.f32.mrf.mxu0
    %v860 = vadd.f32 %v840, %v859
    %861 = vdwg.mxu0
    %862 = vmatpush.msra.mxu0 %v456
    %863 = vmatpush.msra.mxu0 %v452
    %864 = vmatpush.msra.mxu0 %v448
    %865 = vmatpush.msra.mxu0 %v444
    %866 = vmatpush.msra.mxu0 %v440
    %867 = vmatpush.msra.mxu0 %v436
    %868 = vmatpush.msra.mxu0 %v432
    %869 = vmatpush.msra.mxu0 %v428
    %870 = vmatpush.msra.mxu0 %v424
    %871 = vmatpush.msra.mxu0 %v420
    %872 = vmatpush.msra.mxu0 %v416
    %873 = vmatpush.msra.mxu0 %v412
    %874 = vmatpush.msra.mxu0 %v408
    %875 = vmatpush.msra.mxu0 %v404
    %876 = vmatpush.msra.mxu0 %v400
    %877 = vmatpush.msra.mxu0 %v396
    %878 = vmatmul.f32.gmra.mxu0 %v821
    %v879 = vpop.f32.mrf.mxu0
    %v880 = vadd.f32 %v527, %v879
    %881 = vdwg.mxu0
    %882 = vmatpush.msra.mxu0 %v520
    %883 = vmatpush.msra.mxu0 %v516
    %884 = vmatpush.msra.mxu0 %v512
    %885 = vmatpush.msra.mxu0 %v508
    %886 = vmatpush.msra.mxu0 %v504
    %887 = vmatpush.msra.mxu0 %v500
    %888 = vmatpush.msra.mxu0 %v496
    %889 = vmatpush.msra.mxu0 %v492
    %890 = vmatpush.msra.mxu0 %v488
    %891 = vmatpush.msra.mxu0 %v484
    %892 = vmatpush.msra.mxu0 %v480
    %893 = vmatpush.msra.mxu0 %v476
    %894 = vmatpush.msra.mxu0 %v472
    %895 = vmatpush.msra.mxu0 %v468
    %896 = vmatpush.msra.mxu0 %v464
    %897 = vmatpush.msra.mxu0 %v460
    %898 = vmatmul.f32.gmra.mxu0 %v708
    %v899 = vpop.f32.mrf.mxu0
    %v900 = vadd.f32 %v880, %v899
    %901 = vdwg.mxu0
    %902 = vmatpush.msra.mxu0 %v457
    %903 = vmatpush.msra.mxu0 %v453
    %904 = vmatpush.msra.mxu0 %v449
    %905 = vmatpush.msra.mxu0 %v445
    %906 = vmatpush.msra.mxu0 %v441
    %907 = vmatpush.msra.mxu0 %v437
    %908 = vmatpush.msra.mxu0 %v433
    %909 = vmatpush.msra.mxu0 %v429
    %910 = vmatpush.msra.mxu0 %v425
    %911 = vmatpush.msra.mxu0 %v421
    %912 = vmatpush.msra.mxu0 %v417
    %913 = vmatpush.msra.mxu0 %v413
    %914 = vmatpush.msra.mxu0 %v409
    %915 = vmatpush.msra.mxu0 %v405
    %916 = vmatpush.msra.mxu0 %v401
    %917 = vmatpush.msra.mxu0 %v397
    %918 = vmatmul.f32.gmra.mxu0 %v821
    %v919 = vpop.f32.mrf.mxu0
    %v920 = vadd.f32 %v528, %v919
    %921 = vdwg.mxu0
    %922 = vmatpush.msra.mxu0 %v521
    %923 = vmatpush.msra.mxu0 %v517
    %924 = vmatpush.msra.mxu0 %v513
    %925 = vmatpush.msra.mxu0 %v509
    %926 = vmatpush.msra.mxu0 %v505
    %927 = vmatpush.msra.mxu0 %v501
    %928 = vmatpush.msra.mxu0 %v497
    %929 = vmatpush.msra.mxu0 %v493
    %930 = vmatpush.msra.mxu0 %v489
    %931 = vmatpush.msra.mxu0 %v485
    %932 = vmatpush.msra.mxu0 %v481
    %933 = vmatpush.msra.mxu0 %v477
    %934 = vmatpush.msra.mxu0 %v473
    %935 = vmatpush.msra.mxu0 %v469
    %936 = vmatpush.msra.mxu0 %v465
    %937 = vmatpush.msra.mxu0 %v461
    %938 = vmatmul.f32.gmra.mxu0 %v708
    %v939 = vpop.f32.mrf.mxu0
    %v940 = vadd.f32 %v920, %v939
    %941 = vdwg.mxu0
    %942 = vmatpush.msra.mxu0 %v458
    %943 = vmatpush.msra.mxu0 %v454
    %944 = vmatpush.msra.mxu0 %v450
    %945 = vmatpush.msra.mxu0 %v446
    %946 = vmatpush.msra.mxu0 %v442
    %947 = vmatpush.msra.mxu0 %v438
    %948 = vmatpush.msra.mxu0 %v434
    %949 = vmatpush.msra.mxu0 %v430
    %950 = vmatpush.msra.mxu0 %v426
    %951 = vmatpush.msra.mxu0 %v422
    %952 = vmatpush.msra.mxu0 %v418
    %953 = vmatpush.msra.mxu0 %v414
    %954 = vmatpush.msra.mxu0 %v410
    %955 = vmatpush.msra.mxu0 %v406
    %956 = vmatpush.msra.mxu0 %v402
    %957 = vmatpush.msra.mxu0 %v398
    %958 = vmatmul.f32.gmra.mxu0 %v821
    %v959 = vpop.f32.mrf.mxu0
    %v960 = vadd.f32 %v529, %v959
    %961 = vdwg.mxu0
    %962 = vmatpush.msra.mxu0 %v522
    %963 = vmatpush.msra.mxu0 %v518
    %964 = vmatpush.msra.mxu0 %v514
    %965 = vmatpush.msra.mxu0 %v510
    %966 = vmatpush.msra.mxu0 %v506
    %967 = vmatpush.msra.mxu0 %v502
    %968 = vmatpush.msra.mxu0 %v498
    %969 = vmatpush.msra.mxu0 %v494
    %970 = vmatpush.msra.mxu0 %v490
    %971 = vmatpush.msra.mxu0 %v486
    %972 = vmatpush.msra.mxu0 %v482
    %973 = vmatpush.msra.mxu0 %v478
    %974 = vmatpush.msra.mxu0 %v474
    %975 = vmatpush.msra.mxu0 %v470
    %976 = vmatpush.msra.mxu0 %v466
    %977 = vmatpush.msra.mxu0 %v462
    %978 = vmatmul.f32.gmra.mxu0 %v708
    %v979 = vpop.f32.mrf.mxu0
    %v980 = vadd.f32 %v960, %v979
    %981 = vdwg.mxu0
    %v982 = vtanh.pop %v860
    %v983 = vtanh.pop %v900
    %v984 = vtanh.pop %v940
    %v985 = vtanh.pop %v980
    %v986 = vadd.f32 %v982, 1.0
    %v987 = vmul.f32 %v986, 0.5
    %v988 = vadd.f32 %v983, 1.0
    %v989 = vmul.f32 %v988, 0.5
    %v990 = vadd.f32 %v984, 1.0
    %v991 = vmul.f32 %v990, 0.5
    %v992 = vmul.f32 %v989, %v706
    %v993 = vmul.f32 %v987, %v985
    %v994 = vadd.f32 %v992, %v993
    %v995 = vtanh.pop %v994
    %v996 = vmul.f32 %v991, %v995
    %s997 = scalar_lea.vmem [#allocation2], 2
    %v998 = vld [vmem:[%s997] ss:$8 sm:$0xf]
    %999 = vmatpush.msra.mxu0 %v277
    %1000 = vmatpush.msra.mxu0 %v273
    %1001 = vmatpush.msra.mxu0 %v269
    %1002 = vmatpush.msra.mxu0 %v265
    %1003 = vmatpush.msra.mxu0 %v261
    %1004 = vmatpush.msra.mxu0 %v257
    %1005 = vmatpush.msra.mxu0 %v253
    %1006 = vmatpush.msra.mxu0 %v249
    %1007 = vmatpush.msra.mxu0 %v245
    %1008 = vmatpush.msra.mxu0 %v241
    %1009 = vmatpush.msra.mxu0 %v237
    %1010 = vmatpush.msra.mxu0 %v233
    %1011 = vmatpush.msra.mxu0 %v229
    %1012 = vmatpush.msra.mxu0 %v225
    %1013 = vmatpush.msra.mxu0 %v221
    %1014 = vmatpush.msra.mxu0 %v217
    %1015 = vmatmul.f32.gmra.mxu0 %v821
    %v1016 = vpop.f32.mrf.mxu0
    %v1017 = vadd.f32 0.0, %v1016
    %1018 = vdwg.mxu0
    %1019 = vmatpush.msra.mxu0 %v278
    %1020 = vmatpush.msra.mxu0 %v274
    %1021 = vmatpush.msra.mxu0 %v270
    %1022 = vmatpush.msra.mxu0 %v266
    %1023 = vmatpush.msra.mxu0 %v262
    %1024 = vmatpush.msra.mxu0 %v258
    %1025 = vmatpush.msra.mxu0 %v254
    %1026 = vmatpush.msra.mxu0 %v250
    %1027 = vmatpush.msra.mxu0 %v246
    %1028 = vmatpush.msra.mxu0 %v242
    %1029 = vmatpush.msra.mxu0 %v238
    %1030 = vmatpush.msra.mxu0 %v234
    %1031 = vmatpush.msra.mxu0 %v230
    %1032 = vmatpush.msra.mxu0 %v226
    %1033 = vmatpush.msra.mxu0 %v222
    %1034 = vmatpush.msra.mxu0 %v218
    %1035 = vmatmul.f32.gmra.mxu0 %v821
    %v1036 = vpop.f32.mrf.mxu0
    %v1037 = vadd.f32 0.0, %v1036
    %1038 = vdwg.mxu0
    %1039 = vmatpush.msra.mxu0 %v279
    %1040 = vmatpush.msra.mxu0 %v275
    %1041 = vmatpush.msra.mxu0 %v271
    %1042 = vmatpush.msra.mxu0 %v267
    %1043 = vmatpush.msra.mxu0 %v263
    %1044 = vmatpush.msra.mxu0 %v259
    %1045 = vmatpush.msra.mxu0 %v255
    %1046 = vmatpush.msra.mxu0 %v251
    %1047 = vmatpush.msra.mxu0 %v247
    %1048 = vmatpush.msra.mxu0 %v243
    %1049 = vmatpush.msra.mxu0 %v239
    %1050 = vmatpush.msra.mxu0 %v235
    %1051 = vmatpush.msra.mxu0 %v231
    %1052 = vmatpush.msra.mxu0 %v227
    %1053 = vmatpush.msra.mxu0 %v223
    %1054 = vmatpush.msra.mxu0 %v219
    %1055 = vmatmul.f32.gmra.mxu0 %v821
    %v1056 = vpop.f32.mrf.mxu0
    %v1057 = vadd.f32 0.0, %v1056
    %1058 = vdwg.mxu0
    %1059 = vmatpush.msra.mxu0 %v280
    %1060 = vmatpush.msra.mxu0 %v276
    %1061 = vmatpush.msra.mxu0 %v272
    %1062 = vmatpush.msra.mxu0 %v268
    %1063 = vmatpush.msra.mxu0 %v264
    %1064 = vmatpush.msra.mxu0 %v260
    %1065 = vmatpush.msra.mxu0 %v256
    %1066 = vmatpush.msra.mxu0 %v252
    %1067 = vmatpush.msra.mxu0 %v248
    %1068 = vmatpush.msra.mxu0 %v244
    %1069 = vmatpush.msra.mxu0 %v240
    %1070 = vmatpush.msra.mxu0 %v236
    %1071 = vmatpush.msra.mxu0 %v232
    %1072 = vmatpush.msra.mxu0 %v228
    %1073 = vmatpush.msra.mxu0 %v224
    %1074 = vmatpush.msra.mxu0 %v220
    %1075 = vmatmul.f32.gmra.mxu0 %v821
    %v1076 = vpop.f32.mrf.mxu0
    %v1077 = vadd.f32 0.0, %v1076
    %1078 = vdwg.mxu0
    %v1083 = vrot.slane %v1037, 7
    %v1084 = vrot.slane %v1057, 6
    %v1085 = vrot.slane %v1077, 5
    %v1086 = vsel %vm368, %v1017, %v1083
    %v1087 = vsel %vm370, %v1084, %v1085
    %v1088 = vsel %vm372, %v1086, %v1087
    %v1090 = vadd.f32 %v998, %v1088
    %v1091 = vtanh.pop %v1090
    %v1092 = vadd.f32 %v1091, 1.0
    %v1093 = vmul.f32 %v1092, 0.5
    %v1095 = vrot.slane %v1091, 1
    %v1097 = vadd.f32 %v1095, 1.0
    %v1098 = vmul.f32 %v1097, 0.5
    %v1099 = vrot.slane %v1091, 2
    %v1101 = vadd.f32 %v1099, 1.0
    %v1102 = vmul.f32 %v1101, 0.5
    %v1103 = vmul.f32 %v1098, %v819
    %v1104 = vrot.slane %v1091, 3
    %v1106 = vmul.f32 %v1093, %v1104
    %v1107 = vadd.f32 %v1103, %v1106
    %v1108 = vtanh.pop %v1107
    %v1109 = vmul.f32 %v1102, %v1108
    %1110 = vmatpush.msra.mxu0 %v455
    %1111 = vmatpush.msra.mxu0 %v451
    %1112 = vmatpush.msra.mxu0 %v447
    %1113 = vmatpush.msra.mxu0 %v443
    %1114 = vmatpush.msra.mxu0 %v439
    %1115 = vmatpush.msra.mxu0 %v435
    %1116 = vmatpush.msra.mxu0 %v431
    %1117 = vmatpush.msra.mxu0 %v427
    %1118 = vmatpush.msra.mxu0 %v423
    %1119 = vmatpush.msra.mxu0 %v419
    %1120 = vmatpush.msra.mxu0 %v415
    %1121 = vmatpush.msra.mxu0 %v411
    %1122 = vmatpush.msra.mxu0 %v407
    %1123 = vmatpush.msra.mxu0 %v403
    %1124 = vmatpush.msra.mxu0 %v399
    %1125 = vmatpush.msra.mxu0 %v395
    %1126 = vmatmul.f32.gmra.mxu0 %v1109
    %v1127 = vpop.f32.mrf.mxu0
    %v1128 = vadd.f32 %v526, %v1127
    %1129 = vdwg.mxu0
    %1130 = vmatpush.msra.mxu0 %v519
    %1131 = vmatpush.msra.mxu0 %v515
    %1132 = vmatpush.msra.mxu0 %v511
    %1133 = vmatpush.msra.mxu0 %v507
    %1134 = vmatpush.msra.mxu0 %v503
    %1135 = vmatpush.msra.mxu0 %v499
    %1136 = vmatpush.msra.mxu0 %v495
    %1137 = vmatpush.msra.mxu0 %v491
    %1138 = vmatpush.msra.mxu0 %v487
    %1139 = vmatpush.msra.mxu0 %v483
    %1140 = vmatpush.msra.mxu0 %v479
    %1141 = vmatpush.msra.mxu0 %v475
    %1142 = vmatpush.msra.mxu0 %v471
    %1143 = vmatpush.msra.mxu0 %v467
    %1144 = vmatpush.msra.mxu0 %v463
    %1145 = vmatpush.msra.mxu0 %v459
    %1146 = vmatmul.f32.gmra.mxu0 %v996
    %v1147 = vpop.f32.mrf.mxu0
    %v1148 = vadd.f32 %v1128, %v1147
    %1149 = vdwg.mxu0
    %1150 = vmatpush.msra.mxu0 %v456
    %1151 = vmatpush.msra.mxu0 %v452
    %1152 = vmatpush.msra.mxu0 %v448
    %1153 = vmatpush.msra.mxu0 %v444
    %1154 = vmatpush.msra.mxu0 %v440
    %1155 = vmatpush.msra.mxu0 %v436
    %1156 = vmatpush.msra.mxu0 %v432
    %1157 = vmatpush.msra.mxu0 %v428
    %1158 = vmatpush.msra.mxu0 %v424
    %1159 = vmatpush.msra.mxu0 %v420
    %1160 = vmatpush.msra.mxu0 %v416
    %1161 = vmatpush.msra.mxu0 %v412
    %1162 = vmatpush.msra.mxu0 %v408
    %1163 = vmatpush.msra.mxu0 %v404
    %1164 = vmatpush.msra.mxu0 %v400
    %1165 = vmatpush.msra.mxu0 %v396
    %1166 = vmatmul.f32.gmra.mxu0 %v1109
    %v1167 = vpop.f32.mrf.mxu0
    %v1168 = vadd.f32 %v527, %v1167
    %1169 = vdwg.mxu0
    %1170 = vmatpush.msra.mxu0 %v520
    %1171 = vmatpush.msra.mxu0 %v516
    %1172 = vmatpush.msra.mxu0 %v512
    %1173 = vmatpush.msra.mxu0 %v508
    %1174 = vmatpush.msra.mxu0 %v504
    %1175 = vmatpush.msra.mxu0 %v500
    %1176 = vmatpush.msra.mxu0 %v496
    %1177 = vmatpush.msra.mxu0 %v492
    %1178 = vmatpush.msra.mxu0 %v488
    %1179 = vmatpush.msra.mxu0 %v484
    %1180 = vmatpush.msra.mxu0 %v480
    %1181 = vmatpush.msra.mxu0 %v476
    %1182 = vmatpush.msra.mxu0 %v472
    %1183 = vmatpush.msra.mxu0 %v468
    %1184 = vmatpush.msra.mxu0 %v464
    %1185 = vmatpush.msra.mxu0 %v460
    %1186 = vmatmul.f32.gmra.mxu0 %v996
    %v1187 = vpop.f32.mrf.mxu0
    %v1188 = vadd.f32 %v1168, %v1187
    %1189 = vdwg.mxu0
    %1190 = vmatpush.msra.mxu0 %v457
    %1191 = vmatpush.msra.mxu0 %v453
    %1192 = vmatpush.msra.mxu0 %v449
    %1193 = vmatpush.msra.mxu0 %v445
    %1194 = vmatpush.msra.mxu0 %v441
    %1195 = vmatpush.msra.mxu0 %v437
    %1196 = vmatpush.msra.mxu0 %v433
    %1197 = vmatpush.msra.mxu0 %v429
    %1198 = vmatpush.msra.mxu0 %v425
    %1199 = vmatpush.msra.mxu0 %v421
    %1200 = vmatpush.msra.mxu0 %v417
    %1201 = vmatpush.msra.mxu0 %v413
    %1202 = vmatpush.msra.mxu0 %v409
    %1203 = vmatpush.msra.mxu0 %v405
    %1204 = vmatpush.msra.mxu0 %v401
    %1205 = vmatpush.msra.mxu0 %v397
    %1206 = vmatmul.f32.gmra.mxu0 %v1109
    %v1207 = vpop.f32.mrf.mxu0
    %v1208 = vadd.f32 %v528, %v1207
    %1209 = vdwg.mxu0
    %1210 = vmatpush.msra.mxu0 %v521
    %1211 = vmatpush.msra.mxu0 %v517
    %1212 = vmatpush.msra.mxu0 %v513
    %1213 = vmatpush.msra.mxu0 %v509
    %1214 = vmatpush.msra.mxu0 %v505
    %1215 = vmatpush.msra.mxu0 %v501
    %1216 = vmatpush.msra.mxu0 %v497
    %1217 = vmatpush.msra.mxu0 %v493
    %1218 = vmatpush.msra.mxu0 %v489
    %1219 = vmatpush.msra.mxu0 %v485
    %1220 = vmatpush.msra.mxu0 %v481
    %1221 = vmatpush.msra.mxu0 %v477
    %1222 = vmatpush.msra.mxu0 %v473
    %1223 = vmatpush.msra.mxu0 %v469
    %1224 = vmatpush.msra.mxu0 %v465
    %1225 = vmatpush.msra.mxu0 %v461
    %1226 = vmatmul.f32.gmra.mxu0 %v996
    %v1227 = vpop.f32.mrf.mxu0
    %v1228 = vadd.f32 %v1208, %v1227
    %1229 = vdwg.mxu0
    %1230 = vmatpush.msra.mxu0 %v458
    %1231 = vmatpush.msra.mxu0 %v454
    %1232 = vmatpush.msra.mxu0 %v450
    %1233 = vmatpush.msra.mxu0 %v446
    %1234 = vmatpush.msra.mxu0 %v442
    %1235 = vmatpush.msra.mxu0 %v438
    %1236 = vmatpush.msra.mxu0 %v434
    %1237 = vmatpush.msra.mxu0 %v430
    %1238 = vmatpush.msra.mxu0 %v426
    %1239 = vmatpush.msra.mxu0 %v422
    %1240 = vmatpush.msra.mxu0 %v418
    %1241 = vmatpush.msra.mxu0 %v414
    %1242 = vmatpush.msra.mxu0 %v410
    %1243 = vmatpush.msra.mxu0 %v406
    %1244 = vmatpush.msra.mxu0 %v402
    %1245 = vmatpush.msra.mxu0 %v398
    %1246 = vmatmul.f32.gmra.mxu0 %v1109
    %v1247 = vpop.f32.mrf.mxu0
    %v1248 = vadd.f32 %v529, %v1247
    %1249 = vdwg.mxu0
    %1250 = vmatpush.msra.mxu0 %v522
    %1251 = vmatpush.msra.mxu0 %v518
    %1252 = vmatpush.msra.mxu0 %v514
    %1253 = vmatpush.msra.mxu0 %v510
    %1254 = vmatpush.msra.mxu0 %v506
    %1255 = vmatpush.msra.mxu0 %v502
    %1256 = vmatpush.msra.mxu0 %v498
    %1257 = vmatpush.msra.mxu0 %v494
    %1258 = vmatpush.msra.mxu0 %v490
    %1259 = vmatpush.msra.mxu0 %v486
    %1260 = vmatpush.msra.mxu0 %v482
    %1261 = vmatpush.msra.mxu0 %v478
    %1262 = vmatpush.msra.mxu0 %v474
    %1263 = vmatpush.msra.mxu0 %v470
    %1264 = vmatpush.msra.mxu0 %v466
    %1265 = vmatpush.msra.mxu0 %v462
    %1266 = vmatmul.f32.gmra.mxu0 %v996
    %v1267 = vpop.f32.mrf.mxu0
    %v1268 = vadd.f32 %v1248, %v1267
    %1269 = vdwg.mxu0
    %v1270 = vtanh.pop %v1148
    %v1271 = vtanh.pop %v1188
    %v1272 = vtanh.pop %v1228
    %v1273 = vtanh.pop %v1268
    %v1274 = vadd.f32 %v1270, 1.0
    %v1275 = vmul.f32 %v1274, 0.5
    %v1276 = vadd.f32 %v1271, 1.0
    %v1277 = vmul.f32 %v1276, 0.5
    %v1278 = vadd.f32 %v1272, 1.0
    %v1279 = vmul.f32 %v1278, 0.5
    %v1280 = vmul.f32 %v1277, %v994
    %v1281 = vmul.f32 %v1275, %v1273
    %v1282 = vadd.f32 %v1280, %v1281
    %v1283 = vtanh.pop %v1282
    %v1284 = vmul.f32 %v1279, %v1283
    %s1285 = scalar_lea.vmem [#allocation2], 3
    %v1286 = vld [vmem:[%s1285] ss:$8 sm:$0xf]
    %1287 = vmatpush.msra.mxu0 %v277
    %1288 = vmatpush.msra.mxu0 %v273
    %1289 = vmatpush.msra.mxu0 %v269
    %1290 = vmatpush.msra.mxu0 %v265
    %1291 = vmatpush.msra.mxu0 %v261
    %1292 = vmatpush.msra.mxu0 %v257
    %1293 = vmatpush.msra.mxu0 %v253
    %1294 = vmatpush.msra.mxu0 %v249
    %1295 = vmatpush.msra.mxu0 %v245
    %1296 = vmatpush.msra.mxu0 %v241
    %1297 = vmatpush.msra.mxu0 %v237
    %1298 = vmatpush.msra.mxu0 %v233
    %1299 = vmatpush.msra.mxu0 %v229
    %1300 = vmatpush.msra.mxu0 %v225
    %1301 = vmatpush.msra.mxu0 %v221
    %1302 = vmatpush.msra.mxu0 %v217
    %1303 = vmatmul.f32.gmra.mxu0 %v1109
    %v1304 = vpop.f32.mrf.mxu0
    %v1305 = vadd.f32 0.0, %v1304
    %1306 = vdwg.mxu0
    %1307 = vmatpush.msra.mxu0 %v278
    %1308 = vmatpush.msra.mxu0 %v274
    %1309 = vmatpush.msra.mxu0 %v270
    %1310 = vmatpush.msra.mxu0 %v266
    %1311 = vmatpush.msra.mxu0 %v262
    %1312 = vmatpush.msra.mxu0 %v258
    %1313 = vmatpush.msra.mxu0 %v254
    %1314 = vmatpush.msra.mxu0 %v250
    %1315 = vmatpush.msra.mxu0 %v246
    %1316 = vmatpush.msra.mxu0 %v242
    %1317 = vmatpush.msra.mxu0 %v238
    %1318 = vmatpush.msra.mxu0 %v234
    %1319 = vmatpush.msra.mxu0 %v230
    %1320 = vmatpush.msra.mxu0 %v226
    %1321 = vmatpush.msra.mxu0 %v222
    %1322 = vmatpush.msra.mxu0 %v218
    %1323 = vmatmul.f32.gmra.mxu0 %v1109
    %v1324 = vpop.f32.mrf.mxu0
    %v1325 = vadd.f32 0.0, %v1324
    %1326 = vdwg.mxu0
    %1327 = vmatpush.msra.mxu0 %v279
    %1328 = vmatpush.msra.mxu0 %v275
    %1329 = vmatpush.msra.mxu0 %v271
    %1330 = vmatpush.msra.mxu0 %v267
    %1331 = vmatpush.msra.mxu0 %v263
    %1332 = vmatpush.msra.mxu0 %v259
    %1333 = vmatpush.msra.mxu0 %v255
    %1334 = vmatpush.msra.mxu0 %v251
    %1335 = vmatpush.msra.mxu0 %v247
    %1336 = vmatpush.msra.mxu0 %v243
    %1337 = vmatpush.msra.mxu0 %v239
    %1338 = vmatpush.msra.mxu0 %v235
    %1339 = vmatpush.msra.mxu0 %v231
    %1340 = vmatpush.msra.mxu0 %v227
    %1341 = vmatpush.msra.mxu0 %v223
    %1342 = vmatpush.msra.mxu0 %v219
    %1343 = vmatmul.f32.gmra.mxu0 %v1109
    %v1344 = vpop.f32.mrf.mxu0
    %v1345 = vadd.f32 0.0, %v1344
    %1346 = vdwg.mxu0
    %1347 = vmatpush.msra.mxu0 %v280
    %1348 = vmatpush.msra.mxu0 %v276
    %1349 = vmatpush.msra.mxu0 %v272
    %1350 = vmatpush.msra.mxu0 %v268
    %1351 = vmatpush.msra.mxu0 %v264
    %1352 = vmatpush.msra.mxu0 %v260
    %1353 = vmatpush.msra.mxu0 %v256
    %1354 = vmatpush.msra.mxu0 %v252
    %1355 = vmatpush.msra.mxu0 %v248
    %1356 = vmatpush.msra.mxu0 %v244
    %1357 = vmatpush.msra.mxu0 %v240
    %1358 = vmatpush.msra.mxu0 %v236
    %1359 = vmatpush.msra.mxu0 %v232
    %1360 = vmatpush.msra.mxu0 %v228
    %1361 = vmatpush.msra.mxu0 %v224
    %1362 = vmatpush.msra.mxu0 %v220
    %1363 = vmatmul.f32.gmra.mxu0 %v1109
    %v1364 = vpop.f32.mrf.mxu0
    %v1365 = vadd.f32 0.0, %v1364
    %1366 = vdwg.mxu0
    %v1371 = vrot.slane %v1325, 7
    %v1372 = vrot.slane %v1345, 6
    %v1373 = vrot.slane %v1365, 5
    %v1374 = vsel %vm368, %v1305, %v1371
    %v1375 = vsel %vm370, %v1372, %v1373
    %v1376 = vsel %vm372, %v1374, %v1375
    %v1378 = vadd.f32 %v1286, %v1376
    %v1379 = vtanh.pop %v1378
    %v1380 = vadd.f32 %v1379, 1.0
    %v1381 = vmul.f32 %v1380, 0.5
    %v1383 = vrot.slane %v1379, 1
    %v1385 = vadd.f32 %v1383, 1.0
    %v1386 = vmul.f32 %v1385, 0.5
    %v1387 = vrot.slane %v1379, 2
    %v1389 = vadd.f32 %v1387, 1.0
    %v1390 = vmul.f32 %v1389, 0.5
    %v1391 = vmul.f32 %v1386, %v1107
    %v1392 = vrot.slane %v1379, 3
    %v1394 = vmul.f32 %v1381, %v1392
    %v1395 = vadd.f32 %v1391, %v1394
    %v1396 = vtanh.pop %v1395
    %v1397 = vmul.f32 %v1390, %v1396
    %1398 = vmatpush.msra.mxu0 %v455
    %1399 = vmatpush.msra.mxu0 %v451
    %1400 = vmatpush.msra.mxu0 %v447
    %1401 = vmatpush.msra.mxu0 %v443
    %1402 = vmatpush.msra.mxu0 %v439
    %1403 = vmatpush.msra.mxu0 %v435
    %1404 = vmatpush.msra.mxu0 %v431
    %1405 = vmatpush.msra.mxu0 %v427
    %1406 = vmatpush.msra.mxu0 %v423
    %1407 = vmatpush.msra.mxu0 %v419
    %1408 = vmatpush.msra.mxu0 %v415
    %1409 = vmatpush.msra.mxu0 %v411
    %1410 = vmatpush.msra.mxu0 %v407
    %1411 = vmatpush.msra.mxu0 %v403
    %1412 = vmatpush.msra.mxu0 %v399
    %1413 = vmatpush.msra.mxu0 %v395
    %1414 = vmatmul.f32.gmra.mxu0 %v1397
    %v1415 = vpop.f32.mrf.mxu0
    %v1416 = vadd.f32 %v526, %v1415
    %1417 = vdwg.mxu0
    %1418 = vmatpush.msra.mxu0 %v519
    %1419 = vmatpush.msra.mxu0 %v515
    %1420 = vmatpush.msra.mxu0 %v511
    %1421 = vmatpush.msra.mxu0 %v507
    %1422 = vmatpush.msra.mxu0 %v503
    %1423 = vmatpush.msra.mxu0 %v499
    %1424 = vmatpush.msra.mxu0 %v495
    %1425 = vmatpush.msra.mxu0 %v491
    %1426 = vmatpush.msra.mxu0 %v487
    %1427 = vmatpush.msra.mxu0 %v483
    %1428 = vmatpush.msra.mxu0 %v479
    %1429 = vmatpush.msra.mxu0 %v475
    %1430 = vmatpush.msra.mxu0 %v471
    %1431 = vmatpush.msra.mxu0 %v467
    %1432 = vmatpush.msra.mxu0 %v463
    %1433 = vmatpush.msra.mxu0 %v459
    %1434 = vmatmul.f32.gmra.mxu0 %v1284
    %v1435 = vpop.f32.mrf.mxu0
    %v1436 = vadd.f32 %v1416, %v1435
    %1437 = vdwg.mxu0
    %1438 = vmatpush.msra.mxu0 %v456
    %1439 = vmatpush.msra.mxu0 %v452
    %1440 = vmatpush.msra.mxu0 %v448
    %1441 = vmatpush.msra.mxu0 %v444
    %1442 = vmatpush.msra.mxu0 %v440
    %1443 = vmatpush.msra.mxu0 %v436
    %1444 = vmatpush.msra.mxu0 %v432
    %1445 = vmatpush.msra.mxu0 %v428
    %1446 = vmatpush.msra.mxu0 %v424
    %1447 = vmatpush.msra.mxu0 %v420
    %1448 = vmatpush.msra.mxu0 %v416
    %1449 = vmatpush.msra.mxu0 %v412
    %1450 = vmatpush.msra.mxu0 %v408
    %1451 = vmatpush.msra.mxu0 %v404
    %1452 = vmatpush.msra.mxu0 %v400
    %1453 = vmatpush.msra.mxu0 %v396
    %1454 = vmatmul.f32.gmra.mxu0 %v1397
    %v1455 = vpop.f32.mrf.mxu0
    %v1456 = vadd.f32 %v527, %v1455
    %1457 = vdwg.mxu0
    %1458 = vmatpush.msra.mxu0 %v520
    %1459 = vmatpush.msra.mxu0 %v516
    %1460 = vmatpush.msra.mxu0 %v512
    %1461 = vmatpush.msra.mxu0 %v508
    %1462 = vmatpush.msra.mxu0 %v504
    %1463 = vmatpush.msra.mxu0 %v500
    %1464 = vmatpush.msra.mxu0 %v496
    %1465 = vmatpush.msra.mxu0 %v492
    %1466 = vmatpush.msra.mxu0 %v488
    %1467 = vmatpush.msra.mxu0 %v484
    %1468 = vmatpush.msra.mxu0 %v480
    %1469 = vmatpush.msra.mxu0 %v476
    %1470 = vmatpush.msra.mxu0 %v472
    %1471 = vmatpush.msra.mxu0 %v468
    %1472 = vmatpush.msra.mxu0 %v464
    %1473 = vmatpush.msra.mxu0 %v460
    %1474 = vmatmul.f32.gmra.mxu0 %v1284
    %v1475 = vpop.f32.mrf.mxu0
    %v1476 = vadd.f32 %v1456, %v1475
    %1477 = vdwg.mxu0
    %1478 = vmatpush.msra.mxu0 %v457
    %1479 = vmatpush.msra.mxu0 %v453
    %1480 = vmatpush.msra.mxu0 %v449
    %1481 = vmatpush.msra.mxu0 %v445
    %1482 = vmatpush.msra.mxu0 %v441
    %1483 = vmatpush.msra.mxu0 %v437
    %1484 = vmatpush.msra.mxu0 %v433
    %1485 = vmatpush.msra.mxu0 %v429
    %1486 = vmatpush.msra.mxu0 %v425
    %1487 = vmatpush.msra.mxu0 %v421
    %1488 = vmatpush.msra.mxu0 %v417
    %1489 = vmatpush.msra.mxu0 %v413
    %1490 = vmatpush.msra.mxu0 %v409
    %1491 = vmatpush.msra.mxu0 %v405
    %1492 = vmatpush.msra.mxu0 %v401
    %1493 = vmatpush.msra.mxu0 %v397
    %1494 = vmatmul.f32.gmra.mxu0 %v1397
    %v1495 = vpop.f32.mrf.mxu0
    %v1496 = vadd.f32 %v528, %v1495
    %1497 = vdwg.mxu0
    %1498 = vmatpush.msra.mxu0 %v521
    %1499 = vmatpush.msra.mxu0 %v517
    %1500 = vmatpush.msra.mxu0 %v513
    %1501 = vmatpush.msra.mxu0 %v509
    %1502 = vmatpush.msra.mxu0 %v505
    %1503 = vmatpush.msra.mxu0 %v501
    %1504 = vmatpush.msra.mxu0 %v497
    %1505 = vmatpush.msra.mxu0 %v493
    %1506 = vmatpush.msra.mxu0 %v489
    %1507 = vmatpush.msra.mxu0 %v485
    %1508 = vmatpush.msra.mxu0 %v481
    %1509 = vmatpush.msra.mxu0 %v477
    %1510 = vmatpush.msra.mxu0 %v473
    %1511 = vmatpush.msra.mxu0 %v469
    %1512 = vmatpush.msra.mxu0 %v465
    %1513 = vmatpush.msra.mxu0 %v461
    %1514 = vmatmul.f32.gmra.mxu0 %v1284
    %v1515 = vpop.f32.mrf.mxu0
    %v1516 = vadd.f32 %v1496, %v1515
    %1517 = vdwg.mxu0
    %1518 = vmatpush.msra.mxu0 %v458
    %1519 = vmatpush.msra.mxu0 %v454
    %1520 = vmatpush.msra.mxu0 %v450
    %1521 = vmatpush.msra.mxu0 %v446
    %1522 = vmatpush.msra.mxu0 %v442
    %1523 = vmatpush.msra.mxu0 %v438
    %1524 = vmatpush.msra.mxu0 %v434
    %1525 = vmatpush.msra.mxu0 %v430
    %1526 = vmatpush.msra.mxu0 %v426
    %1527 = vmatpush.msra.mxu0 %v422
    %1528 = vmatpush.msra.mxu0 %v418
    %1529 = vmatpush.msra.mxu0 %v414
    %1530 = vmatpush.msra.mxu0 %v410
    %1531 = vmatpush.msra.mxu0 %v406
    %1532 = vmatpush.msra.mxu0 %v402
    %1533 = vmatpush.msra.mxu0 %v398
    %1534 = vmatmul.f32.gmra.mxu0 %v1397
    %v1535 = vpop.f32.mrf.mxu0
    %v1536 = vadd.f32 %v529, %v1535
    %1537 = vdwg.mxu0
    %1538 = vmatpush.msra.mxu0 %v522
    %1539 = vmatpush.msra.mxu0 %v518
    %1540 = vmatpush.msra.mxu0 %v514
    %1541 = vmatpush.msra.mxu0 %v510
    %1542 = vmatpush.msra.mxu0 %v506
    %1543 = vmatpush.msra.mxu0 %v502
    %1544 = vmatpush.msra.mxu0 %v498
    %1545 = vmatpush.msra.mxu0 %v494
    %1546 = vmatpush.msra.mxu0 %v490
    %1547 = vmatpush.msra.mxu0 %v486
    %1548 = vmatpush.msra.mxu0 %v482
    %1549 = vmatpush.msra.mxu0 %v478
    %1550 = vmatpush.msra.mxu0 %v474
    %1551 = vmatpush.msra.mxu0 %v470
    %1552 = vmatpush.msra.mxu0 %v466
    %1553 = vmatpush.msra.mxu0 %v462
    %1554 = vmatmul.f32.gmra.mxu0 %v1284
    %v1555 = vpop.f32.mrf.mxu0
    %v1556 = vadd.f32 %v1536, %v1555
    %1557 = vdwg.mxu0
    %v1558 = vtanh.pop %v1436
    %v1559 = vtanh.pop %v1476
    %v1560 = vtanh.pop %v1516
    %v1561 = vtanh.pop %v1556
    %v1562 = vadd.f32 %v1558, 1.0
    %v1563 = vmul.f32 %v1562, 0.5
    %v1564 = vadd.f32 %v1559, 1.0
    %v1565 = vmul.f32 %v1564, 0.5
    %v1566 = vadd.f32 %v1560, 1.0
    %v1567 = vmul.f32 %v1566, 0.5
    %v1568 = vmul.f32 %v1565, %v1282
    %v1569 = vmul.f32 %v1563, %v1561
    %v1570 = vadd.f32 %v1568, %v1569
    %v1571 = vtanh.pop %v1570
    %v1572 = vmul.f32 %v1567, %v1571
    %s1573 = scalar_lea.vmem [#allocation2], 4
    %v1574 = vld [vmem:[%s1573] ss:$8 sm:$0xf]
    %1575 = vmatpush.msra.mxu0 %v277
    %1576 = vmatpush.msra.mxu0 %v273
    %1577 = vmatpush.msra.mxu0 %v269
    %1578 = vmatpush.msra.mxu0 %v265
    %1579 = vmatpush.msra.mxu0 %v261
    %1580 = vmatpush.msra.mxu0 %v257
    %1581 = vmatpush.msra.mxu0 %v253
    %1582 = vmatpush.msra.mxu0 %v249
    %1583 = vmatpush.msra.mxu0 %v245
    %1584 = vmatpush.msra.mxu0 %v241
    %1585 = vmatpush.msra.mxu0 %v237
    %1586 = vmatpush.msra.mxu0 %v233
    %1587 = vmatpush.msra.mxu0 %v229
    %1588 = vmatpush.msra.mxu0 %v225
    %1589 = vmatpush.msra.mxu0 %v221
    %1590 = vmatpush.msra.mxu0 %v217
    %1591 = vmatmul.f32.gmra.mxu0 %v1397
    %v1592 = vpop.f32.mrf.mxu0
    %v1593 = vadd.f32 0.0, %v1592
    %1594 = vdwg.mxu0
    %1595 = vmatpush.msra.mxu0 %v278
    %1596 = vmatpush.msra.mxu0 %v274
    %1597 = vmatpush.msra.mxu0 %v270
    %1598 = vmatpush.msra.mxu0 %v266
    %1599 = vmatpush.msra.mxu0 %v262
    %1600 = vmatpush.msra.mxu0 %v258
    %1601 = vmatpush.msra.mxu0 %v254
    %1602 = vmatpush.msra.mxu0 %v250
    %1603 = vmatpush.msra.mxu0 %v246
    %1604 = vmatpush.msra.mxu0 %v242
    %1605 = vmatpush.msra.mxu0 %v238
    %1606 = vmatpush.msra.mxu0 %v234
    %1607 = vmatpush.msra.mxu0 %v230
    %1608 = vmatpush.msra.mxu0 %v226
    %1609 = vmatpush.msra.mxu0 %v222
    %1610 = vmatpush.msra.mxu0 %v218
    %1611 = vmatmul.f32.gmra.mxu0 %v1397
    %v1612 = vpop.f32.mrf.mxu0
    %v1613 = vadd.f32 0.0, %v1612
    %1614 = vdwg.mxu0
    %1615 = vmatpush.msra.mxu0 %v279
    %1616 = vmatpush.msra.mxu0 %v275
    %1617 = vmatpush.msra.mxu0 %v271
    %1618 = vmatpush.msra.mxu0 %v267
    %1619 = vmatpush.msra.mxu0 %v263
    %1620 = vmatpush.msra.mxu0 %v259
    %1621 = vmatpush.msra.mxu0 %v255
    %1622 = vmatpush.msra.mxu0 %v251
    %1623 = vmatpush.msra.mxu0 %v247
    %1624 = vmatpush.msra.mxu0 %v243
    %1625 = vmatpush.msra.mxu0 %v239
    %1626 = vmatpush.msra.mxu0 %v235
    %1627 = vmatpush.msra.mxu0 %v231
    %1628 = vmatpush.msra.mxu0 %v227
    %1629 = vmatpush.msra.mxu0 %v223
    %1630 = vmatpush.msra.mxu0 %v219
    %1631 = vmatmul.f32.gmra.mxu0 %v1397
    %v1632 = vpop.f32.mrf.mxu0
    %v1633 = vadd.f32 0.0, %v1632
    %1634 = vdwg.mxu0
    %1635 = vmatpush.msra.mxu0 %v280
    %1636 = vmatpush.msra.mxu0 %v276
    %1637 = vmatpush.msra.mxu0 %v272
    %1638 = vmatpush.msra.mxu0 %v268
    %1639 = vmatpush.msra.mxu0 %v264
    %1640 = vmatpush.msra.mxu0 %v260
    %1641 = vmatpush.msra.mxu0 %v256
    %1642 = vmatpush.msra.mxu0 %v252
    %1643 = vmatpush.msra.mxu0 %v248
    %1644 = vmatpush.msra.mxu0 %v244
    %1645 = vmatpush.msra.mxu0 %v240
    %1646 = vmatpush.msra.mxu0 %v236
    %1647 = vmatpush.msra.mxu0 %v232
    %1648 = vmatpush.msra.mxu0 %v228
    %1649 = vmatpush.msra.mxu0 %v224
    %1650 = vmatpush.msra.mxu0 %v220
    %1651 = vmatmul.f32.gmra.mxu0 %v1397
    %v1652 = vpop.f32.mrf.mxu0
    %v1653 = vadd.f32 0.0, %v1652
    %1654 = vdwg.mxu0
    %v1659 = vrot.slane %v1613, 7
    %v1660 = vrot.slane %v1633, 6
    %v1661 = vrot.slane %v1653, 5
    %v1662 = vsel %vm368, %v1593, %v1659
    %v1663 = vsel %vm370, %v1660, %v1661
    %v1664 = vsel %vm372, %v1662, %v1663
    %v1666 = vadd.f32 %v1574, %v1664
    %v1667 = vtanh.pop %v1666
    %v1668 = vadd.f32 %v1667, 1.0
    %v1669 = vmul.f32 %v1668, 0.5
    %v1671 = vrot.slane %v1667, 1
    %v1673 = vadd.f32 %v1671, 1.0
    %v1674 = vmul.f32 %v1673, 0.5
    %v1675 = vrot.slane %v1667, 2
    %v1677 = vadd.f32 %v1675, 1.0
    %v1678 = vmul.f32 %v1677, 0.5
    %v1679 = vmul.f32 %v1674, %v1395
    %v1680 = vrot.slane %v1667, 3
    %v1682 = vmul.f32 %v1669, %v1680
    %v1683 = vadd.f32 %v1679, %v1682
    %v1684 = vtanh.pop %v1683
    %v1685 = vmul.f32 %v1678, %v1684
    %1686 = vmatpush.msra.mxu0 %v455
    %1687 = vmatpush.msra.mxu0 %v451
    %1688 = vmatpush.msra.mxu0 %v447
    %1689 = vmatpush.msra.mxu0 %v443
    %1690 = vmatpush.msra.mxu0 %v439
    %1691 = vmatpush.msra.mxu0 %v435
    %1692 = vmatpush.msra.mxu0 %v431
    %1693 = vmatpush.msra.mxu0 %v427
    %1694 = vmatpush.msra.mxu0 %v423
    %1695 = vmatpush.msra.mxu0 %v419
    %1696 = vmatpush.msra.mxu0 %v415
    %1697 = vmatpush.msra.mxu0 %v411
    %1698 = vmatpush.msra.mxu0 %v407
    %1699 = vmatpush.msra.mxu0 %v403
    %1700 = vmatpush.msra.mxu0 %v399
    %1701 = vmatpush.msra.mxu0 %v395
    %1702 = vmatmul.f32.gmra.mxu0 %v1685
    %v1703 = vpop.f32.mrf.mxu0
    %v1704 = vadd.f32 %v526, %v1703
    %1705 = vdwg.mxu0
    %1706 = vmatpush.msra.mxu0 %v519
    %1707 = vmatpush.msra.mxu0 %v515
    %1708 = vmatpush.msra.mxu0 %v511
    %1709 = vmatpush.msra.mxu0 %v507
    %1710 = vmatpush.msra.mxu0 %v503
    %1711 = vmatpush.msra.mxu0 %v499
    %1712 = vmatpush.msra.mxu0 %v495
    %1713 = vmatpush.msra.mxu0 %v491
    %1714 = vmatpush.msra.mxu0 %v487
    %1715 = vmatpush.msra.mxu0 %v483
    %1716 = vmatpush.msra.mxu0 %v479
    %1717 = vmatpush.msra.mxu0 %v475
    %1718 = vmatpush.msra.mxu0 %v471
    %1719 = vmatpush.msra.mxu0 %v467
    %1720 = vmatpush.msra.mxu0 %v463
    %1721 = vmatpush.msra.mxu0 %v459
    %1722 = vmatmul.f32.gmra.mxu0 %v1572
    %v1723 = vpop.f32.mrf.mxu0
    %v1724 = vadd.f32 %v1704, %v1723
    %1725 = vdwg.mxu0
    %1726 = vmatpush.msra.mxu0 %v456
    %1727 = vmatpush.msra.mxu0 %v452
    %1728 = vmatpush.msra.mxu0 %v448
    %1729 = vmatpush.msra.mxu0 %v444
    %1730 = vmatpush.msra.mxu0 %v440
    %1731 = vmatpush.msra.mxu0 %v436
    %1732 = vmatpush.msra.mxu0 %v432
    %1733 = vmatpush.msra.mxu0 %v428
    %1734 = vmatpush.msra.mxu0 %v424
    %1735 = vmatpush.msra.mxu0 %v420
    %1736 = vmatpush.msra.mxu0 %v416
    %1737 = vmatpush.msra.mxu0 %v412
    %1738 = vmatpush.msra.mxu0 %v408
    %1739 = vmatpush.msra.mxu0 %v404
    %1740 = vmatpush.msra.mxu0 %v400
    %1741 = vmatpush.msra.mxu0 %v396
    %1742 = vmatmul.f32.gmra.mxu0 %v1685
    %v1743 = vpop.f32.mrf.mxu0
    %v1744 = vadd.f32 %v527, %v1743
    %1745 = vdwg.mxu0
    %1746 = vmatpush.msra.mxu0 %v520
    %1747 = vmatpush.msra.mxu0 %v516
    %1748 = vmatpush.msra.mxu0 %v512
    %1749 = vmatpush.msra.mxu0 %v508
    %1750 = vmatpush.msra.mxu0 %v504
    %1751 = vmatpush.msra.mxu0 %v500
    %1752 = vmatpush.msra.mxu0 %v496
    %1753 = vmatpush.msra.mxu0 %v492
    %1754 = vmatpush.msra.mxu0 %v488
    %1755 = vmatpush.msra.mxu0 %v484
    %1756 = vmatpush.msra.mxu0 %v480
    %1757 = vmatpush.msra.mxu0 %v476
    %1758 = vmatpush.msra.mxu0 %v472
    %1759 = vmatpush.msra.mxu0 %v468
    %1760 = vmatpush.msra.mxu0 %v464
    %1761 = vmatpush.msra.mxu0 %v460
    %1762 = vmatmul.f32.gmra.mxu0 %v1572
    %v1763 = vpop.f32.mrf.mxu0
    %v1764 = vadd.f32 %v1744, %v1763
    %1765 = vdwg.mxu0
    %1766 = vmatpush.msra.mxu0 %v457
    %1767 = vmatpush.msra.mxu0 %v453
    %1768 = vmatpush.msra.mxu0 %v449
    %1769 = vmatpush.msra.mxu0 %v445
    %1770 = vmatpush.msra.mxu0 %v441
    %1771 = vmatpush.msra.mxu0 %v437
    %1772 = vmatpush.msra.mxu0 %v433
    %1773 = vmatpush.msra.mxu0 %v429
    %1774 = vmatpush.msra.mxu0 %v425
    %1775 = vmatpush.msra.mxu0 %v421
    %1776 = vmatpush.msra.mxu0 %v417
    %1777 = vmatpush.msra.mxu0 %v413
    %1778 = vmatpush.msra.mxu0 %v409
    %1779 = vmatpush.msra.mxu0 %v405
    %1780 = vmatpush.msra.mxu0 %v401
    %1781 = vmatpush.msra.mxu0 %v397
    %1782 = vmatmul.f32.gmra.mxu0 %v1685
    %v1783 = vpop.f32.mrf.mxu0
    %v1784 = vadd.f32 %v528, %v1783
    %1785 = vdwg.mxu0
    %1786 = vmatpush.msra.mxu0 %v521
    %1787 = vmatpush.msra.mxu0 %v517
    %1788 = vmatpush.msra.mxu0 %v513
    %1789 = vmatpush.msra.mxu0 %v509
    %1790 = vmatpush.msra.mxu0 %v505
    %1791 = vmatpush.msra.mxu0 %v501
    %1792 = vmatpush.msra.mxu0 %v497
    %1793 = vmatpush.msra.mxu0 %v493
    %1794 = vmatpush.msra.mxu0 %v489
    %1795 = vmatpush.msra.mxu0 %v485
    %1796 = vmatpush.msra.mxu0 %v481
    %1797 = vmatpush.msra.mxu0 %v477
    %1798 = vmatpush.msra.mxu0 %v473
    %1799 = vmatpush.msra.mxu0 %v469
    %1800 = vmatpush.msra.mxu0 %v465
    %1801 = vmatpush.msra.mxu0 %v461
    %1802 = vmatmul.f32.gmra.mxu0 %v1572
    %v1803 = vpop.f32.mrf.mxu0
    %v1804 = vadd.f32 %v1784, %v1803
    %1805 = vdwg.mxu0
    %1806 = vmatpush.msra.mxu0 %v458
    %1807 = vmatpush.msra.mxu0 %v454
    %1808 = vmatpush.msra.mxu0 %v450
    %1809 = vmatpush.msra.mxu0 %v446
    %1810 = vmatpush.msra.mxu0 %v442
    %1811 = vmatpush.msra.mxu0 %v438
    %1812 = vmatpush.msra.mxu0 %v434
    %1813 = vmatpush.msra.mxu0 %v430
    %1814 = vmatpush.msra.mxu0 %v426
    %1815 = vmatpush.msra.mxu0 %v422
    %1816 = vmatpush.msra.mxu0 %v418
    %1817 = vmatpush.msra.mxu0 %v414
    %1818 = vmatpush.msra.mxu0 %v410
    %1819 = vmatpush.msra.mxu0 %v406
    %1820 = vmatpush.msra.mxu0 %v402
    %1821 = vmatpush.msra.mxu0 %v398
    %1822 = vmatmul.f32.gmra.mxu0 %v1685
    %v1823 = vpop.f32.mrf.mxu0
    %v1824 = vadd.f32 %v529, %v1823
    %1825 = vdwg.mxu0
    %1826 = vmatpush.msra.mxu0 %v522
    %1827 = vmatpush.msra.mxu0 %v518
    %1828 = vmatpush.msra.mxu0 %v514
    %1829 = vmatpush.msra.mxu0 %v510
    %1830 = vmatpush.msra.mxu0 %v506
    %1831 = vmatpush.msra.mxu0 %v502
    %1832 = vmatpush.msra.mxu0 %v498
    %1833 = vmatpush.msra.mxu0 %v494
    %1834 = vmatpush.msra.mxu0 %v490
    %1835 = vmatpush.msra.mxu0 %v486
    %1836 = vmatpush.msra.mxu0 %v482
    %1837 = vmatpush.msra.mxu0 %v478
    %1838 = vmatpush.msra.mxu0 %v474
    %1839 = vmatpush.msra.mxu0 %v470
    %1840 = vmatpush.msra.mxu0 %v466
    %1841 = vmatpush.msra.mxu0 %v462
    %1842 = vmatmul.f32.gmra.mxu0 %v1572
    %v1843 = vpop.f32.mrf.mxu0
    %v1844 = vadd.f32 %v1824, %v1843
    %1845 = vdwg.mxu0
    %v1846 = vtanh.pop %v1724
    %v1847 = vtanh.pop %v1764
    %v1848 = vtanh.pop %v1804
    %v1849 = vtanh.pop %v1844
    %v1850 = vadd.f32 %v1846, 1.0
    %v1851 = vmul.f32 %v1850, 0.5
    %v1852 = vadd.f32 %v1847, 1.0
    %v1853 = vmul.f32 %v1852, 0.5
    %v1854 = vadd.f32 %v1848, 1.0
    %v1855 = vmul.f32 %v1854, 0.5
    %v1856 = vmul.f32 %v1853, %v1570
    %v1857 = vmul.f32 %v1851, %v1849
    %v1858 = vadd.f32 %v1856, %v1857
    %v1859 = vtanh.pop %v1858
    %v1860 = vmul.f32 %v1855, %v1859
    %s1861 = scalar_lea.vmem [#allocation2], 5
    %v1862 = vld [vmem:[%s1861] ss:$8 sm:$0xf]
    %1863 = vmatpush.msra.mxu0 %v277
    %1864 = vmatpush.msra.mxu0 %v273
    %1865 = vmatpush.msra.mxu0 %v269
    %1866 = vmatpush.msra.mxu0 %v265
    %1867 = vmatpush.msra.mxu0 %v261
    %1868 = vmatpush.msra.mxu0 %v257
    %1869 = vmatpush.msra.mxu0 %v253
    %1870 = vmatpush.msra.mxu0 %v249
    %1871 = vmatpush.msra.mxu0 %v245
    %1872 = vmatpush.msra.mxu0 %v241
    %1873 = vmatpush.msra.mxu0 %v237
    %1874 = vmatpush.msra.mxu0 %v233
    %1875 = vmatpush.msra.mxu0 %v229
    %1876 = vmatpush.msra.mxu0 %v225
    %1877 = vmatpush.msra.mxu0 %v221
    %1878 = vmatpush.msra.mxu0 %v217
    %1879 = vmatmul.f32.gmra.mxu0 %v1685
    %v1880 = vpop.f32.mrf.mxu0
    %v1881 = vadd.f32 0.0, %v1880
    %1882 = vdwg.mxu0
    %1883 = vmatpush.msra.mxu0 %v278
    %1884 = vmatpush.msra.mxu0 %v274
    %1885 = vmatpush.msra.mxu0 %v270
    %1886 = vmatpush.msra.mxu0 %v266
    %1887 = vmatpush.msra.mxu0 %v262
    %1888 = vmatpush.msra.mxu0 %v258
    %1889 = vmatpush.msra.mxu0 %v254
    %1890 = vmatpush.msra.mxu0 %v250
    %1891 = vmatpush.msra.mxu0 %v246
    %1892 = vmatpush.msra.mxu0 %v242
    %1893 = vmatpush.msra.mxu0 %v238
    %1894 = vmatpush.msra.mxu0 %v234
    %1895 = vmatpush.msra.mxu0 %v230
    %1896 = vmatpush.msra.mxu0 %v226
    %1897 = vmatpush.msra.mxu0 %v222
    %1898 = vmatpush.msra.mxu0 %v218
    %1899 = vmatmul.f32.gmra.mxu0 %v1685
    %v1900 = vpop.f32.mrf.mxu0
    %v1901 = vadd.f32 0.0, %v1900
    %1902 = vdwg.mxu0
    %1903 = vmatpush.msra.mxu0 %v279
    %1904 = vmatpush.msra.mxu0 %v275
    %1905 = vmatpush.msra.mxu0 %v271
    %1906 = vmatpush.msra.mxu0 %v267
    %1907 = vmatpush.msra.mxu0 %v263
    %1908 = vmatpush.msra.mxu0 %v259
    %1909 = vmatpush.msra.mxu0 %v255
    %1910 = vmatpush.msra.mxu0 %v251
    %1911 = vmatpush.msra.mxu0 %v247
    %1912 = vmatpush.msra.mxu0 %v243
    %1913 = vmatpush.msra.mxu0 %v239
    %1914 = vmatpush.msra.mxu0 %v235
    %1915 = vmatpush.msra.mxu0 %v231
    %1916 = vmatpush.msra.mxu0 %v227
    %1917 = vmatpush.msra.mxu0 %v223
    %1918 = vmatpush.msra.mxu0 %v219
    %1919 = vmatmul.f32.gmra.mxu0 %v1685
    %v1920 = vpop.f32.mrf.mxu0
    %v1921 = vadd.f32 0.0, %v1920
    %1922 = vdwg.mxu0
    %1923 = vmatpush.msra.mxu0 %v280
    %1924 = vmatpush.msra.mxu0 %v276
    %1925 = vmatpush.msra.mxu0 %v272
    %1926 = vmatpush.msra.mxu0 %v268
    %1927 = vmatpush.msra.mxu0 %v264
    %1928 = vmatpush.msra.mxu0 %v260
    %1929 = vmatpush.msra.mxu0 %v256
    %1930 = vmatpush.msra.mxu0 %v252
    %1931 = vmatpush.msra.mxu0 %v248
    %1932 = vmatpush.msra.mxu0 %v244
    %1933 = vmatpush.msra.mxu0 %v240
    %1934 = vmatpush.msra.mxu0 %v236
    %1935 = vmatpush.msra.mxu0 %v232
    %1936 = vmatpush.msra.mxu0 %v228
    %1937 = vmatpush.msra.mxu0 %v224
    %1938 = vmatpush.msra.mxu0 %v220
    %1939 = vmatmul.f32.gmra.mxu0 %v1685
    %v1940 = vpop.f32.mrf.mxu0
    %v1941 = vadd.f32 0.0, %v1940
    %1942 = vdwg.mxu0
    %v1947 = vrot.slane %v1901, 7
    %v1948 = vrot.slane %v1921, 6
    %v1949 = vrot.slane %v1941, 5
    %v1950 = vsel %vm368, %v1881, %v1947
    %v1951 = vsel %vm370, %v1948, %v1949
    %v1952 = vsel %vm372, %v1950, %v1951
    %v1954 = vadd.f32 %v1862, %v1952
    %v1955 = vtanh.pop %v1954
    %v1956 = vadd.f32 %v1955, 1.0
    %v1957 = vmul.f32 %v1956, 0.5
    %v1959 = vrot.slane %v1955, 1
    %v1961 = vadd.f32 %v1959, 1.0
    %v1962 = vmul.f32 %v1961, 0.5
    %v1963 = vrot.slane %v1955, 2
    %v1965 = vadd.f32 %v1963, 1.0
    %v1966 = vmul.f32 %v1965, 0.5
    %v1967 = vmul.f32 %v1962, %v1683
    %v1968 = vrot.slane %v1955, 3
    %v1970 = vmul.f32 %v1957, %v1968
    %v1971 = vadd.f32 %v1967, %v1970
    %v1972 = vtanh.pop %v1971
    %v1973 = vmul.f32 %v1966, %v1972
    %1974 = vmatpush.msra.mxu0 %v455
    %1975 = vmatpush.msra.mxu0 %v451
    %1976 = vmatpush.msra.mxu0 %v447
    %1977 = vmatpush.msra.mxu0 %v443
    %1978 = vmatpush.msra.mxu0 %v439
    %1979 = vmatpush.msra.mxu0 %v435
    %1980 = vmatpush.msra.mxu0 %v431
    %1981 = vmatpush.msra.mxu0 %v427
    %1982 = vmatpush.msra.mxu0 %v423
    %1983 = vmatpush.msra.mxu0 %v419
    %1984 = vmatpush.msra.mxu0 %v415
    %1985 = vmatpush.msra.mxu0 %v411
    %1986 = vmatpush.msra.mxu0 %v407
    %1987 = vmatpush.msra.mxu0 %v403
    %1988 = vmatpush.msra.mxu0 %v399
    %1989 = vmatpush.msra.mxu0 %v395
    %1990 = vmatmul.f32.gmra.mxu0 %v1973
    %v1991 = vpop.f32.mrf.mxu0
    %v1992 = vadd.f32 %v526, %v1991
    %1993 = vdwg.mxu0
    %1994 = vmatpush.msra.mxu0 %v519
    %1995 = vmatpush.msra.mxu0 %v515
    %1996 = vmatpush.msra.mxu0 %v511
    %1997 = vmatpush.msra.mxu0 %v507
    %1998 = vmatpush.msra.mxu0 %v503
    %1999 = vmatpush.msra.mxu0 %v499
    %2000 = vmatpush.msra.mxu0 %v495
    %2001 = vmatpush.msra.mxu0 %v491
    %2002 = vmatpush.msra.mxu0 %v487
    %2003 = vmatpush.msra.mxu0 %v483
    %2004 = vmatpush.msra.mxu0 %v479
    %2005 = vmatpush.msra.mxu0 %v475
    %2006 = vmatpush.msra.mxu0 %v471
    %2007 = vmatpush.msra.mxu0 %v467
    %2008 = vmatpush.msra.mxu0 %v463
    %2009 = vmatpush.msra.mxu0 %v459
    %2010 = vmatmul.f32.gmra.mxu0 %v1860
    %v2011 = vpop.f32.mrf.mxu0
    %v2012 = vadd.f32 %v1992, %v2011
    %2013 = vdwg.mxu0
    %2014 = vmatpush.msra.mxu0 %v456
    %2015 = vmatpush.msra.mxu0 %v452
    %2016 = vmatpush.msra.mxu0 %v448
    %2017 = vmatpush.msra.mxu0 %v444
    %2018 = vmatpush.msra.mxu0 %v440
    %2019 = vmatpush.msra.mxu0 %v436
    %2020 = vmatpush.msra.mxu0 %v432
    %2021 = vmatpush.msra.mxu0 %v428
    %2022 = vmatpush.msra.mxu0 %v424
    %2023 = vmatpush.msra.mxu0 %v420
    %2024 = vmatpush.msra.mxu0 %v416
    %2025 = vmatpush.msra.mxu0 %v412
    %2026 = vmatpush.msra.mxu0 %v408
    %2027 = vmatpush.msra.mxu0 %v404
    %2028 = vmatpush.msra.mxu0 %v400
    %2029 = vmatpush.msra.mxu0 %v396
    %2030 = vmatmul.f32.gmra.mxu0 %v1973
    %v2031 = vpop.f32.mrf.mxu0
    %v2032 = vadd.f32 %v527, %v2031
    %2033 = vdwg.mxu0
    %2034 = vmatpush.msra.mxu0 %v520
    %2035 = vmatpush.msra.mxu0 %v516
    %2036 = vmatpush.msra.mxu0 %v512
    %2037 = vmatpush.msra.mxu0 %v508
    %2038 = vmatpush.msra.mxu0 %v504
    %2039 = vmatpush.msra.mxu0 %v500
    %2040 = vmatpush.msra.mxu0 %v496
    %2041 = vmatpush.msra.mxu0 %v492
    %2042 = vmatpush.msra.mxu0 %v488
    %2043 = vmatpush.msra.mxu0 %v484
    %2044 = vmatpush.msra.mxu0 %v480
    %2045 = vmatpush.msra.mxu0 %v476
    %2046 = vmatpush.msra.mxu0 %v472
    %2047 = vmatpush.msra.mxu0 %v468
    %2048 = vmatpush.msra.mxu0 %v464
    %2049 = vmatpush.msra.mxu0 %v460
    %2050 = vmatmul.f32.gmra.mxu0 %v1860
    %v2051 = vpop.f32.mrf.mxu0
    %v2052 = vadd.f32 %v2032, %v2051
    %2053 = vdwg.mxu0
    %2054 = vmatpush.msra.mxu0 %v457
    %2055 = vmatpush.msra.mxu0 %v453
    %2056 = vmatpush.msra.mxu0 %v449
    %2057 = vmatpush.msra.mxu0 %v445
    %2058 = vmatpush.msra.mxu0 %v441
    %2059 = vmatpush.msra.mxu0 %v437
    %2060 = vmatpush.msra.mxu0 %v433
    %2061 = vmatpush.msra.mxu0 %v429
    %2062 = vmatpush.msra.mxu0 %v425
    %2063 = vmatpush.msra.mxu0 %v421
    %2064 = vmatpush.msra.mxu0 %v417
    %2065 = vmatpush.msra.mxu0 %v413
    %2066 = vmatpush.msra.mxu0 %v409
    %2067 = vmatpush.msra.mxu0 %v405
    %2068 = vmatpush.msra.mxu0 %v401
    %2069 = vmatpush.msra.mxu0 %v397
    %2070 = vmatmul.f32.gmra.mxu0 %v1973
    %v2071 = vpop.f32.mrf.mxu0
    %v2072 = vadd.f32 %v528, %v2071
    %2073 = vdwg.mxu0
    %2074 = vmatpush.msra.mxu0 %v521
    %2075 = vmatpush.msra.mxu0 %v517
    %2076 = vmatpush.msra.mxu0 %v513
    %2077 = vmatpush.msra.mxu0 %v509
    %2078 = vmatpush.msra.mxu0 %v505
    %2079 = vmatpush.msra.mxu0 %v501
    %2080 = vmatpush.msra.mxu0 %v497
    %2081 = vmatpush.msra.mxu0 %v493
    %2082 = vmatpush.msra.mxu0 %v489
    %2083 = vmatpush.msra.mxu0 %v485
    %2084 = vmatpush.msra.mxu0 %v481
    %2085 = vmatpush.msra.mxu0 %v477
    %2086 = vmatpush.msra.mxu0 %v473
    %2087 = vmatpush.msra.mxu0 %v469
    %2088 = vmatpush.msra.mxu0 %v465
    %2089 = vmatpush.msra.mxu0 %v461
    %2090 = vmatmul.f32.gmra.mxu0 %v1860
    %v2091 = vpop.f32.mrf.mxu0
    %v2092 = vadd.f32 %v2072, %v2091
    %2093 = vdwg.mxu0
    %2094 = vmatpush.msra.mxu0 %v458
    %2095 = vmatpush.msra.mxu0 %v454
    %2096 = vmatpush.msra.mxu0 %v450
    %2097 = vmatpush.msra.mxu0 %v446
    %2098 = vmatpush.msra.mxu0 %v442
    %2099 = vmatpush.msra.mxu0 %v438
    %2100 = vmatpush.msra.mxu0 %v434
    %2101 = vmatpush.msra.mxu0 %v430
    %2102 = vmatpush.msra.mxu0 %v426
    %2103 = vmatpush.msra.mxu0 %v422
    %2104 = vmatpush.msra.mxu0 %v418
    %2105 = vmatpush.msra.mxu0 %v414
    %2106 = vmatpush.msra.mxu0 %v410
    %2107 = vmatpush.msra.mxu0 %v406
    %2108 = vmatpush.msra.mxu0 %v402
    %2109 = vmatpush.msra.mxu0 %v398
    %2110 = vmatmul.f32.gmra.mxu0 %v1973
    %v2111 = vpop.f32.mrf.mxu0
    %v2112 = vadd.f32 %v529, %v2111
    %2113 = vdwg.mxu0
    %2114 = vmatpush.msra.mxu0 %v522
    %2115 = vmatpush.msra.mxu0 %v518
    %2116 = vmatpush.msra.mxu0 %v514
    %2117 = vmatpush.msra.mxu0 %v510
    %2118 = vmatpush.msra.mxu0 %v506
    %2119 = vmatpush.msra.mxu0 %v502
    %2120 = vmatpush.msra.mxu0 %v498
    %2121 = vmatpush.msra.mxu0 %v494
    %2122 = vmatpush.msra.mxu0 %v490
    %2123 = vmatpush.msra.mxu0 %v486
    %2124 = vmatpush.msra.mxu0 %v482
    %2125 = vmatpush.msra.mxu0 %v478
    %2126 = vmatpush.msra.mxu0 %v474
    %2127 = vmatpush.msra.mxu0 %v470
    %2128 = vmatpush.msra.mxu0 %v466
    %2129 = vmatpush.msra.mxu0 %v462
    %2130 = vmatmul.f32.gmra.mxu0 %v1860
    %v2131 = vpop.f32.mrf.mxu0
    %v2132 = vadd.f32 %v2112, %v2131
    %2133 = vdwg.mxu0
    %v2134 = vtanh.pop %v2012
    %v2135 = vtanh.pop %v2052
    %v2136 = vtanh.pop %v2092
    %v2137 = vtanh.pop %v2132
    %v2138 = vadd.f32 %v2134, 1.0
    %v2139 = vmul.f32 %v2138, 0.5
    %v2140 = vadd.f32 %v2135, 1.0
    %v2141 = vmul.f32 %v2140, 0.5
    %v2142 = vadd.f32 %v2136, 1.0
    %v2143 = vmul.f32 %v2142, 0.5
    %v2144 = vmul.f32 %v2141, %v1858
    %v2145 = vmul.f32 %v2139, %v2137
    %v2146 = vadd.f32 %v2144, %v2145
    %v2147 = vtanh.pop %v2146
    %v2148 = vmul.f32 %v2143, %v2147
    %s2149 = scalar_lea.vmem [#allocation2], 6
    %v2150 = vld [vmem:[%s2149] ss:$8 sm:$0xf]
    %2151 = vmatpush.msra.mxu0 %v277
    %2152 = vmatpush.msra.mxu0 %v273
    %2153 = vmatpush.msra.mxu0 %v269
    %2154 = vmatpush.msra.mxu0 %v265
    %2155 = vmatpush.msra.mxu0 %v261
    %2156 = vmatpush.msra.mxu0 %v257
    %2157 = vmatpush.msra.mxu0 %v253
    %2158 = vmatpush.msra.mxu0 %v249
    %2159 = vmatpush.msra.mxu0 %v245
    %2160 = vmatpush.msra.mxu0 %v241
    %2161 = vmatpush.msra.mxu0 %v237
    %2162 = vmatpush.msra.mxu0 %v233
    %2163 = vmatpush.msra.mxu0 %v229
    %2164 = vmatpush.msra.mxu0 %v225
    %2165 = vmatpush.msra.mxu0 %v221
    %2166 = vmatpush.msra.mxu0 %v217
    %2167 = vmatmul.f32.gmra.mxu0 %v1973
    %v2168 = vpop.f32.mrf.mxu0
    %v2169 = vadd.f32 0.0, %v2168
    %2170 = vdwg.mxu0
    %2171 = vmatpush.msra.mxu0 %v278
    %2172 = vmatpush.msra.mxu0 %v274
    %2173 = vmatpush.msra.mxu0 %v270
    %2174 = vmatpush.msra.mxu0 %v266
    %2175 = vmatpush.msra.mxu0 %v262
    %2176 = vmatpush.msra.mxu0 %v258
    %2177 = vmatpush.msra.mxu0 %v254
    %2178 = vmatpush.msra.mxu0 %v250
    %2179 = vmatpush.msra.mxu0 %v246
    %2180 = vmatpush.msra.mxu0 %v242
    %2181 = vmatpush.msra.mxu0 %v238
    %2182 = vmatpush.msra.mxu0 %v234
    %2183 = vmatpush.msra.mxu0 %v230
    %2184 = vmatpush.msra.mxu0 %v226
    %2185 = vmatpush.msra.mxu0 %v222
    %2186 = vmatpush.msra.mxu0 %v218
    %2187 = vmatmul.f32.gmra.mxu0 %v1973
    %v2188 = vpop.f32.mrf.mxu0
    %v2189 = vadd.f32 0.0, %v2188
    %2190 = vdwg.mxu0
    %2191 = vmatpush.msra.mxu0 %v279
    %2192 = vmatpush.msra.mxu0 %v275
    %2193 = vmatpush.msra.mxu0 %v271
    %2194 = vmatpush.msra.mxu0 %v267
    %2195 = vmatpush.msra.mxu0 %v263
    %2196 = vmatpush.msra.mxu0 %v259
    %2197 = vmatpush.msra.mxu0 %v255
    %2198 = vmatpush.msra.mxu0 %v251
    %2199 = vmatpush.msra.mxu0 %v247
    %2200 = vmatpush.msra.mxu0 %v243
    %2201 = vmatpush.msra.mxu0 %v239
    %2202 = vmatpush.msra.mxu0 %v235
    %2203 = vmatpush.msra.mxu0 %v231
    %2204 = vmatpush.msra.mxu0 %v227
    %2205 = vmatpush.msra.mxu0 %v223
    %2206 = vmatpush.msra.mxu0 %v219
    %2207 = vmatmul.f32.gmra.mxu0 %v1973
    %v2208 = vpop.f32.mrf.mxu0
    %v2209 = vadd.f32 0.0, %v2208
    %2210 = vdwg.mxu0
    %2211 = vmatpush.msra.mxu0 %v280
    %2212 = vmatpush.msra.mxu0 %v276
    %2213 = vmatpush.msra.mxu0 %v272
    %2214 = vmatpush.msra.mxu0 %v268
    %2215 = vmatpush.msra.mxu0 %v264
    %2216 = vmatpush.msra.mxu0 %v260
    %2217 = vmatpush.msra.mxu0 %v256
    %2218 = vmatpush.msra.mxu0 %v252
    %2219 = vmatpush.msra.mxu0 %v248
    %2220 = vmatpush.msra.mxu0 %v244
    %2221 = vmatpush.msra.mxu0 %v240
    %2222 = vmatpush.msra.mxu0 %v236
    %2223 = vmatpush.msra.mxu0 %v232
    %2224 = vmatpush.msra.mxu0 %v228
    %2225 = vmatpush.msra.mxu0 %v224
    %2226 = vmatpush.msra.mxu0 %v220
    %2227 = vmatmul.f32.gmra.mxu0 %v1973
    %v2228 = vpop.f32.mrf.mxu0
    %v2229 = vadd.f32 0.0, %v2228
    %2230 = vdwg.mxu0
    %v2235 = vrot.slane %v2189, 7
    %v2236 = vrot.slane %v2209, 6
    %v2237 = vrot.slane %v2229, 5
    %v2238 = vsel %vm368, %v2169, %v2235
    %v2239 = vsel %vm370, %v2236, %v2237
    %v2240 = vsel %vm372, %v2238, %v2239
    %v2242 = vadd.f32 %v2150, %v2240
    %v2243 = vtanh.pop %v2242
    %v2244 = vadd.f32 %v2243, 1.0
    %v2245 = vmul.f32 %v2244, 0.5
    %v2247 = vrot.slane %v2243, 1
    %v2249 = vadd.f32 %v2247, 1.0
    %v2250 = vmul.f32 %v2249, 0.5
    %v2251 = vrot.slane %v2243, 2
    %v2253 = vadd.f32 %v2251, 1.0
    %v2254 = vmul.f32 %v2253, 0.5
    %v2255 = vmul.f32 %v2250, %v1971
    %v2256 = vrot.slane %v2243, 3
    %v2258 = vmul.f32 %v2245, %v2256
    %v2259 = vadd.f32 %v2255, %v2258
    %v2260 = vtanh.pop %v2259
    %v2261 = vmul.f32 %v2254, %v2260
    %2262 = vmatpush.msra.mxu0 %v455
    %2263 = vmatpush.msra.mxu0 %v451
    %2264 = vmatpush.msra.mxu0 %v447
    %2265 = vmatpush.msra.mxu0 %v443
    %2266 = vmatpush.msra.mxu0 %v439
    %2267 = vmatpush.msra.mxu0 %v435
    %2268 = vmatpush.msra.mxu0 %v431
    %2269 = vmatpush.msra.mxu0 %v427
    %2270 = vmatpush.msra.mxu0 %v423
    %2271 = vmatpush.msra.mxu0 %v419
    %2272 = vmatpush.msra.mxu0 %v415
    %2273 = vmatpush.msra.mxu0 %v411
    %2274 = vmatpush.msra.mxu0 %v407
    %2275 = vmatpush.msra.mxu0 %v403
    %2276 = vmatpush.msra.mxu0 %v399
    %2277 = vmatpush.msra.mxu0 %v395
    %2278 = vmatmul.f32.gmra.mxu0 %v2261
    %v2279 = vpop.f32.mrf.mxu0
    %v2280 = vadd.f32 %v526, %v2279
    %2281 = vdwg.mxu0
    %2282 = vmatpush.msra.mxu0 %v519
    %2283 = vmatpush.msra.mxu0 %v515
    %2284 = vmatpush.msra.mxu0 %v511
    %2285 = vmatpush.msra.mxu0 %v507
    %2286 = vmatpush.msra.mxu0 %v503
    %2287 = vmatpush.msra.mxu0 %v499
    %2288 = vmatpush.msra.mxu0 %v495
    %2289 = vmatpush.msra.mxu0 %v491
    %2290 = vmatpush.msra.mxu0 %v487
    %2291 = vmatpush.msra.mxu0 %v483
    %2292 = vmatpush.msra.mxu0 %v479
    %2293 = vmatpush.msra.mxu0 %v475
    %2294 = vmatpush.msra.mxu0 %v471
    %2295 = vmatpush.msra.mxu0 %v467
    %2296 = vmatpush.msra.mxu0 %v463
    %2297 = vmatpush.msra.mxu0 %v459
    %2298 = vmatmul.f32.gmra.mxu0 %v2148
    %v2299 = vpop.f32.mrf.mxu0
    %v2300 = vadd.f32 %v2280, %v2299
    %2301 = vdwg.mxu0
    %2302 = vmatpush.msra.mxu0 %v456
    %2303 = vmatpush.msra.mxu0 %v452
    %2304 = vmatpush.msra.mxu0 %v448
    %2305 = vmatpush.msra.mxu0 %v444
    %2306 = vmatpush.msra.mxu0 %v440
    %2307 = vmatpush.msra.mxu0 %v436
    %2308 = vmatpush.msra.mxu0 %v432
    %2309 = vmatpush.msra.mxu0 %v428
    %2310 = vmatpush.msra.mxu0 %v424
    %2311 = vmatpush.msra.mxu0 %v420
    %2312 = vmatpush.msra.mxu0 %v416
    %2313 = vmatpush.msra.mxu0 %v412
    %2314 = vmatpush.msra.mxu0 %v408
    %2315 = vmatpush.msra.mxu0 %v404
    %2316 = vmatpush.msra.mxu0 %v400
    %2317 = vmatpush.msra.mxu0 %v396
    %2318 = vmatmul.f32.gmra.mxu0 %v2261
    %v2319 = vpop.f32.mrf.mxu0
    %v2320 = vadd.f32 %v527, %v2319
    %2321 = vdwg.mxu0
    %2322 = vmatpush.msra.mxu0 %v520
    %2323 = vmatpush.msra.mxu0 %v516
    %2324 = vmatpush.msra.mxu0 %v512
    %2325 = vmatpush.msra.mxu0 %v508
    %2326 = vmatpush.msra.mxu0 %v504
    %2327 = vmatpush.msra.mxu0 %v500
    %2328 = vmatpush.msra.mxu0 %v496
    %2329 = vmatpush.msra.mxu0 %v492
    %2330 = vmatpush.msra.mxu0 %v488
    %2331 = vmatpush.msra.mxu0 %v484
    %2332 = vmatpush.msra.mxu0 %v480
    %2333 = vmatpush.msra.mxu0 %v476
    %2334 = vmatpush.msra.mxu0 %v472
    %2335 = vmatpush.msra.mxu0 %v468
    %2336 = vmatpush.msra.mxu0 %v464
    %2337 = vmatpush.msra.mxu0 %v460
    %2338 = vmatmul.f32.gmra.mxu0 %v2148
    %v2339 = vpop.f32.mrf.mxu0
    %v2340 = vadd.f32 %v2320, %v2339
    %2341 = vdwg.mxu0
    %2342 = vmatpush.msra.mxu0 %v457
    %2343 = vmatpush.msra.mxu0 %v453
    %2344 = vmatpush.msra.mxu0 %v449
    %2345 = vmatpush.msra.mxu0 %v445
    %2346 = vmatpush.msra.mxu0 %v441
    %2347 = vmatpush.msra.mxu0 %v437
    %2348 = vmatpush.msra.mxu0 %v433
    %2349 = vmatpush.msra.mxu0 %v429
    %2350 = vmatpush.msra.mxu0 %v425
    %2351 = vmatpush.msra.mxu0 %v421
    %2352 = vmatpush.msra.mxu0 %v417
    %2353 = vmatpush.msra.mxu0 %v413
    %2354 = vmatpush.msra.mxu0 %v409
    %2355 = vmatpush.msra.mxu0 %v405
    %2356 = vmatpush.msra.mxu0 %v401
    %2357 = vmatpush.msra.mxu0 %v397
    %2358 = vmatmul.f32.gmra.mxu0 %v2261
    %v2359 = vpop.f32.mrf.mxu0
    %v2360 = vadd.f32 %v528, %v2359
    %2361 = vdwg.mxu0
    %2362 = vmatpush.msra.mxu0 %v521
    %2363 = vmatpush.msra.mxu0 %v517
    %2364 = vmatpush.msra.mxu0 %v513
    %2365 = vmatpush.msra.mxu0 %v509
    %2366 = vmatpush.msra.mxu0 %v505
    %2367 = vmatpush.msra.mxu0 %v501
    %2368 = vmatpush.msra.mxu0 %v497
    %2369 = vmatpush.msra.mxu0 %v493
    %2370 = vmatpush.msra.mxu0 %v489
    %2371 = vmatpush.msra.mxu0 %v485
    %2372 = vmatpush.msra.mxu0 %v481
    %2373 = vmatpush.msra.mxu0 %v477
    %2374 = vmatpush.msra.mxu0 %v473
    %2375 = vmatpush.msra.mxu0 %v469
    %2376 = vmatpush.msra.mxu0 %v465
    %2377 = vmatpush.msra.mxu0 %v461
    %2378 = vmatmul.f32.gmra.mxu0 %v2148
    %v2379 = vpop.f32.mrf.mxu0
    %v2380 = vadd.f32 %v2360, %v2379
    %2381 = vdwg.mxu0
    %2382 = vmatpush.msra.mxu0 %v458
    %2383 = vmatpush.msra.mxu0 %v454
    %2384 = vmatpush.msra.mxu0 %v450
    %2385 = vmatpush.msra.mxu0 %v446
    %2386 = vmatpush.msra.mxu0 %v442
    %2387 = vmatpush.msra.mxu0 %v438
    %2388 = vmatpush.msra.mxu0 %v434
    %2389 = vmatpush.msra.mxu0 %v430
    %2390 = vmatpush.msra.mxu0 %v426
    %2391 = vmatpush.msra.mxu0 %v422
    %2392 = vmatpush.msra.mxu0 %v418
    %2393 = vmatpush.msra.mxu0 %v414
    %2394 = vmatpush.msra.mxu0 %v410
    %2395 = vmatpush.msra.mxu0 %v406
    %2396 = vmatpush.msra.mxu0 %v402
    %2397 = vmatpush.msra.mxu0 %v398
    %2398 = vmatmul.f32.gmra.mxu0 %v2261
    %v2399 = vpop.f32.mrf.mxu0
    %v2400 = vadd.f32 %v529, %v2399
    %2401 = vdwg.mxu0
    %2402 = vmatpush.msra.mxu0 %v522
    %2403 = vmatpush.msra.mxu0 %v518
    %2404 = vmatpush.msra.mxu0 %v514
    %2405 = vmatpush.msra.mxu0 %v510
    %2406 = vmatpush.msra.mxu0 %v506
    %2407 = vmatpush.msra.mxu0 %v502
    %2408 = vmatpush.msra.mxu0 %v498
    %2409 = vmatpush.msra.mxu0 %v494
    %2410 = vmatpush.msra.mxu0 %v490
    %2411 = vmatpush.msra.mxu0 %v486
    %2412 = vmatpush.msra.mxu0 %v482
    %2413 = vmatpush.msra.mxu0 %v478
    %2414 = vmatpush.msra.mxu0 %v474
    %2415 = vmatpush.msra.mxu0 %v470
    %2416 = vmatpush.msra.mxu0 %v466
    %2417 = vmatpush.msra.mxu0 %v462
    %2418 = vmatmul.f32.gmra.mxu0 %v2148
    %v2419 = vpop.f32.mrf.mxu0
    %v2420 = vadd.f32 %v2400, %v2419
    %2421 = vdwg.mxu0
    %v2422 = vtanh.pop %v2300
    %v2423 = vtanh.pop %v2340
    %v2424 = vtanh.pop %v2380
    %v2425 = vtanh.pop %v2420
    %v2426 = vadd.f32 %v2422, 1.0
    %v2427 = vmul.f32 %v2426, 0.5
    %v2428 = vadd.f32 %v2423, 1.0
    %v2429 = vmul.f32 %v2428, 0.5
    %v2430 = vadd.f32 %v2424, 1.0
    %v2431 = vmul.f32 %v2430, 0.5
    %v2432 = vmul.f32 %v2429, %v2146
    %v2433 = vmul.f32 %v2427, %v2425
    %v2434 = vadd.f32 %v2432, %v2433
    %v2435 = vtanh.pop %v2434
    %v2436 = vmul.f32 %v2431, %v2435
    %s2437 = scalar_lea.vmem [#allocation2], 7
    %v2438 = vld [vmem:[%s2437] ss:$8 sm:$0xf]
    %2439 = vmatpush.msra.mxu0 %v277
    %2440 = vmatpush.msra.mxu0 %v273
    %2441 = vmatpush.msra.mxu0 %v269
    %2442 = vmatpush.msra.mxu0 %v265
    %2443 = vmatpush.msra.mxu0 %v261
    %2444 = vmatpush.msra.mxu0 %v257
    %2445 = vmatpush.msra.mxu0 %v253
    %2446 = vmatpush.msra.mxu0 %v249
    %2447 = vmatpush.msra.mxu0 %v245
    %2448 = vmatpush.msra.mxu0 %v241
    %2449 = vmatpush.msra.mxu0 %v237
    %2450 = vmatpush.msra.mxu0 %v233
    %2451 = vmatpush.msra.mxu0 %v229
    %2452 = vmatpush.msra.mxu0 %v225
    %2453 = vmatpush.msra.mxu0 %v221
    %2454 = vmatpush.msra.mxu0 %v217
    %2455 = vmatmul.f32.gmra.mxu0 %v2261
    %v2456 = vpop.f32.mrf.mxu0
    %v2457 = vadd.f32 0.0, %v2456
    %2458 = vdwg.mxu0
    %2459 = vmatpush.msra.mxu0 %v278
    %2460 = vmatpush.msra.mxu0 %v274
    %2461 = vmatpush.msra.mxu0 %v270
    %2462 = vmatpush.msra.mxu0 %v266
    %2463 = vmatpush.msra.mxu0 %v262
    %2464 = vmatpush.msra.mxu0 %v258
    %2465 = vmatpush.msra.mxu0 %v254
    %2466 = vmatpush.msra.mxu0 %v250
    %2467 = vmatpush.msra.mxu0 %v246
    %2468 = vmatpush.msra.mxu0 %v242
    %2469 = vmatpush.msra.mxu0 %v238
    %2470 = vmatpush.msra.mxu0 %v234
    %2471 = vmatpush.msra.mxu0 %v230
    %2472 = vmatpush.msra.mxu0 %v226
    %2473 = vmatpush.msra.mxu0 %v222
    %2474 = vmatpush.msra.mxu0 %v218
    %2475 = vmatmul.f32.gmra.mxu0 %v2261
    %v2476 = vpop.f32.mrf.mxu0
    %v2477 = vadd.f32 0.0, %v2476
    %2478 = vdwg.mxu0
    %2479 = vmatpush.msra.mxu0 %v279
    %2480 = vmatpush.msra.mxu0 %v275
    %2481 = vmatpush.msra.mxu0 %v271
    %2482 = vmatpush.msra.mxu0 %v267
    %2483 = vmatpush.msra.mxu0 %v263
    %2484 = vmatpush.msra.mxu0 %v259
    %2485 = vmatpush.msra.mxu0 %v255
    %2486 = vmatpush.msra.mxu0 %v251
    %2487 = vmatpush.msra.mxu0 %v247
    %2488 = vmatpush.msra.mxu0 %v243
    %2489 = vmatpush.msra.mxu0 %v239
    %2490 = vmatpush.msra.mxu0 %v235
    %2491 = vmatpush.msra.mxu0 %v231
    %2492 = vmatpush.msra.mxu0 %v227
    %2493 = vmatpush.msra.mxu0 %v223
    %2494 = vmatpush.msra.mxu0 %v219
    %2495 = vmatmul.f32.gmra.mxu0 %v2261
    %v2496 = vpop.f32.mrf.mxu0
    %v2497 = vadd.f32 0.0, %v2496
    %2498 = vdwg.mxu0
    %2499 = vmatpush.msra.mxu0 %v280
    %2500 = vmatpush.msra.mxu0 %v276
    %2501 = vmatpush.msra.mxu0 %v272
    %2502 = vmatpush.msra.mxu0 %v268
    %2503 = vmatpush.msra.mxu0 %v264
    %2504 = vmatpush.msra.mxu0 %v260
    %2505 = vmatpush.msra.mxu0 %v256
    %2506 = vmatpush.msra.mxu0 %v252
    %2507 = vmatpush.msra.mxu0 %v248
    %2508 = vmatpush.msra.mxu0 %v244
    %2509 = vmatpush.msra.mxu0 %v240
    %2510 = vmatpush.msra.mxu0 %v236
    %2511 = vmatpush.msra.mxu0 %v232
    %2512 = vmatpush.msra.mxu0 %v228
    %2513 = vmatpush.msra.mxu0 %v224
    %2514 = vmatpush.msra.mxu0 %v220
    %2515 = vmatmul.f32.gmra.mxu0 %v2261
    %v2516 = vpop.f32.mrf.mxu0
    %v2517 = vadd.f32 0.0, %v2516
    %2518 = vdwg.mxu0
    %v2523 = vrot.slane %v2477, 7
    %v2524 = vrot.slane %v2497, 6
    %v2525 = vrot.slane %v2517, 5
    %v2526 = vsel %vm368, %v2457, %v2523
    %v2527 = vsel %vm370, %v2524, %v2525
    %v2528 = vsel %vm372, %v2526, %v2527
    %v2530 = vadd.f32 %v2438, %v2528
    %v2531 = vtanh.pop %v2530
    %v2532 = vadd.f32 %v2531, 1.0
    %v2533 = vmul.f32 %v2532, 0.5
    %v2535 = vrot.slane %v2531, 1
    %v2537 = vadd.f32 %v2535, 1.0
    %v2538 = vmul.f32 %v2537, 0.5
    %v2539 = vrot.slane %v2531, 2
    %v2541 = vadd.f32 %v2539, 1.0
    %v2542 = vmul.f32 %v2541, 0.5
    %v2543 = vmul.f32 %v2538, %v2259
    %v2544 = vrot.slane %v2531, 3
    %v2546 = vmul.f32 %v2533, %v2544
    %v2547 = vadd.f32 %v2543, %v2546
    %v2548 = vtanh.pop %v2547
    %v2549 = vmul.f32 %v2542, %v2548
    %2550 = vmatpush.msra.mxu0 %v455
    %2551 = vmatpush.msra.mxu0 %v451
    %2552 = vmatpush.msra.mxu0 %v447
    %2553 = vmatpush.msra.mxu0 %v443
    %2554 = vmatpush.msra.mxu0 %v439
    %2555 = vmatpush.msra.mxu0 %v435
    %2556 = vmatpush.msra.mxu0 %v431
    %2557 = vmatpush.msra.mxu0 %v427
    %2558 = vmatpush.msra.mxu0 %v423
    %2559 = vmatpush.msra.mxu0 %v419
    %2560 = vmatpush.msra.mxu0 %v415
    %2561 = vmatpush.msra.mxu0 %v411
    %2562 = vmatpush.msra.mxu0 %v407
    %2563 = vmatpush.msra.mxu0 %v403
    %2564 = vmatpush.msra.mxu0 %v399
    %2565 = vmatpush.msra.mxu0 %v395
    %2566 = vmatmul.f32.gmra.mxu0 %v2549
    %v2567 = vpop.f32.mrf.mxu0
    %v2568 = vadd.f32 %v526, %v2567
    %2569 = vdwg.mxu0
    %2570 = vmatpush.msra.mxu0 %v519
    %2571 = vmatpush.msra.mxu0 %v515
    %2572 = vmatpush.msra.mxu0 %v511
    %2573 = vmatpush.msra.mxu0 %v507
    %2574 = vmatpush.msra.mxu0 %v503
    %2575 = vmatpush.msra.mxu0 %v499
    %2576 = vmatpush.msra.mxu0 %v495
    %2577 = vmatpush.msra.mxu0 %v491
    %2578 = vmatpush.msra.mxu0 %v487
    %2579 = vmatpush.msra.mxu0 %v483
    %2580 = vmatpush.msra.mxu0 %v479
    %2581 = vmatpush.msra.mxu0 %v475
    %2582 = vmatpush.msra.mxu0 %v471
    %2583 = vmatpush.msra.mxu0 %v467
    %2584 = vmatpush.msra.mxu0 %v463
    %2585 = vmatpush.msra.mxu0 %v459
    %2586 = vmatmul.f32.gmra.mxu0 %v2436
    %v2587 = vpop.f32.mrf.mxu0
    %v2588 = vadd.f32 %v2568, %v2587
    %2589 = vdwg.mxu0
    %2590 = vmatpush.msra.mxu0 %v456
    %2591 = vmatpush.msra.mxu0 %v452
    %2592 = vmatpush.msra.mxu0 %v448
    %2593 = vmatpush.msra.mxu0 %v444
    %2594 = vmatpush.msra.mxu0 %v440
    %2595 = vmatpush.msra.mxu0 %v436
    %2596 = vmatpush.msra.mxu0 %v432
    %2597 = vmatpush.msra.mxu0 %v428
    %2598 = vmatpush.msra.mxu0 %v424
    %2599 = vmatpush.msra.mxu0 %v420
    %2600 = vmatpush.msra.mxu0 %v416
    %2601 = vmatpush.msra.mxu0 %v412
    %2602 = vmatpush.msra.mxu0 %v408
    %2603 = vmatpush.msra.mxu0 %v404
    %2604 = vmatpush.msra.mxu0 %v400
    %2605 = vmatpush.msra.mxu0 %v396
    %2606 = vmatmul.f32.gmra.mxu0 %v2549
    %v2607 = vpop.f32.mrf.mxu0
    %v2608 = vadd.f32 %v527, %v2607
    %2609 = vdwg.mxu0
    %2610 = vmatpush.msra.mxu0 %v520
    %2611 = vmatpush.msra.mxu0 %v516
    %2612 = vmatpush.msra.mxu0 %v512
    %2613 = vmatpush.msra.mxu0 %v508
    %2614 = vmatpush.msra.mxu0 %v504
    %2615 = vmatpush.msra.mxu0 %v500
    %2616 = vmatpush.msra.mxu0 %v496
    %2617 = vmatpush.msra.mxu0 %v492
    %2618 = vmatpush.msra.mxu0 %v488
    %2619 = vmatpush.msra.mxu0 %v484
    %2620 = vmatpush.msra.mxu0 %v480
    %2621 = vmatpush.msra.mxu0 %v476
    %2622 = vmatpush.msra.mxu0 %v472
    %2623 = vmatpush.msra.mxu0 %v468
    %2624 = vmatpush.msra.mxu0 %v464
    %2625 = vmatpush.msra.mxu0 %v460
    %2626 = vmatmul.f32.gmra.mxu0 %v2436
    %v2627 = vpop.f32.mrf.mxu0
    %v2628 = vadd.f32 %v2608, %v2627
    %2629 = vdwg.mxu0
    %2630 = vmatpush.msra.mxu0 %v457
    %2631 = vmatpush.msra.mxu0 %v453
    %2632 = vmatpush.msra.mxu0 %v449
    %2633 = vmatpush.msra.mxu0 %v445
    %2634 = vmatpush.msra.mxu0 %v441
    %2635 = vmatpush.msra.mxu0 %v437
    %2636 = vmatpush.msra.mxu0 %v433
    %2637 = vmatpush.msra.mxu0 %v429
    %2638 = vmatpush.msra.mxu0 %v425
    %2639 = vmatpush.msra.mxu0 %v421
    %2640 = vmatpush.msra.mxu0 %v417
    %2641 = vmatpush.msra.mxu0 %v413
    %2642 = vmatpush.msra.mxu0 %v409
    %2643 = vmatpush.msra.mxu0 %v405
    %2644 = vmatpush.msra.mxu0 %v401
    %2645 = vmatpush.msra.mxu0 %v397
    %2646 = vmatmul.f32.gmra.mxu0 %v2549
    %v2647 = vpop.f32.mrf.mxu0
    %v2648 = vadd.f32 %v528, %v2647
    %2649 = vdwg.mxu0
    %2650 = vmatpush.msra.mxu0 %v521
    %2651 = vmatpush.msra.mxu0 %v517
    %2652 = vmatpush.msra.mxu0 %v513
    %2653 = vmatpush.msra.mxu0 %v509
    %2654 = vmatpush.msra.mxu0 %v505
    %2655 = vmatpush.msra.mxu0 %v501
    %2656 = vmatpush.msra.mxu0 %v497
    %2657 = vmatpush.msra.mxu0 %v493
    %2658 = vmatpush.msra.mxu0 %v489
    %2659 = vmatpush.msra.mxu0 %v485
    %2660 = vmatpush.msra.mxu0 %v481
    %2661 = vmatpush.msra.mxu0 %v477
    %2662 = vmatpush.msra.mxu0 %v473
    %2663 = vmatpush.msra.mxu0 %v469
    %2664 = vmatpush.msra.mxu0 %v465
    %2665 = vmatpush.msra.mxu0 %v461
    %2666 = vmatmul.f32.gmra.mxu0 %v2436
    %v2667 = vpop.f32.mrf.mxu0
    %v2668 = vadd.f32 %v2648, %v2667
    %2669 = vdwg.mxu0
    %2670 = vmatpush.msra.mxu0 %v458
    %2671 = vmatpush.msra.mxu0 %v454
    %2672 = vmatpush.msra.mxu0 %v450
    %2673 = vmatpush.msra.mxu0 %v446
    %2674 = vmatpush.msra.mxu0 %v442
    %2675 = vmatpush.msra.mxu0 %v438
    %2676 = vmatpush.msra.mxu0 %v434
    %2677 = vmatpush.msra.mxu0 %v430
    %2678 = vmatpush.msra.mxu0 %v426
    %2679 = vmatpush.msra.mxu0 %v422
    %2680 = vmatpush.msra.mxu0 %v418
    %2681 = vmatpush.msra.mxu0 %v414
    %2682 = vmatpush.msra.mxu0 %v410
    %2683 = vmatpush.msra.mxu0 %v406
    %2684 = vmatpush.msra.mxu0 %v402
    %2685 = vmatpush.msra.mxu0 %v398
    %2686 = vmatmul.f32.gmra.mxu0 %v2549
    %v2687 = vpop.f32.mrf.mxu0
    %v2688 = vadd.f32 %v529, %v2687
    %2689 = vdwg.mxu0
    %2690 = vmatpush.msra.mxu0 %v522
    %2691 = vmatpush.msra.mxu0 %v518
    %2692 = vmatpush.msra.mxu0 %v514
    %2693 = vmatpush.msra.mxu0 %v510
    %2694 = vmatpush.msra.mxu0 %v506
    %2695 = vmatpush.msra.mxu0 %v502
    %2696 = vmatpush.msra.mxu0 %v498
    %2697 = vmatpush.msra.mxu0 %v494
    %2698 = vmatpush.msra.mxu0 %v490
    %2699 = vmatpush.msra.mxu0 %v486
    %2700 = vmatpush.msra.mxu0 %v482
    %2701 = vmatpush.msra.mxu0 %v478
    %2702 = vmatpush.msra.mxu0 %v474
    %2703 = vmatpush.msra.mxu0 %v470
    %2704 = vmatpush.msra.mxu0 %v466
    %2705 = vmatpush.msra.mxu0 %v462
    %2706 = vmatmul.f32.gmra.mxu0 %v2436
    %v2707 = vpop.f32.mrf.mxu0
    %v2708 = vadd.f32 %v2688, %v2707
    %2709 = vdwg.mxu0
    %v2710 = vtanh.pop %v2588
    %v2711 = vtanh.pop %v2628
    %v2712 = vtanh.pop %v2668
    %v2713 = vtanh.pop %v2708
    %v2714 = vadd.f32 %v2710, 1.0
    %v2715 = vmul.f32 %v2714, 0.5
    %v2716 = vadd.f32 %v2711, 1.0
    %v2717 = vmul.f32 %v2716, 0.5
    %v2718 = vadd.f32 %v2712, 1.0
    %v2719 = vmul.f32 %v2718, 0.5
    %v2720 = vmul.f32 %v2717, %v2434
    %v2721 = vmul.f32 %v2715, %v2713
    %v2722 = vadd.f32 %v2720, %v2721
    %v2723 = vtanh.pop %v2722
    %v2724 = vmul.f32 %v2719, %v2723
    %v2725 = vld [vmem:[#allocation3 + $0x800] sm:$0xff]
    %v2726 = vld [vmem:[#allocation3 + $0x820] sm:$0xff]
    %v2727 = vld [vmem:[#allocation3 + $0x840] sm:$0xff]
    %v2728 = vld [vmem:[#allocation3 + $0x860] sm:$0xff]
    %v2729 = vld [vmem:[#allocation3 + $0x880] sm:$0xff]
    %v2730 = vld [vmem:[#allocation3 + $0x8a0] sm:$0xff]
    %v2731 = vld [vmem:[#allocation3 + $0x8c0] sm:$0xff]
    %v2732 = vld [vmem:[#allocation3 + $0x8e0] sm:$0xff]
    %v2733 = vld [vmem:[#allocation3 + $0x900] sm:$0xff]
    %v2734 = vld [vmem:[#allocation3 + $0x920] sm:$0xff]
    %v2735 = vld [vmem:[#allocation3 + $0x940] sm:$0xff]
    %v2736 = vld [vmem:[#allocation3 + $0x960] sm:$0xff]
    %v2737 = vld [vmem:[#allocation3 + $0x980] sm:$0xff]
    %v2738 = vld [vmem:[#allocation3 + $0x9a0] sm:$0xff]
    %v2739 = vld [vmem:[#allocation3 + $0x9c0] sm:$0xff]
    %v2740 = vld [vmem:[#allocation3 + $0x9e0] sm:$0xff]
    %2741 = vmatpush.msra.mxu0 %v2740
    %2742 = vmatpush.msra.mxu0 %v2739
    %2743 = vmatpush.msra.mxu0 %v2738
    %2744 = vmatpush.msra.mxu0 %v2737
    %2745 = vmatpush.msra.mxu0 %v2736
    %2746 = vmatpush.msra.mxu0 %v2735
    %2747 = vmatpush.msra.mxu0 %v2734
    %2748 = vmatpush.msra.mxu0 %v2733
    %2749 = vmatpush.msra.mxu0 %v2732
    %2750 = vmatpush.msra.mxu0 %v2731
    %2751 = vmatpush.msra.mxu0 %v2730
    %2752 = vmatpush.msra.mxu0 %v2729
    %2753 = vmatpush.msra.mxu0 %v2728
    %2754 = vmatpush.msra.mxu0 %v2727
    %2755 = vmatpush.msra.mxu0 %v2726
    %2756 = vmatpush.msra.mxu0 %v2725
    %2757 = vmatmul.f32.gmra.mxu0 %v2724
    %v2758 = vpop.f32.mrf.mxu0
    %v2759 = vadd.f32 0.0, %v2758
    %2760 = vdwg.mxu0
    %v2761 = vld [vmem:[#allocation6 + $0x2] sm:$0x1]
    %v2762 = vadd.f32 %v2759, %v2761
    %2763 = vst [vmem:[#allocation8] sm:$0x1] %v2762
    %2764 = vst [vmem:[%s5] sm:$0x1] %v2549
    %s2765 = scalar_lea.vmem %s5, 1
    %2766 = vst [vmem:[%s2765] sm:$0x1] %v2724
    %s2767 = scalar_lea.vmem %s5, 2
    %2768 = vst [vmem:[%s2767] sm:$0x1] %v2547
    %s2769 = scalar_lea.vmem %s5, 3
    %2770 = vst [vmem:[%s2769] sm:$0x1] %v2722
    // Predicated region
    $region26: #{lstm_forward.1} parent=1 // pred_check
      _
    $region27: #{lstm_forward.1} parent=1 // pred_check_branch
      %2772 = sbr.rel (0) target = $region29
    $region28: #{lstm_forward.1} parent=1 // pred_region
      %2774 = vsyncadd [#allocation5], 0
      %s2776 = sshll.u32 [#allocation8], 4
      %s2777 = int_to_ptr.vmem [resolvable:$true] %s2776
      %s2778 = sshll.u32 %s4, 4
      %s2779 = int_to_ptr.hbm [resolvable:$true] %s2778
      %2781 = dma.vmem_to_hbm [thread:$0]  %s2777, 16, %s2779, [#allocation5]
    $region29: #{lstm_forward.1} parent=1 // pred_fallthru
      _
    // Predicated region
    $region30: #{lstm_forward.1} parent=1 // pred_check
      _
    $region31: #{lstm_forward.1} parent=1 // pred_check_branch
      %2783 = sbr.rel (0) target = $region33
    $region32: #{lstm_forward.1} parent=1 // pred_region
      _
    $region33: #{lstm_forward.1} parent=1 // pred_fallthru
      _
    // Predicated region
    $region34: #{lstm_forward.1} parent=1 // pred_check
      _
    $region35: #{lstm_forward.1} parent=1 // pred_check_branch
      %2785 = sbr.rel (0) target = $region37
    $region36: #{lstm_forward.1} parent=1 // pred_region
      %2787 = dma.done [#allocation5], 16
    $region37: #{lstm_forward.1} parent=1 // pred_fallthru
      _
    // Predicated region
    $region38: #{lstm_forward.1} parent=1 // pred_check
      _
    $region39: #{lstm_forward.1} parent=1 // pred_check_branch
      %2789 = sbr.rel (0) target = $region41
    $region40: #{lstm_forward.1} parent=1 // pred_region
      _
    $region41: #{lstm_forward.1} parent=1 // pred_fallthru
      _
    %2790 = vsyncpa [#allocation4], 1
    %2791 = vsyncpa [#allocation7], 1
    %2792 = vsyncpa [#allocation5], 1

</llo_original>
